<compile_context>
chip_gen: v7x
topology: tpu7x:2x2x1
jax: 0.10.0
libtpu: 0.0.40
codegen_flags: <defaults>
</compile_context>

<pallas_src>
import functools
import math

import numpy as np
import jax
import jax.numpy as jnp
from jax import lax
from jax.experimental import pallas as pl
from jax.experimental.pallas import tpu as pltpu

# "-inf" stand-in for max-pool padding: never wins against real activations
# (SiLU output >= -0.279) and stays finite under a bf16 cast, unlike -FLT_MAX.
NEG = -1.0e30

_DILS = (1, 2, 3)
# the 8 non-centre taps of a 3x3 window, row-major (shared by kernel & mask builder)
_OFFS = tuple((ky, kx) for ky in range(3) for kx in range(3)
              if not (ky == 1 and kx == 1))


# --------------------------------------------------------------------------
# host-side constant construction
# --------------------------------------------------------------------------
def _bilinear_matrix(n_in, n_out):
    """align_corners=True bilinear interpolation matrix, shape (n_out, n_in)."""
    A = np.zeros((n_out, n_in), np.float32)
    if n_in == 1 or n_out == 1:
        A[:, 0] = 1.0
        return A
    for i in range(n_out):
        src = i * (n_in - 1) / (n_out - 1)
        i0 = int(math.floor(src))
        i1 = min(i0 + 1, n_in - 1)
        w = src - i0
        A[i, i0] += 1.0 - w
        A[i, i1] += w
    return A


def _padded_axis_matrix(n_in, n_out_final, pad_front):
    """x2-upsample matrix with F.pad folded in: (n_out_final, n_in)."""
    A = _bilinear_matrix(n_in, 2 * n_in)                  # (2*n_in, n_in)
    P = np.zeros((n_out_final, n_in), np.float32)
    for o in range(n_out_final):
        i = o - pad_front
        if 0 <= i < 2 * n_in:
            P[o] = A[i]
    return P


def _border_masks(H, W, N):
    """(24, N*H*W) 0/1 masks for every (dilation, tap) offset + (8, N*H*W) NEG planes."""
    rows = np.repeat(np.arange(H), W)
    cols = np.tile(np.arange(W), H)
    m = np.zeros((len(_DILS) * len(_OFFS), H * W), np.float32)
    i = 0
    for d in _DILS:
        for (ky, kx) in _OFFS:
            dy, dx = (ky - 1) * d, (kx - 1) * d
            ok = ((rows + dy >= 0) & (rows + dy < H) &
                  (cols + dx >= 0) & (cols + dx < W))
            m[i] = ok.astype(np.float32)
            i += 1
    m = np.tile(m, (1, N))                    # per-item pattern repeated over the batch
    negb = (1.0 - m[:len(_OFFS)]) * NEG       # NEG outside the image for the d=1 taps
    return m, negb


# --------------------------------------------------------------------------
# fused kernel: pointwise_in + 3 dilated depthwise branches + 2 max-pool
# branches + pointwise_out, all on a lane-dense (C, N*H*W) layout
# --------------------------------------------------------------------------
def _silu(v):
    # SiLU with the EUP approx reciprocal (keeps the divide off the VALU slot)
    return v * pl.reciprocal(1.0 + jnp.exp(-v), approx=True)


def _fused_kernel(x2_ref, t1u_ref, mask_ref, negb_ref,
                  w_in2_ref, dw_ref, wm_ref, wout_ref,
                  sb_mid_ref, sb_out_ref, o_ref, *, W):
    f32, bf16 = jnp.float32, jnp.bfloat16
    NHW = x2_ref.shape[1]

    # hoisted constant loads (no per-tap ref slices / re-broadcast selects)
    masks = mask_ref[...]                     # (24, NHW) f32 0/1 border masks
    negb = negb_ref[...]                      # (8,  NHW) f32 0/NEG planes (d=1 taps)
    dw = dw_ref[...]                          # (Cmid, 27) f32 depthwise taps [d1|d2|d3]
    sb = sb_mid_ref[...]                      # (Cmid, 12) f32 folded-BN scale/bias pairs

    # ---- pointwise_in: bf16 MXU matmul (x2 part) + precomputed upsampled-x1 slab
    t = jnp.dot(w_in2_ref[...], x2_ref[...], preferred_element_type=f32)
    t = t + t1u_ref[...].astype(f32)
    t = _silu(t * sb[:, 0:1] + sb[:, 1:2])    # f32 activation, (Cmid, NHW)

    mp1 = t                                   # 3x3/s1/p1 pool includes the centre tap
    mp2 = None                                # k2/s1/p1/d2 pool = the four d=1 corners
    out_acc = None                            # streamed pointwise_out accumulator
    mi = 0
    for di, d in enumerate(_DILS):
        acc = t * dw[:, di * 9 + 4: di * 9 + 5]            # centre tap, never masked
        for (ky, kx) in _OFFS:
            dy, dx = (ky - 1) * d, (kx - 1) * d
            s = dy * W + dx
            # pltpu.roll matches jnp.roll: out[i] = x[(i - shift) % n]  ->  tap[p] = t[p+s]
            val = pltpu.roll(t, (NHW - s) % NHW, axis=1)
            prod = val * masks[mi: mi + 1]                 # zero outside the image
            k = di * 9 + ky * 3 + kx
            acc = acc + prod * dw[:, k: k + 1]
            if d == 1:                                     # d=1 taps feed both pools
                tapn = prod + negb[mi: mi + 1]             # NEG outside the image
                mp1 = jnp.maximum(mp1, tapn)
                if ky != 1 and kx != 1:                    # corners = dilated-2 pool taps
                    mp2 = tapn if mp2 is None else jnp.maximum(mp2, tapn)
            mi += 1
        br = _silu(acc * sb[:, 2 + 2 * di: 3 + 2 * di] + sb[:, 3 + 2 * di: 4 + 2 * di])
        ctr = jnp.dot(wout_ref[di], br.astype(bf16), preferred_element_type=f32)
        out_acc = ctr if out_acc is None else out_acc + ctr

    # ---- max-pool branches (1x1 conv + BN + SiLU), streamed into pointwise_out
    b4 = _silu(jnp.dot(wm_ref[0], mp1.astype(bf16), preferred_element_type=f32)
               * sb[:, 8:9] + sb[:, 9:10])
    out_acc = out_acc + jnp.dot(wout_ref[3], b4.astype(bf16), preferred_element_type=f32)
    b5 = _silu(jnp.dot(wm_ref[1], mp2.astype(bf16), preferred_element_type=f32)
               * sb[:, 10:11] + sb[:, 11:12])
    out_acc = out_acc + jnp.dot(wout_ref[4], b5.astype(bf16), preferred_element_type=f32)

    sbo = sb_out_ref[...]
    out = _silu(out_acc * sbo[:, 0:1] + sbo[:, 1:2])
    # TODO(synk): Dropout2d(drop_rate) is identity in inference mode; omitted.
    o_ref[...] = out.astype(o_ref.dtype)


# --------------------------------------------------------------------------
# wrapper: one fused pallas_call, grid=(1,) with the batch folded into lanes
# --------------------------------------------------------------------------
def multidilation_upsampling_forward(x1, x2, p, out_dtype=jnp.float32):
    """x1: (N, C1, H1, W1), x2: (N, C2, H2, W2) -- NCHW float32 (PyTorch layout)."""
    N, C1, H1, W1 = x1.shape
    N2, C2, H2, W2 = x2.shape
    assert N2 == N
    # review concern: the dilated-2 pool has only corner taps; needs H,W >= 2
    assert H2 >= 2 and W2 >= 2
    HW = H2 * W2
    NHW = N * HW
    Cmid = p["w_in"].shape[0]
    Cout = p["w_out"].shape[0]
    assert p["w_in"].shape[1] == C1 + C2

    bf16 = jnp.bfloat16
    HIGH = lax.Precision.HIGHEST

    # --- x1 branch prologue (small XLA ops): pointwise_in(x1 part) at LOW res, then
    #     separable align_corners=True x2 upsample with F.pad folded into the matrices.
    w_in2 = p["w_in"][:, :C2]                 # module concat order is [x2, x1_up]
    w_in1 = p["w_in"][:, C2:]
    ah = jnp.asarray(_padded_axis_matrix(H1, H2, (H2 - 2 * H1) // 2))   # (H2, H1)
    aw = jnp.asarray(_padded_axis_matrix(W1, W2, (W2 - 2 * W1) // 2))   # (W2, W1)
    t1 = jnp.einsum("mc,nchw->nmhw", w_in1, x1, precision=HIGH)         # (N,Cmid,H1,W1)
    t1 = jnp.einsum("oh,nmhw->nmow", ah, t1, precision=HIGH)            # (N,Cmid,H2,W1)
    t1 = jnp.einsum("pw,nmow->nmop", aw, t1, precision=HIGH)            # (N,Cmid,H2,W2)
    t1u = jnp.transpose(t1, (1, 0, 2, 3)).reshape(Cmid, NHW).astype(bf16)

    # --- lane-dense activations: batch folded into the lane axis
    x2b = jnp.transpose(x2, (1, 0, 2, 3)).reshape(C2, NHW).astype(bf16)

    # --- host-precomputed border masks / NEG planes
    masks_np, negb_np = _border_masks(H2, W2, N)
    masks = jnp.asarray(masks_np)
    negb = jnp.asarray(negb_np)

    # --- packed constants (folded BN scale/bias, depthwise taps, 1x1 weights)
    sb_mid = jnp.concatenate(
        [p["s_in"], p["b_in"], p["s1"], p["b1"], p["s2"], p["b2"],
         p["s3"], p["b3"], p["s_m1"], p["b_m1"], p["s_m2"], p["b_m2"]], axis=1)
    sb_out = jnp.concatenate([p["s_out"], p["b_out"]], axis=1)           # (Cout, 2)
    dw_pk = jnp.concatenate([p["dw1"], p["dw2"], p["dw3"]], axis=1)      # (Cmid, 27) f32
    wm_pk = jnp.stack([p["w_m1"], p["w_m2"]]).astype(bf16)               # (2, Cmid, Cmid)
    wout_pk = jnp.transpose(p["w_out"].reshape(Cout, 5, Cmid), (1, 0, 2)).astype(bf16)
    w_in2b = w_in2.astype(bf16)

    args = (x2b, t1u, masks, negb, w_in2b, dw_pk, wm_pk, wout_pk, sb_mid, sb_out)

    def full_spec(shape):
        zeros = (0,) * len(shape)
        return pl.BlockSpec(tuple(shape), lambda i, _z=zeros: _z)

    # Single grid step: the batch lives in the lane axis, so there is no per-item
    # pipeline overhead.  NOTE(production / v7x): at large H/W add an H-tile grid
    # axis with a 3-row halo (the masks already handle borders) -- it bounds VMEM
    # on v7x (64 MiB physical) and gives its two TensorCores a parallel axis.
    out_flat = pl.pallas_call(
        functools.partial(_fused_kernel, W=W2),
        out_shape=jax.ShapeDtypeStruct((Cout, NHW), out_dtype),
        grid=(1,),
        in_specs=[full_spec(a.shape) for a in args],
        out_specs=full_spec((Cout, NHW)),
        compiler_params=pltpu.CompilerParams(
            dimension_semantics=("arbitrary",),
            vmem_limit_bytes=32 * 1024 * 1024),
    )(*args)

    # out_dtype could be bf16 on bandwidth-limited v5e if the consumer allows.
    return jnp.transpose(out_flat.reshape(Cout, N, H2, W2), (1, 0, 2, 3))


# --------------------------------------------------------------------------
# deterministic synthetic parameters (BN folded into per-channel scale/bias)
# weights are stored Conv2d-style: (out_channels, in_channels)
# --------------------------------------------------------------------------
def make_params(key, in_ch, out_ch, reduction=4):
    mid = in_ch // reduction
    ks = jax.random.split(key, 14)

    def bn(k, ch, eps=1e-5):
        k1, k2, k3, k4 = jax.random.split(k, 4)
        gamma = jax.random.uniform(k1, (ch,), jnp.float32, 0.5, 1.5)
        beta = 0.1 * jax.random.normal(k2, (ch,), jnp.float32)
        rmean = 0.1 * jax.random.normal(k3, (ch,), jnp.float32)
        rvar = jax.random.uniform(k4, (ch,), jnp.float32, 0.5, 1.5)
        scale = gamma / jnp.sqrt(rvar + eps)
        bias = beta - rmean * scale
        return scale.reshape(ch, 1), bias.reshape(ch, 1)

    def w(k, shape, fan_in):
        return jax.random.normal(k, shape, jnp.float32) / math.sqrt(fan_in)

    p = {}
    p["w_in"] = w(ks[0], (mid, in_ch), in_ch)            # pointwise_in 1x1
    p["s_in"], p["b_in"] = bn(ks[1], mid)
    p["dw1"] = w(ks[2], (mid, 9), 9)                     # depthwise 3x3, dil=1
    p["s1"], p["b1"] = bn(ks[3], mid)
    p["dw2"] = w(ks[4], (mid, 9), 9)                     # depthwise 3x3, dil=2
    p["s2"], p["b2"] = bn(ks[5], mid)
    p["dw3"] = w(ks[6], (mid, 9), 9)                     # depthwise 3x3, dil=3
    p["s3"], p["b3"] = bn(ks[7], mid)
    p["w_m1"] = w(ks[8], (mid, mid), mid)                # max_branch_1 1x1
    p["s_m1"], p["b_m1"] = bn(ks[9], mid)
    p["w_m2"] = w(ks[10], (mid, mid), mid)               # max_branch_2 1x1
    p["s_m2"], p["b_m2"] = bn(ks[11], mid)
    p["w_out"] = w(ks[12], (out_ch, 5 * mid), 5 * mid)   # pointwise_out 1x1
    p["s_out"], p["b_out"] = bn(ks[13], out_ch)
    return p


# --------------------------------------------------------------------------
# pure-JAX f32 reference (exact module math, NCHW) for the correctness check
# --------------------------------------------------------------------------
def _silu_ref(v):
    return v * jax.nn.sigmoid(v)


def _ref_forward(x1, x2, p):
    N, C1, H1, W1 = x1.shape
    _, C2, H2, W2 = x2.shape
    HIGH = lax.Precision.HIGHEST

    Ah = jnp.asarray(_bilinear_matrix(H1, 2 * H1))
    Aw = jnp.asarray(_bilinear_matrix(W1, 2 * W1))
    x1u = jnp.einsum("oi,ncij,pj->ncop", Ah, x1, Aw, precision=HIGH)
    dY, dX = H2 - 2 * H1, W2 - 2 * W1
    x1u = jnp.pad(x1u, ((0, 0), (0, 0),
                        (dY // 2, dY - dY // 2), (dX // 2, dX - dX // 2)))
    x = jnp.concatenate([x2, x1u], axis=1)            # (N, C1+C2, H2, W2)
    H, W = H2, W2

    def pw(v, wgt, s, b):
        y = jnp.einsum("oc,nchw->nohw", wgt, v, precision=HIGH)
        return _silu_ref(y * s.reshape(1, -1, 1, 1) + b.reshape(1, -1, 1, 1))

    def bn_act(v, s, b):
        return _silu_ref(v * s.reshape(1, -1, 1, 1) + b.reshape(1, -1, 1, 1))

    def dwconv(v, w9, d):
        vp = jnp.pad(v, ((0, 0), (0, 0), (d, d), (d, d)))
        acc = jnp.zeros_like(v)
        for ky in range(3):
            for kx in range(3):
                acc = acc + (vp[:, :, ky * d:ky * d + H, kx * d:kx * d + W]
                             * w9[:, ky * 3 + kx].reshape(1, -1, 1, 1))
        return acc

    def mpool(v, k, pad, dil):
        vp = jnp.pad(v, ((0, 0), (0, 0), (pad, pad), (pad, pad)),
                     constant_values=NEG)
        acc = jnp.full_like(v, NEG)
        for ky in range(k):
            for kx in range(k):
                acc = jnp.maximum(
                    acc, vp[:, :, ky * dil:ky * dil + H, kx * dil:kx * dil + W])
        return acc

    t = pw(x, p["w_in"], p["s_in"], p["b_in"])
    b1 = bn_act(dwconv(t, p["dw1"], 1), p["s1"], p["b1"])
    b2 = bn_act(dwconv(t, p["dw2"], 2), p["s2"], p["b2"])
    b3 = bn_act(dwconv(t, p["dw3"], 3), p["s3"], p["b3"])
    b4 = pw(mpool(t, 3, 1, 1), p["w_m1"], p["s_m1"], p["b_m1"])
    b5 = pw(mpool(t, 2, 1, 2), p["w_m2"], p["s_m2"], p["b_m2"])
    cat = jnp.concatenate([b1, b2, b3, b4, b5], axis=1)
    return pw(cat, p["w_out"], p["s_out"], p["b_out"])


if __name__ == "__main__":
    key = jax.random.PRNGKey(0)
    k1, k2, kp = jax.random.split(key, 3)

    N = 2
    C1, C2 = 16, 16          # x1 channels (low-res), x2 channels (skip)
    H1, W1 = 8, 8            # low-res input (bilinearly upsampled x2)
    H2, W2 = 16, 16          # skip-connection resolution
    in_ch = C1 + C2          # channels after concat (=> Cmid = in_ch // 4 = 8)
    out_ch = 16

    x1 = jax.random.normal(k1, (N, C1, H1, W1), jnp.float32)
    x2 = jax.random.normal(k2, (N, C2, H2, W2), jnp.float32)
    params = make_params(kp, in_ch, out_ch, reduction=4)

    out = multidilation_upsampling_forward(x1, x2, params)
    out = jax.block_until_ready(out)
    assert out.shape == (N, out_ch, H2, W2)

    ref = _ref_forward(x1, x2, params)
    diff = np.abs(np.asarray(out) - np.asarray(ref))
    # bf16 MXU operands (per perf review) vs an exact-f32 reference: worst-element
    # error stays at the few-e-2 level across the 3 stacked BN+SiLU stages, mean
    # error at the few-e-3 level.
    np.testing.assert_allclose(np.asarray(out), np.asarray(ref),
                               rtol=6e-2, atol=6e-2)
    assert float(diff.mean()) < 1e-2
    print("KERNEL_OK")
</pallas_src>

<mosaic_0001>
module attributes {stable_mosaic.version = 11 : i64} {
  func.func @_fused_kernel(%arg0: i32, %arg1: memref<16x512xbf16, #tpu.memory_space<vmem>>, %arg2: memref<8x512xbf16, #tpu.memory_space<vmem>>, %arg3: memref<24x512xf32, #tpu.memory_space<vmem>>, %arg4: memref<8x512xf32, #tpu.memory_space<vmem>>, %arg5: memref<8x16xbf16, #tpu.memory_space<vmem>>, %arg6: memref<8x27xf32, #tpu.memory_space<vmem>>, %arg7: memref<2x8x8xbf16, #tpu.memory_space<vmem>>, %arg8: memref<5x16x8xbf16, #tpu.memory_space<vmem>>, %arg9: memref<8x12xf32, #tpu.memory_space<vmem>>, %arg10: memref<16x2xf32, #tpu.memory_space<vmem>>, %arg11: memref<16x512xf32, #tpu.memory_space<vmem>>) attributes {dimension_semantics = [#tpu.dimension_semantics<arbitrary>], iteration_bounds = array<i64: 1>, scalar_prefetch = 0 : i64, scratch_operands = 0 : i64, tpu.core_type = #tpu.core_type<tc>, window_params = [{pipeline_mode = #tpu.pipeline_mode<synchronous>, transform_indices = @transform_0, window_bounds = array<i64: 16, 512>}, {pipeline_mode = #tpu.pipeline_mode<synchronous>, transform_indices = @transform_1, window_bounds = array<i64: 8, 512>}, {pipeline_mode = #tpu.pipeline_mode<synchronous>, transform_indices = @transform_2, window_bounds = array<i64: 24, 512>}, {pipeline_mode = #tpu.pipeline_mode<synchronous>, transform_indices = @transform_3, window_bounds = array<i64: 8, 512>}, {pipeline_mode = #tpu.pipeline_mode<synchronous>, transform_indices = @transform_4, window_bounds = array<i64: 8, 16>}, {pipeline_mode = #tpu.pipeline_mode<synchronous>, transform_indices = @transform_5, window_bounds = array<i64: 8, 27>}, {pipeline_mode = #tpu.pipeline_mode<synchronous>, transform_indices = @transform_6, window_bounds = array<i64: 2, 8, 8>}, {pipeline_mode = #tpu.pipeline_mode<synchronous>, transform_indices = @transform_7, window_bounds = array<i64: 5, 16, 8>}, {pipeline_mode = #tpu.pipeline_mode<synchronous>, transform_indices = @transform_8, window_bounds = array<i64: 8, 12>}, {pipeline_mode = #tpu.pipeline_mode<synchronous>, transform_indices = @transform_9, window_bounds = array<i64: 16, 2>}, {pipeline_mode = #tpu.pipeline_mode<synchronous>, transform_indices = @transform_10, window_bounds = array<i64: 16, 512>}]} {
    %c0 = arith.constant 0 : index
    %c0_0 = arith.constant 0 : index
    %0 = vector.load %arg3[%c0, %c0_0] : memref<24x512xf32, #tpu.memory_space<vmem>>, vector<24x512xf32>
    %c0_1 = arith.constant 0 : index
    %c0_2 = arith.constant 0 : index
    %1 = vector.load %arg4[%c0_1, %c0_2] : memref<8x512xf32, #tpu.memory_space<vmem>>, vector<8x512xf32>
    %c0_3 = arith.constant 0 : index
    %c0_4 = arith.constant 0 : index
    %2 = vector.load %arg6[%c0_3, %c0_4] : memref<8x27xf32, #tpu.memory_space<vmem>>, vector<8x27xf32>
    %c0_5 = arith.constant 0 : index
    %c0_6 = arith.constant 0 : index
    %3 = vector.load %arg9[%c0_5, %c0_6] : memref<8x12xf32, #tpu.memory_space<vmem>>, vector<8x12xf32>
    %c0_7 = arith.constant 0 : index
    %c0_8 = arith.constant 0 : index
    %4 = vector.load %arg5[%c0_7, %c0_8] : memref<8x16xbf16, #tpu.memory_space<vmem>>, vector<8x16xbf16>
    %c0_9 = arith.constant 0 : index
    %c0_10 = arith.constant 0 : index
    %5 = vector.load %arg1[%c0_9, %c0_10] : memref<16x512xbf16, #tpu.memory_space<vmem>>, vector<16x512xbf16>
    %cst = arith.constant dense<0.000000e+00> : vector<8x512xf32>
    %6 = tpu.matmul %4, %5, %cst {dimension_numbers = #tpu.dot_dimension_numbers<[1], [0], [0], [1], [0, 0, 1, 1], [], []>} : vector<8x16xbf16>, vector<16x512xbf16>, vector<8x512xf32> -> vector<8x512xf32>
    %c0_11 = arith.constant 0 : index
    %c0_12 = arith.constant 0 : index
    %7 = vector.load %arg2[%c0_11, %c0_12] : memref<8x512xbf16, #tpu.memory_space<vmem>>, vector<8x512xbf16>
    %8 = arith.extf %7 : vector<8x512xbf16> to vector<8x512xf32>
    %9 = arith.addf %6, %8 : vector<8x512xf32>
    %10 = vector.extract_strided_slice %3 {offsets = [0, 0], sizes = [8, 1], strides = [1, 1]} : vector<8x12xf32> to vector<8x1xf32>
    %11 = vector.broadcast %10 : vector<8x1xf32> to vector<8x512xf32>
    %12 = arith.mulf %9, %11 : vector<8x512xf32>
    %13 = vector.extract_strided_slice %3 {offsets = [0, 1], sizes = [8, 1], strides = [1, 1]} : vector<8x12xf32> to vector<8x1xf32>
    %14 = vector.broadcast %13 : vector<8x1xf32> to vector<8x512xf32>
    %15 = arith.addf %12, %14 : vector<8x512xf32>
    %cst_13 = arith.constant 0.000000e+00 : f32
    %16 = vector.broadcast %cst_13 : f32 to vector<8x512xf32>
    %17 = arith.subf %16, %15 : vector<8x512xf32>
    %18 = math.exp %17 : vector<8x512xf32>
    %cst_14 = arith.constant 1.000000e+00 : f32
    %19 = vector.broadcast %cst_14 : f32 to vector<8x512xf32>
    %20 = arith.addf %19, %18 : vector<8x512xf32>
    %21 = tpu.reciprocal %20 {approx = true} : vector<8x512xf32> -> vector<8x512xf32>
    %22 = arith.mulf %15, %21 : vector<8x512xf32>
    %23 = vector.extract_strided_slice %2 {offsets = [0, 4], sizes = [8, 1], strides = [1, 1]} : vector<8x27xf32> to vector<8x1xf32>
    %24 = vector.broadcast %23 : vector<8x1xf32> to vector<8x512xf32>
    %25 = arith.mulf %22, %24 : vector<8x512xf32>
    %c17_i32 = arith.constant 17 : i32
    %26 = tpu.dynamic_rotate %22 by %c17_i32 dim 1 : vector<8x512xf32>, i32 -> vector<8x512xf32>
    %27 = vector.extract_strided_slice %0 {offsets = [0, 0], sizes = [1, 512], strides = [1, 1]} : vector<24x512xf32> to vector<1x512xf32>
    %28 = vector.broadcast %27 : vector<1x512xf32> to vector<8x512xf32>
    %29 = arith.mulf %26, %28 : vector<8x512xf32>
    %30 = vector.extract_strided_slice %2 {offsets = [0, 0], sizes = [8, 1], strides = [1, 1]} : vector<8x27xf32> to vector<8x1xf32>
    %31 = vector.broadcast %30 : vector<8x1xf32> to vector<8x512xf32>
    %32 = arith.mulf %29, %31 : vector<8x512xf32>
    %33 = arith.addf %25, %32 : vector<8x512xf32>
    %34 = vector.extract_strided_slice %1 {offsets = [0, 0], sizes = [1, 512], strides = [1, 1]} : vector<8x512xf32> to vector<1x512xf32>
    %35 = vector.broadcast %34 : vector<1x512xf32> to vector<8x512xf32>
    %36 = arith.addf %29, %35 : vector<8x512xf32>
    %37 = arith.maximumf %22, %36 : vector<8x512xf32>
    %c16_i32 = arith.constant 16 : i32
    %38 = tpu.dynamic_rotate %22 by %c16_i32 dim 1 : vector<8x512xf32>, i32 -> vector<8x512xf32>
    %39 = vector.extract_strided_slice %0 {offsets = [1, 0], sizes = [1, 512], strides = [1, 1]} : vector<24x512xf32> to vector<1x512xf32>
    %40 = vector.broadcast %39 : vector<1x512xf32> to vector<8x512xf32>
    %41 = arith.mulf %38, %40 : vector<8x512xf32>
    %42 = vector.extract_strided_slice %2 {offsets = [0, 1], sizes = [8, 1], strides = [1, 1]} : vector<8x27xf32> to vector<8x1xf32>
    %43 = vector.broadcast %42 : vector<8x1xf32> to vector<8x512xf32>
    %44 = arith.mulf %41, %43 : vector<8x512xf32>
    %45 = arith.addf %33, %44 : vector<8x512xf32>
    %46 = vector.extract_strided_slice %1 {offsets = [1, 0], sizes = [1, 512], strides = [1, 1]} : vector<8x512xf32> to vector<1x512xf32>
    %47 = vector.broadcast %46 : vector<1x512xf32> to vector<8x512xf32>
    %48 = arith.addf %41, %47 : vector<8x512xf32>
    %49 = arith.maximumf %37, %48 : vector<8x512xf32>
    %c15_i32 = arith.constant 15 : i32
    %50 = tpu.dynamic_rotate %22 by %c15_i32 dim 1 : vector<8x512xf32>, i32 -> vector<8x512xf32>
    %51 = vector.extract_strided_slice %0 {offsets = [2, 0], sizes = [1, 512], strides = [1, 1]} : vector<24x512xf32> to vector<1x512xf32>
    %52 = vector.broadcast %51 : vector<1x512xf32> to vector<8x512xf32>
    %53 = arith.mulf %50, %52 : vector<8x512xf32>
    %54 = vector.extract_strided_slice %2 {offsets = [0, 2], sizes = [8, 1], strides = [1, 1]} : vector<8x27xf32> to vector<8x1xf32>
    %55 = vector.broadcast %54 : vector<8x1xf32> to vector<8x512xf32>
    %56 = arith.mulf %53, %55 : vector<8x512xf32>
    %57 = arith.addf %45, %56 : vector<8x512xf32>
    %58 = vector.extract_strided_slice %1 {offsets = [2, 0], sizes = [1, 512], strides = [1, 1]} : vector<8x512xf32> to vector<1x512xf32>
    %59 = vector.broadcast %58 : vector<1x512xf32> to vector<8x512xf32>
    %60 = arith.addf %53, %59 : vector<8x512xf32>
    %61 = arith.maximumf %49, %60 : vector<8x512xf32>
    %62 = arith.maximumf %36, %60 : vector<8x512xf32>
    %c1_i32 = arith.constant 1 : i32
    %63 = tpu.dynamic_rotate %22 by %c1_i32 dim 1 : vector<8x512xf32>, i32 -> vector<8x512xf32>
    %64 = vector.extract_strided_slice %0 {offsets = [3, 0], sizes = [1, 512], strides = [1, 1]} : vector<24x512xf32> to vector<1x512xf32>
    %65 = vector.broadcast %64 : vector<1x512xf32> to vector<8x512xf32>
    %66 = arith.mulf %63, %65 : vector<8x512xf32>
    %67 = vector.extract_strided_slice %2 {offsets = [0, 3], sizes = [8, 1], strides = [1, 1]} : vector<8x27xf32> to vector<8x1xf32>
    %68 = vector.broadcast %67 : vector<8x1xf32> to vector<8x512xf32>
    %69 = arith.mulf %66, %68 : vector<8x512xf32>
    %70 = arith.addf %57, %69 : vector<8x512xf32>
    %71 = vector.extract_strided_slice %1 {offsets = [3, 0], sizes = [1, 512], strides = [1, 1]} : vector<8x512xf32> to vector<1x512xf32>
    %72 = vector.broadcast %71 : vector<1x512xf32> to vector<8x512xf32>
    %73 = arith.addf %66, %72 : vector<8x512xf32>
    %74 = arith.maximumf %61, %73 : vector<8x512xf32>
    %c511_i32 = arith.constant 511 : i32
    %75 = tpu.dynamic_rotate %22 by %c511_i32 dim 1 : vector<8x512xf32>, i32 -> vector<8x512xf32>
    %76 = vector.extract_strided_slice %0 {offsets = [4, 0], sizes = [1, 512], strides = [1, 1]} : vector<24x512xf32> to vector<1x512xf32>
    %77 = vector.broadcast %76 : vector<1x512xf32> to vector<8x512xf32>
    %78 = arith.mulf %75, %77 : vector<8x512xf32>
    %79 = vector.extract_strided_slice %2 {offsets = [0, 5], sizes = [8, 1], strides = [1, 1]} : vector<8x27xf32> to vector<8x1xf32>
    %80 = vector.broadcast %79 : vector<8x1xf32> to vector<8x512xf32>
    %81 = arith.mulf %78, %80 : vector<8x512xf32>
    %82 = arith.addf %70, %81 : vector<8x512xf32>
    %83 = vector.extract_strided_slice %1 {offsets = [4, 0], sizes = [1, 512], strides = [1, 1]} : vector<8x512xf32> to vector<1x512xf32>
    %84 = vector.broadcast %83 : vector<1x512xf32> to vector<8x512xf32>
    %85 = arith.addf %78, %84 : vector<8x512xf32>
    %86 = arith.maximumf %74, %85 : vector<8x512xf32>
    %c497_i32 = arith.constant 497 : i32
    %87 = tpu.dynamic_rotate %22 by %c497_i32 dim 1 : vector<8x512xf32>, i32 -> vector<8x512xf32>
    %88 = vector.extract_strided_slice %0 {offsets = [5, 0], sizes = [1, 512], strides = [1, 1]} : vector<24x512xf32> to vector<1x512xf32>
    %89 = vector.broadcast %88 : vector<1x512xf32> to vector<8x512xf32>
    %90 = arith.mulf %87, %89 : vector<8x512xf32>
    %91 = vector.extract_strided_slice %2 {offsets = [0, 6], sizes = [8, 1], strides = [1, 1]} : vector<8x27xf32> to vector<8x1xf32>
    %92 = vector.broadcast %91 : vector<8x1xf32> to vector<8x512xf32>
    %93 = arith.mulf %90, %92 : vector<8x512xf32>
    %94 = arith.addf %82, %93 : vector<8x512xf32>
    %95 = vector.extract_strided_slice %1 {offsets = [5, 0], sizes = [1, 512], strides = [1, 1]} : vector<8x512xf32> to vector<1x512xf32>
    %96 = vector.broadcast %95 : vector<1x512xf32> to vector<8x512xf32>
    %97 = arith.addf %90, %96 : vector<8x512xf32>
    %98 = arith.maximumf %86, %97 : vector<8x512xf32>
    %99 = arith.maximumf %62, %97 : vector<8x512xf32>
    %c496_i32 = arith.constant 496 : i32
    %100 = tpu.dynamic_rotate %22 by %c496_i32 dim 1 : vector<8x512xf32>, i32 -> vector<8x512xf32>
    %101 = vector.extract_strided_slice %0 {offsets = [6, 0], sizes = [1, 512], strides = [1, 1]} : vector<24x512xf32> to vector<1x512xf32>
    %102 = vector.broadcast %101 : vector<1x512xf32> to vector<8x512xf32>
    %103 = arith.mulf %100, %102 : vector<8x512xf32>
    %104 = vector.extract_strided_slice %2 {offsets = [0, 7], sizes = [8, 1], strides = [1, 1]} : vector<8x27xf32> to vector<8x1xf32>
    %105 = vector.broadcast %104 : vector<8x1xf32> to vector<8x512xf32>
    %106 = arith.mulf %103, %105 : vector<8x512xf32>
    %107 = arith.addf %94, %106 : vector<8x512xf32>
    %108 = vector.extract_strided_slice %1 {offsets = [6, 0], sizes = [1, 512], strides = [1, 1]} : vector<8x512xf32> to vector<1x512xf32>
    %109 = vector.broadcast %108 : vector<1x512xf32> to vector<8x512xf32>
    %110 = arith.addf %103, %109 : vector<8x512xf32>
    %111 = arith.maximumf %98, %110 : vector<8x512xf32>
    %c495_i32 = arith.constant 495 : i32
    %112 = tpu.dynamic_rotate %22 by %c495_i32 dim 1 : vector<8x512xf32>, i32 -> vector<8x512xf32>
    %113 = vector.extract_strided_slice %0 {offsets = [7, 0], sizes = [1, 512], strides = [1, 1]} : vector<24x512xf32> to vector<1x512xf32>
    %114 = vector.broadcast %113 : vector<1x512xf32> to vector<8x512xf32>
    %115 = arith.mulf %112, %114 : vector<8x512xf32>
    %116 = vector.extract_strided_slice %2 {offsets = [0, 8], sizes = [8, 1], strides = [1, 1]} : vector<8x27xf32> to vector<8x1xf32>
    %117 = vector.broadcast %116 : vector<8x1xf32> to vector<8x512xf32>
    %118 = arith.mulf %115, %117 : vector<8x512xf32>
    %119 = arith.addf %107, %118 : vector<8x512xf32>
    %120 = vector.extract_strided_slice %1 {offsets = [7, 0], sizes = [1, 512], strides = [1, 1]} : vector<8x512xf32> to vector<1x512xf32>
    %121 = vector.broadcast %120 : vector<1x512xf32> to vector<8x512xf32>
    %122 = arith.addf %115, %121 : vector<8x512xf32>
    %123 = arith.maximumf %111, %122 : vector<8x512xf32>
    %124 = arith.maximumf %99, %122 : vector<8x512xf32>
    %125 = vector.extract_strided_slice %3 {offsets = [0, 2], sizes = [8, 1], strides = [1, 1]} : vector<8x12xf32> to vector<8x1xf32>
    %126 = vector.broadcast %125 : vector<8x1xf32> to vector<8x512xf32>
    %127 = arith.mulf %119, %126 : vector<8x512xf32>
    %128 = vector.extract_strided_slice %3 {offsets = [0, 3], sizes = [8, 1], strides = [1, 1]} : vector<8x12xf32> to vector<8x1xf32>
    %129 = vector.broadcast %128 : vector<8x1xf32> to vector<8x512xf32>
    %130 = arith.addf %127, %129 : vector<8x512xf32>
    %cst_15 = arith.constant 0.000000e+00 : f32
    %131 = vector.broadcast %cst_15 : f32 to vector<8x512xf32>
    %132 = arith.subf %131, %130 : vector<8x512xf32>
    %133 = math.exp %132 : vector<8x512xf32>
    %cst_16 = arith.constant 1.000000e+00 : f32
    %134 = vector.broadcast %cst_16 : f32 to vector<8x512xf32>
    %135 = arith.addf %134, %133 : vector<8x512xf32>
    %136 = tpu.reciprocal %135 {approx = true} : vector<8x512xf32> -> vector<8x512xf32>
    %137 = arith.mulf %130, %136 : vector<8x512xf32>
    %c0_17 = arith.constant 0 : index
    %c0_18 = arith.constant 0 : index
    %c0_19 = arith.constant 0 : index
    %138 = vector.load %arg8[%c0_17, %c0_18, %c0_19] : memref<5x16x8xbf16, #tpu.memory_space<vmem>>, vector<1x16x8xbf16>
    %139 = vector.shape_cast %138 : vector<1x16x8xbf16> to vector<16x8xbf16>
    %140 = arith.truncf %137 : vector<8x512xf32> to vector<8x512xbf16>
    %cst_20 = arith.constant dense<0.000000e+00> : vector<16x512xf32>
    %141 = tpu.matmul %139, %140, %cst_20 {dimension_numbers = #tpu.dot_dimension_numbers<[1], [0], [0], [1], [0, 0, 1, 1], [], []>} : vector<16x8xbf16>, vector<8x512xbf16>, vector<16x512xf32> -> vector<16x512xf32>
    %142 = vector.extract_strided_slice %2 {offsets = [0, 13], sizes = [8, 1], strides = [1, 1]} : vector<8x27xf32> to vector<8x1xf32>
    %143 = vector.broadcast %142 : vector<8x1xf32> to vector<8x512xf32>
    %144 = arith.mulf %22, %143 : vector<8x512xf32>
    %c34_i32 = arith.constant 34 : i32
    %145 = tpu.dynamic_rotate %22 by %c34_i32 dim 1 : vector<8x512xf32>, i32 -> vector<8x512xf32>
    %146 = vector.extract_strided_slice %0 {offsets = [8, 0], sizes = [1, 512], strides = [1, 1]} : vector<24x512xf32> to vector<1x512xf32>
    %147 = vector.broadcast %146 : vector<1x512xf32> to vector<8x512xf32>
    %148 = arith.mulf %145, %147 : vector<8x512xf32>
    %149 = vector.extract_strided_slice %2 {offsets = [0, 9], sizes = [8, 1], strides = [1, 1]} : vector<8x27xf32> to vector<8x1xf32>
    %150 = vector.broadcast %149 : vector<8x1xf32> to vector<8x512xf32>
    %151 = arith.mulf %148, %150 : vector<8x512xf32>
    %152 = arith.addf %144, %151 : vector<8x512xf32>
    %c32_i32 = arith.constant 32 : i32
    %153 = tpu.dynamic_rotate %22 by %c32_i32 dim 1 : vector<8x512xf32>, i32 -> vector<8x512xf32>
    %154 = vector.extract_strided_slice %0 {offsets = [9, 0], sizes = [1, 512], strides = [1, 1]} : vector<24x512xf32> to vector<1x512xf32>
    %155 = vector.broadcast %154 : vector<1x512xf32> to vector<8x512xf32>
    %156 = arith.mulf %153, %155 : vector<8x512xf32>
    %157 = vector.extract_strided_slice %2 {offsets = [0, 10], sizes = [8, 1], strides = [1, 1]} : vector<8x27xf32> to vector<8x1xf32>
    %158 = vector.broadcast %157 : vector<8x1xf32> to vector<8x512xf32>
    %159 = arith.mulf %156, %158 : vector<8x512xf32>
    %160 = arith.addf %152, %159 : vector<8x512xf32>
    %c30_i32 = arith.constant 30 : i32
    %161 = tpu.dynamic_rotate %22 by %c30_i32 dim 1 : vector<8x512xf32>, i32 -> vector<8x512xf32>
    %162 = vector.extract_strided_slice %0 {offsets = [10, 0], sizes = [1, 512], strides = [1, 1]} : vector<24x512xf32> to vector<1x512xf32>
    %163 = vector.broadcast %162 : vector<1x512xf32> to vector<8x512xf32>
    %164 = arith.mulf %161, %163 : vector<8x512xf32>
    %165 = vector.extract_strided_slice %2 {offsets = [0, 11], sizes = [8, 1], strides = [1, 1]} : vector<8x27xf32> to vector<8x1xf32>
    %166 = vector.broadcast %165 : vector<8x1xf32> to vector<8x512xf32>
    %167 = arith.mulf %164, %166 : vector<8x512xf32>
    %168 = arith.addf %160, %167 : vector<8x512xf32>
    %c2_i32 = arith.constant 2 : i32
    %169 = tpu.dynamic_rotate %22 by %c2_i32 dim 1 : vector<8x512xf32>, i32 -> vector<8x512xf32>
    %170 = vector.extract_strided_slice %0 {offsets = [11, 0], sizes = [1, 512], strides = [1, 1]} : vector<24x512xf32> to vector<1x512xf32>
    %171 = vector.broadcast %170 : vector<1x512xf32> to vector<8x512xf32>
    %172 = arith.mulf %169, %171 : vector<8x512xf32>
    %173 = vector.extract_strided_slice %2 {offsets = [0, 12], sizes = [8, 1], strides = [1, 1]} : vector<8x27xf32> to vector<8x1xf32>
    %174 = vector.broadcast %173 : vector<8x1xf32> to vector<8x512xf32>
    %175 = arith.mulf %172, %174 : vector<8x512xf32>
    %176 = arith.addf %168, %175 : vector<8x512xf32>
    %c510_i32 = arith.constant 510 : i32
    %177 = tpu.dynamic_rotate %22 by %c510_i32 dim 1 : vector<8x512xf32>, i32 -> vector<8x512xf32>
    %178 = vector.extract_strided_slice %0 {offsets = [12, 0], sizes = [1, 512], strides = [1, 1]} : vector<24x512xf32> to vector<1x512xf32>
    %179 = vector.broadcast %178 : vector<1x512xf32> to vector<8x512xf32>
    %180 = arith.mulf %177, %179 : vector<8x512xf32>
    %181 = vector.extract_strided_slice %2 {offsets = [0, 14], sizes = [8, 1], strides = [1, 1]} : vector<8x27xf32> to vector<8x1xf32>
    %182 = vector.broadcast %181 : vector<8x1xf32> to vector<8x512xf32>
    %183 = arith.mulf %180, %182 : vector<8x512xf32>
    %184 = arith.addf %176, %183 : vector<8x512xf32>
    %c482_i32 = arith.constant 482 : i32
    %185 = tpu.dynamic_rotate %22 by %c482_i32 dim 1 : vector<8x512xf32>, i32 -> vector<8x512xf32>
    %186 = vector.extract_strided_slice %0 {offsets = [13, 0], sizes = [1, 512], strides = [1, 1]} : vector<24x512xf32> to vector<1x512xf32>
    %187 = vector.broadcast %186 : vector<1x512xf32> to vector<8x512xf32>
    %188 = arith.mulf %185, %187 : vector<8x512xf32>
    %189 = vector.extract_strided_slice %2 {offsets = [0, 15], sizes = [8, 1], strides = [1, 1]} : vector<8x27xf32> to vector<8x1xf32>
    %190 = vector.broadcast %189 : vector<8x1xf32> to vector<8x512xf32>
    %191 = arith.mulf %188, %190 : vector<8x512xf32>
    %192 = arith.addf %184, %191 : vector<8x512xf32>
    %c480_i32 = arith.constant 480 : i32
    %193 = tpu.dynamic_rotate %22 by %c480_i32 dim 1 : vector<8x512xf32>, i32 -> vector<8x512xf32>
    %194 = vector.extract_strided_slice %0 {offsets = [14, 0], sizes = [1, 512], strides = [1, 1]} : vector<24x512xf32> to vector<1x512xf32>
    %195 = vector.broadcast %194 : vector<1x512xf32> to vector<8x512xf32>
    %196 = arith.mulf %193, %195 : vector<8x512xf32>
    %197 = vector.extract_strided_slice %2 {offsets = [0, 16], sizes = [8, 1], strides = [1, 1]} : vector<8x27xf32> to vector<8x1xf32>
    %198 = vector.broadcast %197 : vector<8x1xf32> to vector<8x512xf32>
    %199 = arith.mulf %196, %198 : vector<8x512xf32>
    %200 = arith.addf %192, %199 : vector<8x512xf32>
    %c478_i32 = arith.constant 478 : i32
    %201 = tpu.dynamic_rotate %22 by %c478_i32 dim 1 : vector<8x512xf32>, i32 -> vector<8x512xf32>
    %202 = vector.extract_strided_slice %0 {offsets = [15, 0], sizes = [1, 512], strides = [1, 1]} : vector<24x512xf32> to vector<1x512xf32>
    %203 = vector.broadcast %202 : vector<1x512xf32> to vector<8x512xf32>
    %204 = arith.mulf %201, %203 : vector<8x512xf32>
    %205 = vector.extract_strided_slice %2 {offsets = [0, 17], sizes = [8, 1], strides = [1, 1]} : vector<8x27xf32> to vector<8x1xf32>
    %206 = vector.broadcast %205 : vector<8x1xf32> to vector<8x512xf32>
    %207 = arith.mulf %204, %206 : vector<8x512xf32>
    %208 = arith.addf %200, %207 : vector<8x512xf32>
    %209 = vector.extract_strided_slice %3 {offsets = [0, 4], sizes = [8, 1], strides = [1, 1]} : vector<8x12xf32> to vector<8x1xf32>
    %210 = vector.broadcast %209 : vector<8x1xf32> to vector<8x512xf32>
    %211 = arith.mulf %208, %210 : vector<8x512xf32>
    %212 = vector.extract_strided_slice %3 {offsets = [0, 5], sizes = [8, 1], strides = [1, 1]} : vector<8x12xf32> to vector<8x1xf32>
    %213 = vector.broadcast %212 : vector<8x1xf32> to vector<8x512xf32>
    %214 = arith.addf %211, %213 : vector<8x512xf32>
    %cst_21 = arith.constant 0.000000e+00 : f32
    %215 = vector.broadcast %cst_21 : f32 to vector<8x512xf32>
    %216 = arith.subf %215, %214 : vector<8x512xf32>
    %217 = math.exp %216 : vector<8x512xf32>
    %cst_22 = arith.constant 1.000000e+00 : f32
    %218 = vector.broadcast %cst_22 : f32 to vector<8x512xf32>
    %219 = arith.addf %218, %217 : vector<8x512xf32>
    %220 = tpu.reciprocal %219 {approx = true} : vector<8x512xf32> -> vector<8x512xf32>
    %221 = arith.mulf %214, %220 : vector<8x512xf32>
    %c1 = arith.constant 1 : index
    %c0_23 = arith.constant 0 : index
    %c0_24 = arith.constant 0 : index
    %222 = vector.load %arg8[%c1, %c0_23, %c0_24] : memref<5x16x8xbf16, #tpu.memory_space<vmem>>, vector<1x16x8xbf16>
    %223 = vector.shape_cast %222 : vector<1x16x8xbf16> to vector<16x8xbf16>
    %224 = arith.truncf %221 : vector<8x512xf32> to vector<8x512xbf16>
    %cst_25 = arith.constant dense<0.000000e+00> : vector<16x512xf32>
    %225 = tpu.matmul %223, %224, %cst_25 {dimension_numbers = #tpu.dot_dimension_numbers<[1], [0], [0], [1], [0, 0, 1, 1], [], []>} : vector<16x8xbf16>, vector<8x512xbf16>, vector<16x512xf32> -> vector<16x512xf32>
    %226 = arith.addf %141, %225 : vector<16x512xf32>
    %227 = vector.extract_strided_slice %2 {offsets = [0, 22], sizes = [8, 1], strides = [1, 1]} : vector<8x27xf32> to vector<8x1xf32>
    %228 = vector.broadcast %227 : vector<8x1xf32> to vector<8x512xf32>
    %229 = arith.mulf %22, %228 : vector<8x512xf32>
    %c51_i32 = arith.constant 51 : i32
    %230 = tpu.dynamic_rotate %22 by %c51_i32 dim 1 : vector<8x512xf32>, i32 -> vector<8x512xf32>
    %231 = vector.extract_strided_slice %0 {offsets = [16, 0], sizes = [1, 512], strides = [1, 1]} : vector<24x512xf32> to vector<1x512xf32>
    %232 = vector.broadcast %231 : vector<1x512xf32> to vector<8x512xf32>
    %233 = arith.mulf %230, %232 : vector<8x512xf32>
    %234 = vector.extract_strided_slice %2 {offsets = [0, 18], sizes = [8, 1], strides = [1, 1]} : vector<8x27xf32> to vector<8x1xf32>
    %235 = vector.broadcast %234 : vector<8x1xf32> to vector<8x512xf32>
    %236 = arith.mulf %233, %235 : vector<8x512xf32>
    %237 = arith.addf %229, %236 : vector<8x512xf32>
    %c48_i32 = arith.constant 48 : i32
    %238 = tpu.dynamic_rotate %22 by %c48_i32 dim 1 : vector<8x512xf32>, i32 -> vector<8x512xf32>
    %239 = vector.extract_strided_slice %0 {offsets = [17, 0], sizes = [1, 512], strides = [1, 1]} : vector<24x512xf32> to vector<1x512xf32>
    %240 = vector.broadcast %239 : vector<1x512xf32> to vector<8x512xf32>
    %241 = arith.mulf %238, %240 : vector<8x512xf32>
    %242 = vector.extract_strided_slice %2 {offsets = [0, 19], sizes = [8, 1], strides = [1, 1]} : vector<8x27xf32> to vector<8x1xf32>
    %243 = vector.broadcast %242 : vector<8x1xf32> to vector<8x512xf32>
    %244 = arith.mulf %241, %243 : vector<8x512xf32>
    %245 = arith.addf %237, %244 : vector<8x512xf32>
    %c45_i32 = arith.constant 45 : i32
    %246 = tpu.dynamic_rotate %22 by %c45_i32 dim 1 : vector<8x512xf32>, i32 -> vector<8x512xf32>
    %247 = vector.extract_strided_slice %0 {offsets = [18, 0], sizes = [1, 512], strides = [1, 1]} : vector<24x512xf32> to vector<1x512xf32>
    %248 = vector.broadcast %247 : vector<1x512xf32> to vector<8x512xf32>
    %249 = arith.mulf %246, %248 : vector<8x512xf32>
    %250 = vector.extract_strided_slice %2 {offsets = [0, 20], sizes = [8, 1], strides = [1, 1]} : vector<8x27xf32> to vector<8x1xf32>
    %251 = vector.broadcast %250 : vector<8x1xf32> to vector<8x512xf32>
    %252 = arith.mulf %249, %251 : vector<8x512xf32>
    %253 = arith.addf %245, %252 : vector<8x512xf32>
    %c3_i32 = arith.constant 3 : i32
    %254 = tpu.dynamic_rotate %22 by %c3_i32 dim 1 : vector<8x512xf32>, i32 -> vector<8x512xf32>
    %255 = vector.extract_strided_slice %0 {offsets = [19, 0], sizes = [1, 512], strides = [1, 1]} : vector<24x512xf32> to vector<1x512xf32>
    %256 = vector.broadcast %255 : vector<1x512xf32> to vector<8x512xf32>
    %257 = arith.mulf %254, %256 : vector<8x512xf32>
    %258 = vector.extract_strided_slice %2 {offsets = [0, 21], sizes = [8, 1], strides = [1, 1]} : vector<8x27xf32> to vector<8x1xf32>
    %259 = vector.broadcast %258 : vector<8x1xf32> to vector<8x512xf32>
    %260 = arith.mulf %257, %259 : vector<8x512xf32>
    %261 = arith.addf %253, %260 : vector<8x512xf32>
    %c509_i32 = arith.constant 509 : i32
    %262 = tpu.dynamic_rotate %22 by %c509_i32 dim 1 : vector<8x512xf32>, i32 -> vector<8x512xf32>
    %263 = vector.extract_strided_slice %0 {offsets = [20, 0], sizes = [1, 512], strides = [1, 1]} : vector<24x512xf32> to vector<1x512xf32>
    %264 = vector.broadcast %263 : vector<1x512xf32> to vector<8x512xf32>
    %265 = arith.mulf %262, %264 : vector<8x512xf32>
    %266 = vector.extract_strided_slice %2 {offsets = [0, 23], sizes = [8, 1], strides = [1, 1]} : vector<8x27xf32> to vector<8x1xf32>
    %267 = vector.broadcast %266 : vector<8x1xf32> to vector<8x512xf32>
    %268 = arith.mulf %265, %267 : vector<8x512xf32>
    %269 = arith.addf %261, %268 : vector<8x512xf32>
    %c467_i32 = arith.constant 467 : i32
    %270 = tpu.dynamic_rotate %22 by %c467_i32 dim 1 : vector<8x512xf32>, i32 -> vector<8x512xf32>
    %271 = vector.extract_strided_slice %0 {offsets = [21, 0], sizes = [1, 512], strides = [1, 1]} : vector<24x512xf32> to vector<1x512xf32>
    %272 = vector.broadcast %271 : vector<1x512xf32> to vector<8x512xf32>
    %273 = arith.mulf %270, %272 : vector<8x512xf32>
    %274 = vector.extract_strided_slice %2 {offsets = [0, 24], sizes = [8, 1], strides = [1, 1]} : vector<8x27xf32> to vector<8x1xf32>
    %275 = vector.broadcast %274 : vector<8x1xf32> to vector<8x512xf32>
    %276 = arith.mulf %273, %275 : vector<8x512xf32>
    %277 = arith.addf %269, %276 : vector<8x512xf32>
    %c464_i32 = arith.constant 464 : i32
    %278 = tpu.dynamic_rotate %22 by %c464_i32 dim 1 : vector<8x512xf32>, i32 -> vector<8x512xf32>
    %279 = vector.extract_strided_slice %0 {offsets = [22, 0], sizes = [1, 512], strides = [1, 1]} : vector<24x512xf32> to vector<1x512xf32>
    %280 = vector.broadcast %279 : vector<1x512xf32> to vector<8x512xf32>
    %281 = arith.mulf %278, %280 : vector<8x512xf32>
    %282 = vector.extract_strided_slice %2 {offsets = [0, 25], sizes = [8, 1], strides = [1, 1]} : vector<8x27xf32> to vector<8x1xf32>
    %283 = vector.broadcast %282 : vector<8x1xf32> to vector<8x512xf32>
    %284 = arith.mulf %281, %283 : vector<8x512xf32>
    %285 = arith.addf %277, %284 : vector<8x512xf32>
    %c461_i32 = arith.constant 461 : i32
    %286 = tpu.dynamic_rotate %22 by %c461_i32 dim 1 : vector<8x512xf32>, i32 -> vector<8x512xf32>
    %287 = vector.extract_strided_slice %0 {offsets = [23, 0], sizes = [1, 512], strides = [1, 1]} : vector<24x512xf32> to vector<1x512xf32>
    %288 = vector.broadcast %287 : vector<1x512xf32> to vector<8x512xf32>
    %289 = arith.mulf %286, %288 : vector<8x512xf32>
    %290 = vector.extract_strided_slice %2 {offsets = [0, 26], sizes = [8, 1], strides = [1, 1]} : vector<8x27xf32> to vector<8x1xf32>
    %291 = vector.broadcast %290 : vector<8x1xf32> to vector<8x512xf32>
    %292 = arith.mulf %289, %291 : vector<8x512xf32>
    %293 = arith.addf %285, %292 : vector<8x512xf32>
    %294 = vector.extract_strided_slice %3 {offsets = [0, 6], sizes = [8, 1], strides = [1, 1]} : vector<8x12xf32> to vector<8x1xf32>
    %295 = vector.broadcast %294 : vector<8x1xf32> to vector<8x512xf32>
    %296 = arith.mulf %293, %295 : vector<8x512xf32>
    %297 = vector.extract_strided_slice %3 {offsets = [0, 7], sizes = [8, 1], strides = [1, 1]} : vector<8x12xf32> to vector<8x1xf32>
    %298 = vector.broadcast %297 : vector<8x1xf32> to vector<8x512xf32>
    %299 = arith.addf %296, %298 : vector<8x512xf32>
    %cst_26 = arith.constant 0.000000e+00 : f32
    %300 = vector.broadcast %cst_26 : f32 to vector<8x512xf32>
    %301 = arith.subf %300, %299 : vector<8x512xf32>
    %302 = math.exp %301 : vector<8x512xf32>
    %cst_27 = arith.constant 1.000000e+00 : f32
    %303 = vector.broadcast %cst_27 : f32 to vector<8x512xf32>
    %304 = arith.addf %303, %302 : vector<8x512xf32>
    %305 = tpu.reciprocal %304 {approx = true} : vector<8x512xf32> -> vector<8x512xf32>
    %306 = arith.mulf %299, %305 : vector<8x512xf32>
    %c2 = arith.constant 2 : index
    %c0_28 = arith.constant 0 : index
    %c0_29 = arith.constant 0 : index
    %307 = vector.load %arg8[%c2, %c0_28, %c0_29] : memref<5x16x8xbf16, #tpu.memory_space<vmem>>, vector<1x16x8xbf16>
    %308 = vector.shape_cast %307 : vector<1x16x8xbf16> to vector<16x8xbf16>
    %309 = arith.truncf %306 : vector<8x512xf32> to vector<8x512xbf16>
    %cst_30 = arith.constant dense<0.000000e+00> : vector<16x512xf32>
    %310 = tpu.matmul %308, %309, %cst_30 {dimension_numbers = #tpu.dot_dimension_numbers<[1], [0], [0], [1], [0, 0, 1, 1], [], []>} : vector<16x8xbf16>, vector<8x512xbf16>, vector<16x512xf32> -> vector<16x512xf32>
    %311 = arith.addf %226, %310 : vector<16x512xf32>
    %c0_31 = arith.constant 0 : index
    %c0_32 = arith.constant 0 : index
    %c0_33 = arith.constant 0 : index
    %312 = vector.load %arg7[%c0_31, %c0_32, %c0_33] : memref<2x8x8xbf16, #tpu.memory_space<vmem>>, vector<1x8x8xbf16>
    %313 = vector.shape_cast %312 : vector<1x8x8xbf16> to vector<8x8xbf16>
    %314 = arith.truncf %123 : vector<8x512xf32> to vector<8x512xbf16>
    %cst_34 = arith.constant dense<0.000000e+00> : vector<8x512xf32>
    %315 = tpu.matmul %313, %314, %cst_34 {dimension_numbers = #tpu.dot_dimension_numbers<[1], [0], [0], [1], [0, 0, 1, 1], [], []>} : vector<8x8xbf16>, vector<8x512xbf16>, vector<8x512xf32> -> vector<8x512xf32>
    %316 = vector.extract_strided_slice %3 {offsets = [0, 8], sizes = [8, 1], strides = [1, 1]} : vector<8x12xf32> to vector<8x1xf32>
    %317 = vector.broadcast %316 : vector<8x1xf32> to vector<8x512xf32>
    %318 = arith.mulf %315, %317 : vector<8x512xf32>
    %319 = vector.extract_strided_slice %3 {offsets = [0, 9], sizes = [8, 1], strides = [1, 1]} : vector<8x12xf32> to vector<8x1xf32>
    %320 = vector.broadcast %319 : vector<8x1xf32> to vector<8x512xf32>
    %321 = arith.addf %318, %320 : vector<8x512xf32>
    %cst_35 = arith.constant 0.000000e+00 : f32
    %322 = vector.broadcast %cst_35 : f32 to vector<8x512xf32>
    %323 = arith.subf %322, %321 : vector<8x512xf32>
    %324 = math.exp %323 : vector<8x512xf32>
    %cst_36 = arith.constant 1.000000e+00 : f32
    %325 = vector.broadcast %cst_36 : f32 to vector<8x512xf32>
    %326 = arith.addf %325, %324 : vector<8x512xf32>
    %327 = tpu.reciprocal %326 {approx = true} : vector<8x512xf32> -> vector<8x512xf32>
    %328 = arith.mulf %321, %327 : vector<8x512xf32>
    %c3 = arith.constant 3 : index
    %c0_37 = arith.constant 0 : index
    %c0_38 = arith.constant 0 : index
    %329 = vector.load %arg8[%c3, %c0_37, %c0_38] : memref<5x16x8xbf16, #tpu.memory_space<vmem>>, vector<1x16x8xbf16>
    %330 = vector.shape_cast %329 : vector<1x16x8xbf16> to vector<16x8xbf16>
    %331 = arith.truncf %328 : vector<8x512xf32> to vector<8x512xbf16>
    %cst_39 = arith.constant dense<0.000000e+00> : vector<16x512xf32>
    %332 = tpu.matmul %330, %331, %cst_39 {dimension_numbers = #tpu.dot_dimension_numbers<[1], [0], [0], [1], [0, 0, 1, 1], [], []>} : vector<16x8xbf16>, vector<8x512xbf16>, vector<16x512xf32> -> vector<16x512xf32>
    %333 = arith.addf %311, %332 : vector<16x512xf32>
    %c1_40 = arith.constant 1 : index
    %c0_41 = arith.constant 0 : index
    %c0_42 = arith.constant 0 : index
    %334 = vector.load %arg7[%c1_40, %c0_41, %c0_42] : memref<2x8x8xbf16, #tpu.memory_space<vmem>>, vector<1x8x8xbf16>
    %335 = vector.shape_cast %334 : vector<1x8x8xbf16> to vector<8x8xbf16>
    %336 = arith.truncf %124 : vector<8x512xf32> to vector<8x512xbf16>
    %cst_43 = arith.constant dense<0.000000e+00> : vector<8x512xf32>
    %337 = tpu.matmul %335, %336, %cst_43 {dimension_numbers = #tpu.dot_dimension_numbers<[1], [0], [0], [1], [0, 0, 1, 1], [], []>} : vector<8x8xbf16>, vector<8x512xbf16>, vector<8x512xf32> -> vector<8x512xf32>
    %338 = vector.extract_strided_slice %3 {offsets = [0, 10], sizes = [8, 1], strides = [1, 1]} : vector<8x12xf32> to vector<8x1xf32>
    %339 = vector.broadcast %338 : vector<8x1xf32> to vector<8x512xf32>
    %340 = arith.mulf %337, %339 : vector<8x512xf32>
    %341 = vector.extract_strided_slice %3 {offsets = [0, 11], sizes = [8, 1], strides = [1, 1]} : vector<8x12xf32> to vector<8x1xf32>
    %342 = vector.broadcast %341 : vector<8x1xf32> to vector<8x512xf32>
    %343 = arith.addf %340, %342 : vector<8x512xf32>
    %cst_44 = arith.constant 0.000000e+00 : f32
    %344 = vector.broadcast %cst_44 : f32 to vector<8x512xf32>
    %345 = arith.subf %344, %343 : vector<8x512xf32>
    %346 = math.exp %345 : vector<8x512xf32>
    %cst_45 = arith.constant 1.000000e+00 : f32
    %347 = vector.broadcast %cst_45 : f32 to vector<8x512xf32>
    %348 = arith.addf %347, %346 : vector<8x512xf32>
    %349 = tpu.reciprocal %348 {approx = true} : vector<8x512xf32> -> vector<8x512xf32>
    %350 = arith.mulf %343, %349 : vector<8x512xf32>
    %c4 = arith.constant 4 : index
    %c0_46 = arith.constant 0 : index
    %c0_47 = arith.constant 0 : index
    %351 = vector.load %arg8[%c4, %c0_46, %c0_47] : memref<5x16x8xbf16, #tpu.memory_space<vmem>>, vector<1x16x8xbf16>
    %352 = vector.shape_cast %351 : vector<1x16x8xbf16> to vector<16x8xbf16>
    %353 = arith.truncf %350 : vector<8x512xf32> to vector<8x512xbf16>
    %cst_48 = arith.constant dense<0.000000e+00> : vector<16x512xf32>
    %354 = tpu.matmul %352, %353, %cst_48 {dimension_numbers = #tpu.dot_dimension_numbers<[1], [0], [0], [1], [0, 0, 1, 1], [], []>} : vector<16x8xbf16>, vector<8x512xbf16>, vector<16x512xf32> -> vector<16x512xf32>
    %355 = arith.addf %333, %354 : vector<16x512xf32>
    %c0_49 = arith.constant 0 : index
    %c0_50 = arith.constant 0 : index
    %356 = vector.load %arg10[%c0_49, %c0_50] : memref<16x2xf32, #tpu.memory_space<vmem>>, vector<16x2xf32>
    %357 = vector.extract_strided_slice %356 {offsets = [0, 0], sizes = [16, 1], strides = [1, 1]} : vector<16x2xf32> to vector<16x1xf32>
    %358 = vector.broadcast %357 : vector<16x1xf32> to vector<16x512xf32>
    %359 = arith.mulf %355, %358 : vector<16x512xf32>
    %360 = vector.extract_strided_slice %356 {offsets = [0, 1], sizes = [16, 1], strides = [1, 1]} : vector<16x2xf32> to vector<16x1xf32>
    %361 = vector.broadcast %360 : vector<16x1xf32> to vector<16x512xf32>
    %362 = arith.addf %359, %361 : vector<16x512xf32>
    %cst_51 = arith.constant 0.000000e+00 : f32
    %363 = vector.broadcast %cst_51 : f32 to vector<16x512xf32>
    %364 = arith.subf %363, %362 : vector<16x512xf32>
    %365 = math.exp %364 : vector<16x512xf32>
    %cst_52 = arith.constant 1.000000e+00 : f32
    %366 = vector.broadcast %cst_52 : f32 to vector<16x512xf32>
    %367 = arith.addf %366, %365 : vector<16x512xf32>
    %368 = tpu.reciprocal %367 {approx = true} : vector<16x512xf32> -> vector<16x512xf32>
    %369 = arith.mulf %362, %368 : vector<16x512xf32>
    %c0_53 = arith.constant 0 : index
    %c0_54 = arith.constant 0 : index
    %370 = vector.load %arg11[%c0_53, %c0_54] : memref<16x512xf32, #tpu.memory_space<vmem>>, vector<16x512xf32>
    tpu.vector_store %arg11[%c0_53, %c0_54], %369 {strides = array<i32>} : memref<16x512xf32, #tpu.memory_space<vmem>>, vector<16x512xf32>,
    return
  }
  func.func @transform_0(%arg0: i32) -> (i32, i32) {
    %c0_i32 = arith.constant 0 : i32
    %c0_i32_0 = arith.constant 0 : i32
    %c0_i32_1 = arith.constant 0 : i32
    return %c0_i32, %c0_i32_0 : i32, i32
  }
  func.func @transform_1(%arg0: i32) -> (i32, i32) {
    %c0_i32 = arith.constant 0 : i32
    %c0_i32_0 = arith.constant 0 : i32
    %c0_i32_1 = arith.constant 0 : i32
    return %c0_i32, %c0_i32_0 : i32, i32
  }
  func.func @transform_2(%arg0: i32) -> (i32, i32) {
    %c0_i32 = arith.constant 0 : i32
    %c0_i32_0 = arith.constant 0 : i32
    %c0_i32_1 = arith.constant 0 : i32
    return %c0_i32, %c0_i32_0 : i32, i32
  }
  func.func @transform_3(%arg0: i32) -> (i32, i32) {
    %c0_i32 = arith.constant 0 : i32
    %c0_i32_0 = arith.constant 0 : i32
    %c0_i32_1 = arith.constant 0 : i32
    return %c0_i32, %c0_i32_0 : i32, i32
  }
  func.func @transform_4(%arg0: i32) -> (i32, i32) {
    %c0_i32 = arith.constant 0 : i32
    %c0_i32_0 = arith.constant 0 : i32
    %c0_i32_1 = arith.constant 0 : i32
    return %c0_i32, %c0_i32_0 : i32, i32
  }
  func.func @transform_5(%arg0: i32) -> (i32, i32) {
    %c0_i32 = arith.constant 0 : i32
    %c0_i32_0 = arith.constant 0 : i32
    %c0_i32_1 = arith.constant 0 : i32
    return %c0_i32, %c0_i32_0 : i32, i32
  }
  func.func @transform_6(%arg0: i32) -> (i32, i32, i32) {
    %c0_i32 = arith.constant 0 : i32
    %c0_i32_0 = arith.constant 0 : i32
    %c0_i32_1 = arith.constant 0 : i32
    %c0_i32_2 = arith.constant 0 : i32
    return %c0_i32, %c0_i32_0, %c0_i32_1 : i32, i32, i32
  }
  func.func @transform_7(%arg0: i32) -> (i32, i32, i32) {
    %c0_i32 = arith.constant 0 : i32
    %c0_i32_0 = arith.constant 0 : i32
    %c0_i32_1 = arith.constant 0 : i32
    %c0_i32_2 = arith.constant 0 : i32
    return %c0_i32, %c0_i32_0, %c0_i32_1 : i32, i32, i32
  }
  func.func @transform_8(%arg0: i32) -> (i32, i32) {
    %c0_i32 = arith.constant 0 : i32
    %c0_i32_0 = arith.constant 0 : i32
    %c0_i32_1 = arith.constant 0 : i32
    return %c0_i32, %c0_i32_0 : i32, i32
  }
  func.func @transform_9(%arg0: i32) -> (i32, i32) {
    %c0_i32 = arith.constant 0 : i32
    %c0_i32_0 = arith.constant 0 : i32
    %c0_i32_1 = arith.constant 0 : i32
    return %c0_i32, %c0_i32_0 : i32, i32
  }
  func.func @transform_10(%arg0: i32) -> (i32, i32) {
    %c0_i32 = arith.constant 0 : i32
    %c0_i32_0 = arith.constant 0 : i32
    %c0_i32_1 = arith.constant 0 : i32
    return %c0_i32, %c0_i32_0 : i32, i32
  }
}

</mosaic_0001>

<llo_original>
// kernel: tpu_custom_call.1
$region0: #{tpu_custom_call.1}
  #allocation0 [shape = 'u32[]', space=smem, size = 0x4, offset = 0x4, fixed_abs, tag = 'smem constant byte address 0x4 - core index']
  #allocation1 [shape = 'u32[144,128]{1,0:T(1,128)}', space=vmem, size = 0x12000, scoped, tag = 'internal scratch']
  %s0 = inlined_call_operand.vmem [shape: bf16[16,512], index: 0, kind: input, shape index: {}]
  %s1 = inlined_call_operand.vmem [shape: bf16[8,512], index: 1, kind: input, shape index: {}]
  %s2 = inlined_call_operand.hbm [shape: f32[24,512], index: 2, kind: input, shape index: {}]
  %s3 = inlined_call_operand.vmem [shape: f32[8,512], index: 3, kind: input, shape index: {}]
  %s4 = inlined_call_operand.hbm [shape: bf16[8,16], index: 4, kind: input, shape index: {}]
  %s5 = inlined_call_operand.hbm [shape: f32[8,27], index: 5, kind: input, shape index: {}]
  %s6 = inlined_call_operand.hbm [shape: bf16[2,8,8], index: 6, kind: input, shape index: {}]
  %s7 = inlined_call_operand.vmem [shape: bf16[5,16,8], index: 7, kind: input, shape index: {}]
  %s8 = inlined_call_operand.vmem [shape: f32[8,12], index: 8, kind: input, shape index: {}]
  %s9 = inlined_call_operand.vmem [shape: f32[16,2], index: 9, kind: input, shape index: {}]
  %s10 = inlined_call_operand.hbm [shape: f32[16,512], index: 10, kind: output, shape index: {}]
  %s11 = sld [smem:[#allocation0]]
  $region66: #{tpu_custom_call.1} parent=0
    _
  %s13 = ssub.s32 1, %s11
  %s14 = scalar_select 0, %s13, %s11
  $region1: #{tpu_custom_call.1} parent=0
    #allocation2 [shape = 'u8[49152]{0}', space=vmem, size = 0xc000, scoped, tag = 'input window, operand 2, single buffered']
    #allocation3 [shape = 's32[1]{0}', space=sflag, size = 0x4, scoped, tag = 'scoped memory for tpu_custom_call.1']
    #allocation4 [shape = 's32[1]{0}', space=sflag, size = 0x4, scoped, tag = 'scoped memory for tpu_custom_call.1']
    #allocation5 [shape = 'u8[2048]{0}', space=vmem, size = 0x800, scoped, tag = 'input window, operand 4, single buffered']
    #allocation6 [shape = 's32[1]{0}', space=sflag, size = 0x4, scoped, tag = 'scoped memory for tpu_custom_call.1']
    #allocation7 [shape = 'u8[4096]{0}', space=vmem, size = 0x1000, scoped, tag = 'input window, operand 5, single buffered']
    #allocation8 [shape = 'u8[4096]{0}', space=vmem, size = 0x1000, scoped, tag = 'input window, operand 6, single buffered']
    #allocation9 [shape = 's32[1]{0}', space=sflag, size = 0x4, scoped, tag = 'scoped memory for tpu_custom_call.1']
    #allocation10 [shape = 'u8[32768]{0}', space=vmem, size = 0x8000, scoped, tag = 'output window, operand 0, single buffered']
    %15 = vsyncpa [#allocation3], 0
    %16 = vsyncpa [#allocation6], 0
    %17 = vsyncpa [#allocation9], 0
    %18 = vsyncpa [#allocation4], 0
    // Predicated region
    $region2: #{tpu_custom_call.1} parent=1 // pred_check
      _
    $region3: #{tpu_custom_call.1} parent=1 // pred_check_branch
      %20 = sbr.rel (0) target = $region5
    $region4: #{tpu_custom_call.1} parent=1 // pred_region
      _
    $region5: #{tpu_custom_call.1} parent=1 // pred_fallthru
      _
    // Predicated region
    $region6: #{tpu_custom_call.1} parent=1 // pred_check
      _
    $region7: #{tpu_custom_call.1} parent=1 // pred_check_branch
      %22 = sbr.rel (0) target = $region9
    $region8: #{tpu_custom_call.1} parent=1 // pred_region
      _
    $region9: #{tpu_custom_call.1} parent=1 // pred_fallthru
      _
    // Predicated region
    $region10: #{tpu_custom_call.1} parent=1 // pred_check
      _
    $region11: #{tpu_custom_call.1} parent=1 // pred_check_branch
      %24 = sbr.rel (0) target = $region13
    $region12: #{tpu_custom_call.1} parent=1 // pred_region
      %s26 = ssub.s32 1536, 1536
      %27 = vsyncadd [#allocation3], %s26
      %s28 = sshll.u32 [#allocation2], 4
      %s29 = int_to_ptr.vmem [resolvable:$true] %s28
      %34 = dma.hbm_to_vmem [thread:$0]  %s2, 1536, %s29, [#allocation3], 512, 512, 32
    $region13: #{tpu_custom_call.1} parent=1 // pred_fallthru
      _
    // Predicated region
    $region14: #{tpu_custom_call.1} parent=1 // pred_check
      _
    $region15: #{tpu_custom_call.1} parent=1 // pred_check_branch
      %36 = sbr.rel (0) target = $region17
    $region16: #{tpu_custom_call.1} parent=1 // pred_region
      _
    $region17: #{tpu_custom_call.1} parent=1 // pred_fallthru
      _
    // Predicated region
    $region18: #{tpu_custom_call.1} parent=1 // pred_check
      _
    $region19: #{tpu_custom_call.1} parent=1 // pred_check_branch
      %38 = sbr.rel (0) target = $region21
    $region20: #{tpu_custom_call.1} parent=1 // pred_region
      %s40 = ssub.s32 64, 64
      %41 = vsyncadd [#allocation6], %s40
      %s43 = sshll.u32 [#allocation5], 4
      %s44 = int_to_ptr.vmem [resolvable:$true] %s43
      %46 = dma.hbm_to_vmem [thread:$0]  %s4, 64, %s44, [#allocation6]
    $region21: #{tpu_custom_call.1} parent=1 // pred_fallthru
      _
    // Predicated region
    $region22: #{tpu_custom_call.1} parent=1 // pred_check
      _
    $region23: #{tpu_custom_call.1} parent=1 // pred_check_branch
      %48 = sbr.rel (0) target = $region25
    $region24: #{tpu_custom_call.1} parent=1 // pred_region
      %s50 = ssub.s32 128, 128
      %51 = vsyncadd [#allocation6], %s50
      %s53 = sshll.u32 [#allocation7], 4
      %s54 = int_to_ptr.vmem [resolvable:$true] %s53
      %56 = dma.hbm_to_vmem [thread:$0]  %s5, 128, %s54, [#allocation6]
    $region25: #{tpu_custom_call.1} parent=1 // pred_fallthru
      _
    // Predicated region
    $region26: #{tpu_custom_call.1} parent=1 // pred_check
      _
    $region27: #{tpu_custom_call.1} parent=1 // pred_check_branch
      %58 = sbr.rel (0) target = $region29
    $region28: #{tpu_custom_call.1} parent=1 // pred_region
      %s60 = ssub.s32 128, 128
      %61 = vsyncadd [#allocation9], %s60
      %s62 = sshll.u32 [#allocation8], 4
      %s63 = int_to_ptr.vmem [resolvable:$true] %s62
      %68 = dma.hbm_to_vmem [thread:$0]  %s6, 128, %s63, [#allocation9], 64, 64, 4
    $region29: #{tpu_custom_call.1} parent=1 // pred_fallthru
      _
    // Predicated region
    $region30: #{tpu_custom_call.1} parent=1 // pred_check
      _
    $region31: #{tpu_custom_call.1} parent=1 // pred_check_branch
      %70 = sbr.rel (0) target = $region33
    $region32: #{tpu_custom_call.1} parent=1 // pred_region
      _
    $region33: #{tpu_custom_call.1} parent=1 // pred_fallthru
      _
    // Predicated region
    $region34: #{tpu_custom_call.1} parent=1 // pred_check
      _
    $region35: #{tpu_custom_call.1} parent=1 // pred_check_branch
      %72 = sbr.rel (0) target = $region37
    $region36: #{tpu_custom_call.1} parent=1 // pred_region
      _
    $region37: #{tpu_custom_call.1} parent=1 // pred_fallthru
      _
    // Predicated region
    $region38: #{tpu_custom_call.1} parent=1 // pred_check
      _
    $region39: #{tpu_custom_call.1} parent=1 // pred_check_branch
      %74 = sbr.rel (0) target = $region41
    $region40: #{tpu_custom_call.1} parent=1 // pred_region
      _
    $region41: #{tpu_custom_call.1} parent=1 // pred_fallthru
      _
    // Predicated region
    $region42: #{tpu_custom_call.1} parent=1 // pred_check
      _
    $region43: #{tpu_custom_call.1} parent=1 // pred_check_branch
      %76 = sbr.rel (0) target = $region45
    $region44: #{tpu_custom_call.1} parent=1 // pred_region
      %77 = dma.done [#allocation3], 1536
    $region45: #{tpu_custom_call.1} parent=1 // pred_fallthru
      _
    // Predicated region
    $region46: #{tpu_custom_call.1} parent=1 // pred_check
      _
    $region47: #{tpu_custom_call.1} parent=1 // pred_check_branch
      %79 = sbr.rel (0) target = $region49
    $region48: #{tpu_custom_call.1} parent=1 // pred_region
      %80 = dma.done [#allocation6], 64
    $region49: #{tpu_custom_call.1} parent=1 // pred_fallthru
      _
    // Predicated region
    $region50: #{tpu_custom_call.1} parent=1 // pred_check
      _
    $region51: #{tpu_custom_call.1} parent=1 // pred_check_branch
      %82 = sbr.rel (0) target = $region53
    $region52: #{tpu_custom_call.1} parent=1 // pred_region
      %83 = dma.done [#allocation6], 128
    $region53: #{tpu_custom_call.1} parent=1 // pred_fallthru
      _
    // Predicated region
    $region54: #{tpu_custom_call.1} parent=1 // pred_check
      _
    $region55: #{tpu_custom_call.1} parent=1 // pred_check_branch
      %85 = sbr.rel (0) target = $region57
    $region56: #{tpu_custom_call.1} parent=1 // pred_region
      %86 = dma.done [#allocation9], 128
    $region57: #{tpu_custom_call.1} parent=1 // pred_fallthru
      _
    %v88 = vld [vmem:[#allocation2] sm:$0xff]
    %v89 = vld [vmem:[#allocation2 + $0x8] sm:$0xff]
    %v90 = vld [vmem:[#allocation2 + $0x10] sm:$0xff]
    %v91 = vld [vmem:[#allocation2 + $0x18] sm:$0xff]
    %v92 = vld [vmem:[#allocation2 + $0x20] sm:$0xff]
    %v93 = vld [vmem:[#allocation2 + $0x28] sm:$0xff]
    %v94 = vld [vmem:[#allocation2 + $0x30] sm:$0xff]
    %v95 = vld [vmem:[#allocation2 + $0x38] sm:$0xff]
    %v96 = vld [vmem:[#allocation2 + $0x40] sm:$0xff]
    %v97 = vld [vmem:[#allocation2 + $0x48] sm:$0xff]
    %v98 = vld [vmem:[#allocation2 + $0x50] sm:$0xff]
    %v99 = vld [vmem:[#allocation2 + $0x58] sm:$0xff]
    %v100 = vld [vmem:[%s3] sm:$0xff]
    %v101 = vld [vmem:[%s3 + $0x8] sm:$0xff]
    %v102 = vld [vmem:[%s3 + $0x10] sm:$0xff]
    %v103 = vld [vmem:[%s3 + $0x18] sm:$0xff]
    %v104 = vld [vmem:[#allocation7] sm:$0xff]
    %v105 = vld [vmem:[%s8] sm:$0xff]
    %v106 = vld [vmem:[#allocation5] sm:$0xf]
    %v107 = vld [vmem:[%s0] sm:$0xff]
    %v108 = vld [vmem:[%s0 + $0x8] sm:$0xff]
    %v109 = vld [vmem:[%s0 + $0x10] sm:$0xff]
    %v110 = vld [vmem:[%s0 + $0x18] sm:$0xff]
    %v111 = vld [vmem:[%s1] sm:$0xff]
    %v112 = vld [vmem:[%s1 + $0x8] sm:$0xff]
    %v113 = vunpack.c.l.bf16 %v111
    %v114 = vunpack.c.h.bf16 %v111
    %v115 = vunpack.c.l.bf16 %v112
    %v116 = vunpack.c.h.bf16 %v112
    %v121 = vunpack.c.l.b16 %v107
    %v122 = vunpack.c.h.b16 %v107
    %v123 = vunpack.c.l.b16 %v108
    %v124 = vunpack.c.h.b16 %v108
    %v125 = vunpack.c.l.b16 %v109
    %v126 = vunpack.c.h.b16 %v109
    %v127 = vunpack.c.l.b16 %v110
    %v128 = vunpack.c.h.b16 %v110
    %v129 = vpack.c.b16 %v125, %v121
    %v130 = vpack.c.b16 %v126, %v122
    %v131 = vpack.c.b16 %v127, %v123
    %v132 = vpack.c.b16 %v128, %v124
    %vm137 = vcmask 130048
    %v139 = vsel %vm137, %v106, 0
    %141 = vmatprep.subr.bf16.mxu0 %v130
    %142 = vmatpush1.bf16.msra.mxu0 %v129
    %143 = vmatprep.subr.bf16.mxu0 0
    %144 = vmatpush1.bf16.msra.mxu0 0
    %145 = vmatprep.subr.bf16.mxu0 0
    %146 = vmatpush1.bf16.msra.mxu0 0
    %147 = vmatprep.subr.bf16.mxu0 0
    %148 = vmatpush1.bf16.msra.mxu0 0
    %149 = vmatprep.subr.bf16.mxu0 0
    %150 = vmatpush1.bf16.msra.mxu0 0
    %151 = vmatprep.subr.bf16.mxu0 0
    %152 = vmatpush1.bf16.msra.mxu0 0
    %153 = vmatprep.subr.bf16.mxu0 0
    %154 = vmatpush1.bf16.msra.mxu0 0
    %155 = vmatprep.subr.bf16.mxu0 0
    %156 = vmatpush1.bf16.msra.mxu0 0
    %157 = vmatprep.subr.bf16.mxu0 0
    %158 = vmatpush1.bf16.msra.mxu0 0
    %159 = vmatprep.subr.bf16.mxu0 0
    %160 = vmatpush1.bf16.msra.mxu0 0
    %161 = vmatprep.subr.bf16.mxu0 0
    %162 = vmatpush1.bf16.msra.mxu0 0
    %163 = vmatprep.subr.bf16.mxu0 0
    %164 = vmatpush1.bf16.msra.mxu0 0
    %165 = vmatprep.subr.bf16.mxu0 0
    %166 = vmatpush1.bf16.msra.mxu0 0
    %167 = vmatprep.subr.bf16.mxu0 0
    %168 = vmatpush1.bf16.msra.mxu0 0
    %169 = vmatprep.subr.bf16.mxu0 0
    %170 = vmatpush1.bf16.msra.mxu0 0
    %171 = vmatprep.subr.bf16.mxu0 0
    %172 = vmatpush1.bf16.msra.mxu0 0
    %173 = vmatprep.mubr.bf16.mxu0 0
    %174 = vmatmul.mubr.bf16.gmra.mrb[0].mxu0 %v139
    %v175 = vpop.f32.mrb[0].mxu0
    %v176 = vadd.f32 %v113, %v175
    %v177 = vpop.f32.mrb[0].mxu0
    %v178 = vadd.f32 %v114, %v177
    %v179 = vpop.f32.mrb[0].mxu0
    %v180 = vpop.f32.mrb[0].mxu0
    %181 = vdwg.mxu0
    %182 = vmatprep.subr.bf16.mxu0 %v132
    %183 = vmatpush1.bf16.msra.mxu0 %v131
    %184 = vmatprep.subr.bf16.mxu0 0
    %185 = vmatpush1.bf16.msra.mxu0 0
    %186 = vmatprep.subr.bf16.mxu0 0
    %187 = vmatpush1.bf16.msra.mxu0 0
    %188 = vmatprep.subr.bf16.mxu0 0
    %189 = vmatpush1.bf16.msra.mxu0 0
    %190 = vmatprep.subr.bf16.mxu0 0
    %191 = vmatpush1.bf16.msra.mxu0 0
    %192 = vmatprep.subr.bf16.mxu0 0
    %193 = vmatpush1.bf16.msra.mxu0 0
    %194 = vmatprep.subr.bf16.mxu0 0
    %195 = vmatpush1.bf16.msra.mxu0 0
    %196 = vmatprep.subr.bf16.mxu0 0
    %197 = vmatpush1.bf16.msra.mxu0 0
    %198 = vmatprep.subr.bf16.mxu0 0
    %199 = vmatpush1.bf16.msra.mxu0 0
    %200 = vmatprep.subr.bf16.mxu0 0
    %201 = vmatpush1.bf16.msra.mxu0 0
    %202 = vmatprep.subr.bf16.mxu0 0
    %203 = vmatpush1.bf16.msra.mxu0 0
    %204 = vmatprep.subr.bf16.mxu0 0
    %205 = vmatpush1.bf16.msra.mxu0 0
    %206 = vmatprep.subr.bf16.mxu0 0
    %207 = vmatpush1.bf16.msra.mxu0 0
    %208 = vmatprep.subr.bf16.mxu0 0
    %209 = vmatpush1.bf16.msra.mxu0 0
    %210 = vmatprep.subr.bf16.mxu0 0
    %211 = vmatpush1.bf16.msra.mxu0 0
    %212 = vmatprep.subr.bf16.mxu0 0
    %213 = vmatpush1.bf16.msra.mxu0 0
    %214 = vmatprep.mubr.bf16.mxu0 0
    %215 = vmatmul.mubr.bf16.gmra.mrb[0].mxu0 %v139
    %v216 = vpop.f32.mrb[0].mxu0
    %v217 = vadd.f32 %v115, %v216
    %v218 = vpop.f32.mrb[0].mxu0
    %v219 = vadd.f32 %v116, %v218
    %v220 = vpop.f32.mrb[0].mxu0
    %v221 = vpop.f32.mrb[0].mxu0
    %222 = vdwg.mxu0
    %224 = vset.pattern.permute.xlu0 0
    %225 = vperm.xlu0 %224, %v105
    %v226 = vpop.permute.xlu0 %225
    %v228 = vmul.f32 %v176, %v226
    %v229 = vmul.f32 %v178, %v226
    %v230 = vmul.f32 %v217, %v226
    %v231 = vmul.f32 %v219, %v226
    %232 = vset.pattern.permute.xlu0 1
    %233 = vperm.xlu0 %232, %v105
    %v234 = vpop.permute.xlu0 %233
    %v236 = vadd.f32 %v228, %v234
    %v237 = vadd.f32 %v229, %v234
    %v238 = vadd.f32 %v230, %v234
    %v239 = vadd.f32 %v231, %v234
    %v240 = vsub.f32 0.0, %v236
    %v241 = vsub.f32 0.0, %v237
    %v242 = vsub.f32 0.0, %v238
    %v243 = vsub.f32 0.0, %v239
    %v244 = vmul.f32 %v240, 1.442695
    %v245 = vpow.pop %v244
    %v246 = vmul.f32 %v241, 1.442695
    %v247 = vpow.pop %v246
    %v248 = vmul.f32 %v242, 1.442695
    %v249 = vpow.pop %v248
    %v250 = vmul.f32 %v243, 1.442695
    %v251 = vpow.pop %v250
    %v252 = vadd.f32 %v245, 1.0
    %v253 = vadd.f32 %v247, 1.0
    %v254 = vadd.f32 %v249, 1.0
    %v255 = vadd.f32 %v251, 1.0
    %v256 = vrcp.pop %v252
    %v257 = vrcp.pop %v253
    %v258 = vrcp.pop %v254
    %v259 = vrcp.pop %v255
    %v260 = vmul.f32 %v236, %v256
    %v261 = vmul.f32 %v237, %v257
    %v262 = vmul.f32 %v238, %v258
    %v263 = vmul.f32 %v239, %v259
    %265 = vset.pattern.permute.xlu0 4
    %266 = vperm.xlu0 %265, %v104
    %v267 = vpop.permute.xlu0 %266
    %v269 = vmul.f32 %v260, %v267
    %v270 = vmul.f32 %v261, %v267
    %v271 = vmul.f32 %v262, %v267
    %v272 = vmul.f32 %v263, %v267
    %273 = vrot.lane.b32.xlu0 %v260, 17
    %v274 = vpop.permute.xlu0 %273
    %275 = vrot.lane.b32.xlu0 %v261, 17
    %v276 = vpop.permute.xlu0 %275
    %277 = vrot.lane.b32.xlu0 %v262, 17
    %v278 = vpop.permute.xlu0 %277
    %279 = vrot.lane.b32.xlu0 %v263, 17
    %v280 = vpop.permute.xlu0 %279
    %v281 = vlaneseq
    %v282 = vand.u32 %v281, 127
    %vm283 = vcmp.lt.s32.totalorder %v282, 17
    %v284 = vsel %vm283, %v278, %v280
    %v285 = vsel %vm283, %v276, %v278
    %v286 = vsel %vm283, %v274, %v276
    %v287 = vsel %vm283, %v280, %v274
    %v288 = vlaneseq
    %v289 = vshrl.u32 %v288, 7
    %v290 = vsub.s32 0, %v289
    %v291 = vrot.slane %v88, %v290
    %v292 = vlaneseq
    %v293 = vshrl.u32 %v292, 7
    %v294 = vsub.s32 0, %v293
    %v295 = vrot.slane %v89, %v294
    %v296 = vlaneseq
    %v297 = vshrl.u32 %v296, 7
    %v298 = vsub.s32 0, %v297
    %v299 = vrot.slane %v90, %v298
    %v300 = vlaneseq
    %v301 = vshrl.u32 %v300, 7
    %v302 = vsub.s32 0, %v301
    %v303 = vrot.slane %v91, %v302
    %v304 = vmul.f32 %v287, %v291
    %v305 = vmul.f32 %v286, %v295
    %v306 = vmul.f32 %v285, %v299
    %v307 = vmul.f32 %v284, %v303
    %308 = vset.pattern.permute.xlu0 0
    %309 = vperm.xlu0 %308, %v104
    %v310 = vpop.permute.xlu0 %309
    %v312 = vmul.f32 %v304, %v310
    %v313 = vmul.f32 %v305, %v310
    %v314 = vmul.f32 %v306, %v310
    %v315 = vmul.f32 %v307, %v310
    %v316 = vadd.f32 %v269, %v312
    %v317 = vadd.f32 %v270, %v313
    %v318 = vadd.f32 %v271, %v314
    %v319 = vadd.f32 %v272, %v315
    %v320 = vlaneseq
    %v321 = vshrl.u32 %v320, 7
    %v322 = vsub.s32 0, %v321
    %v323 = vrot.slane %v100, %v322
    %v324 = vlaneseq
    %v325 = vshrl.u32 %v324, 7
    %v326 = vsub.s32 0, %v325
    %v327 = vrot.slane %v101, %v326
    %v328 = vlaneseq
    %v329 = vshrl.u32 %v328, 7
    %v330 = vsub.s32 0, %v329
    %v331 = vrot.slane %v102, %v330
    %v332 = vlaneseq
    %v333 = vshrl.u32 %v332, 7
    %v334 = vsub.s32 0, %v333
    %v335 = vrot.slane %v103, %v334
    %v336 = vadd.f32 %v304, %v323
    %v337 = vadd.f32 %v305, %v327
    %v338 = vadd.f32 %v306, %v331
    %v339 = vadd.f32 %v307, %v335
    %v340 = vmax.f32 %v260, %v336
    %v341 = vmax.f32 %v261, %v337
    %v342 = vmax.f32 %v262, %v338
    %v343 = vmax.f32 %v263, %v339
    %344 = vrot.lane.b32.xlu0 %v260, 16
    %v345 = vpop.permute.xlu0 %344
    %346 = vrot.lane.b32.xlu0 %v261, 16
    %v347 = vpop.permute.xlu0 %346
    %348 = vrot.lane.b32.xlu0 %v262, 16
    %v349 = vpop.permute.xlu0 %348
    %350 = vrot.lane.b32.xlu0 %v263, 16
    %v351 = vpop.permute.xlu0 %350
    %vm352 = vcmp.lt.s32.totalorder %v282, 16
    %v353 = vsel %vm352, %v349, %v351
    %v354 = vsel %vm352, %v347, %v349
    %v355 = vsel %vm352, %v345, %v347
    %v356 = vsel %vm352, %v351, %v345
    %v357 = vlaneseq
    %v358 = vshrl.u32 %v357, 7
    %v359 = vsub.s32 1, %v358
    %v360 = vrot.slane %v88, %v359
    %v361 = vlaneseq
    %v362 = vshrl.u32 %v361, 7
    %v363 = vsub.s32 1, %v362
    %v364 = vrot.slane %v89, %v363
    %v365 = vlaneseq
    %v366 = vshrl.u32 %v365, 7
    %v367 = vsub.s32 1, %v366
    %v368 = vrot.slane %v90, %v367
    %v369 = vlaneseq
    %v370 = vshrl.u32 %v369, 7
    %v371 = vsub.s32 1, %v370
    %v372 = vrot.slane %v91, %v371
    %v373 = vmul.f32 %v356, %v360
    %v374 = vmul.f32 %v355, %v364
    %v375 = vmul.f32 %v354, %v368
    %v376 = vmul.f32 %v353, %v372
    %377 = vset.pattern.permute.xlu0 1
    %378 = vperm.xlu0 %377, %v104
    %v379 = vpop.permute.xlu0 %378
    %v381 = vmul.f32 %v373, %v379
    %v382 = vmul.f32 %v374, %v379
    %v383 = vmul.f32 %v375, %v379
    %v384 = vmul.f32 %v376, %v379
    %v385 = vadd.f32 %v316, %v381
    %v386 = vadd.f32 %v317, %v382
    %v387 = vadd.f32 %v318, %v383
    %v388 = vadd.f32 %v319, %v384
    %v389 = vlaneseq
    %v390 = vshrl.u32 %v389, 7
    %v391 = vsub.s32 1, %v390
    %v392 = vrot.slane %v100, %v391
    %v393 = vlaneseq
    %v394 = vshrl.u32 %v393, 7
    %v395 = vsub.s32 1, %v394
    %v396 = vrot.slane %v101, %v395
    %v397 = vlaneseq
    %v398 = vshrl.u32 %v397, 7
    %v399 = vsub.s32 1, %v398
    %v400 = vrot.slane %v102, %v399
    %v401 = vlaneseq
    %v402 = vshrl.u32 %v401, 7
    %v403 = vsub.s32 1, %v402
    %v404 = vrot.slane %v103, %v403
    %v405 = vadd.f32 %v373, %v392
    %v406 = vadd.f32 %v374, %v396
    %v407 = vadd.f32 %v375, %v400
    %v408 = vadd.f32 %v376, %v404
    %v409 = vmax.f32 %v340, %v405
    %v410 = vmax.f32 %v341, %v406
    %v411 = vmax.f32 %v342, %v407
    %v412 = vmax.f32 %v343, %v408
    %413 = vrot.lane.b32.xlu0 %v260, 15
    %v414 = vpop.permute.xlu0 %413
    %415 = vrot.lane.b32.xlu0 %v261, 15
    %v416 = vpop.permute.xlu0 %415
    %417 = vrot.lane.b32.xlu0 %v262, 15
    %v418 = vpop.permute.xlu0 %417
    %419 = vrot.lane.b32.xlu0 %v263, 15
    %v420 = vpop.permute.xlu0 %419
    %vm421 = vcmp.lt.s32.totalorder %v282, 15
    %v422 = vsel %vm421, %v418, %v420
    %v423 = vsel %vm421, %v416, %v418
    %v424 = vsel %vm421, %v414, %v416
    %v425 = vsel %vm421, %v420, %v414
    %v426 = vlaneseq
    %v427 = vshrl.u32 %v426, 7
    %v428 = vsub.s32 2, %v427
    %v429 = vrot.slane %v88, %v428
    %v430 = vlaneseq
    %v431 = vshrl.u32 %v430, 7
    %v432 = vsub.s32 2, %v431
    %v433 = vrot.slane %v89, %v432
    %v434 = vlaneseq
    %v435 = vshrl.u32 %v434, 7
    %v436 = vsub.s32 2, %v435
    %v437 = vrot.slane %v90, %v436
    %v438 = vlaneseq
    %v439 = vshrl.u32 %v438, 7
    %v440 = vsub.s32 2, %v439
    %v441 = vrot.slane %v91, %v440
    %v442 = vmul.f32 %v425, %v429
    %v443 = vmul.f32 %v424, %v433
    %v444 = vmul.f32 %v423, %v437
    %v445 = vmul.f32 %v422, %v441
    %446 = vset.pattern.permute.xlu0 2
    %447 = vperm.xlu0 %446, %v104
    %v448 = vpop.permute.xlu0 %447
    %v450 = vmul.f32 %v442, %v448
    %v451 = vmul.f32 %v443, %v448
    %v452 = vmul.f32 %v444, %v448
    %v453 = vmul.f32 %v445, %v448
    %v454 = vadd.f32 %v385, %v450
    %v455 = vadd.f32 %v386, %v451
    %v456 = vadd.f32 %v387, %v452
    %v457 = vadd.f32 %v388, %v453
    %v458 = vlaneseq
    %v459 = vshrl.u32 %v458, 7
    %v460 = vsub.s32 2, %v459
    %v461 = vrot.slane %v100, %v460
    %v462 = vlaneseq
    %v463 = vshrl.u32 %v462, 7
    %v464 = vsub.s32 2, %v463
    %v465 = vrot.slane %v101, %v464
    %v466 = vlaneseq
    %v467 = vshrl.u32 %v466, 7
    %v468 = vsub.s32 2, %v467
    %v469 = vrot.slane %v102, %v468
    %v470 = vlaneseq
    %v471 = vshrl.u32 %v470, 7
    %v472 = vsub.s32 2, %v471
    %v473 = vrot.slane %v103, %v472
    %v474 = vadd.f32 %v442, %v461
    %v475 = vadd.f32 %v443, %v465
    %v476 = vadd.f32 %v444, %v469
    %v477 = vadd.f32 %v445, %v473
    %v478 = vmax.f32 %v409, %v474
    %v479 = vmax.f32 %v410, %v475
    %v480 = vmax.f32 %v411, %v476
    %v481 = vmax.f32 %v412, %v477
    %v482 = vmax.f32 %v336, %v474
    %v483 = vmax.f32 %v337, %v475
    %v484 = vmax.f32 %v338, %v476
    %v485 = vmax.f32 %v339, %v477
    %486 = vrot.lane.b32.xlu0 %v260, 1
    %v487 = vpop.permute.xlu0 %486
    %488 = vrot.lane.b32.xlu0 %v261, 1
    %v489 = vpop.permute.xlu0 %488
    %490 = vrot.lane.b32.xlu0 %v262, 1
    %v491 = vpop.permute.xlu0 %490
    %492 = vrot.lane.b32.xlu0 %v263, 1
    %v493 = vpop.permute.xlu0 %492
    %vm494 = vcmp.lt.s32.totalorder %v282, 1
    %v495 = vsel %vm494, %v491, %v493
    %v496 = vsel %vm494, %v489, %v491
    %v497 = vsel %vm494, %v487, %v489
    %v498 = vsel %vm494, %v493, %v487
    %v499 = vlaneseq
    %v500 = vshrl.u32 %v499, 7
    %v501 = vsub.s32 3, %v500
    %v502 = vrot.slane %v88, %v501
    %v503 = vlaneseq
    %v504 = vshrl.u32 %v503, 7
    %v505 = vsub.s32 3, %v504
    %v506 = vrot.slane %v89, %v505
    %v507 = vlaneseq
    %v508 = vshrl.u32 %v507, 7
    %v509 = vsub.s32 3, %v508
    %v510 = vrot.slane %v90, %v509
    %v511 = vlaneseq
    %v512 = vshrl.u32 %v511, 7
    %v513 = vsub.s32 3, %v512
    %v514 = vrot.slane %v91, %v513
    %v515 = vmul.f32 %v498, %v502
    %v516 = vmul.f32 %v497, %v506
    %v517 = vmul.f32 %v496, %v510
    %v518 = vmul.f32 %v495, %v514
    %519 = vset.pattern.permute.xlu0 3
    %520 = vperm.xlu0 %519, %v104
    %v521 = vpop.permute.xlu0 %520
    %v523 = vmul.f32 %v515, %v521
    %v524 = vmul.f32 %v516, %v521
    %v525 = vmul.f32 %v517, %v521
    %v526 = vmul.f32 %v518, %v521
    %v527 = vadd.f32 %v454, %v523
    %v528 = vadd.f32 %v455, %v524
    %v529 = vadd.f32 %v456, %v525
    %v530 = vadd.f32 %v457, %v526
    %v531 = vlaneseq
    %v532 = vshrl.u32 %v531, 7
    %v533 = vsub.s32 3, %v532
    %v534 = vrot.slane %v100, %v533
    %v535 = vlaneseq
    %v536 = vshrl.u32 %v535, 7
    %v537 = vsub.s32 3, %v536
    %v538 = vrot.slane %v101, %v537
    %v539 = vlaneseq
    %v540 = vshrl.u32 %v539, 7
    %v541 = vsub.s32 3, %v540
    %v542 = vrot.slane %v102, %v541
    %v543 = vlaneseq
    %v544 = vshrl.u32 %v543, 7
    %v545 = vsub.s32 3, %v544
    %v546 = vrot.slane %v103, %v545
    %v547 = vadd.f32 %v515, %v534
    %v548 = vadd.f32 %v516, %v538
    %v549 = vadd.f32 %v517, %v542
    %v550 = vadd.f32 %v518, %v546
    %v551 = vmax.f32 %v478, %v547
    %v552 = vmax.f32 %v479, %v548
    %v553 = vmax.f32 %v480, %v549
    %v554 = vmax.f32 %v481, %v550
    %555 = vrot.lane.b32.xlu0 %v260, 127
    %v556 = vpop.permute.xlu0 %555
    %557 = vrot.lane.b32.xlu0 %v261, 127
    %v558 = vpop.permute.xlu0 %557
    %559 = vrot.lane.b32.xlu0 %v262, 127
    %v560 = vpop.permute.xlu0 %559
    %561 = vrot.lane.b32.xlu0 %v263, 127
    %v562 = vpop.permute.xlu0 %561
    %vm563 = vcmp.lt.s32.totalorder %v282, 127
    %v564 = vsel %vm563, %v560, %v562
    %v565 = vsel %vm563, %v558, %v560
    %v566 = vsel %vm563, %v556, %v558
    %v567 = vsel %vm563, %v562, %v556
    %v568 = vlaneseq
    %v569 = vshrl.u32 %v568, 7
    %v570 = vsub.s32 4, %v569
    %v571 = vrot.slane %v88, %v570
    %v572 = vlaneseq
    %v573 = vshrl.u32 %v572, 7
    %v574 = vsub.s32 4, %v573
    %v575 = vrot.slane %v89, %v574
    %v576 = vlaneseq
    %v577 = vshrl.u32 %v576, 7
    %v578 = vsub.s32 4, %v577
    %v579 = vrot.slane %v90, %v578
    %v580 = vlaneseq
    %v581 = vshrl.u32 %v580, 7
    %v582 = vsub.s32 4, %v581
    %v583 = vrot.slane %v91, %v582
    %v584 = vmul.f32 %v566, %v571
    %v585 = vmul.f32 %v565, %v575
    %v586 = vmul.f32 %v564, %v579
    %v587 = vmul.f32 %v567, %v583
    %588 = vset.pattern.permute.xlu0 5
    %589 = vperm.xlu0 %588, %v104
    %v590 = vpop.permute.xlu0 %589
    %v592 = vmul.f32 %v584, %v590
    %v593 = vmul.f32 %v585, %v590
    %v594 = vmul.f32 %v586, %v590
    %v595 = vmul.f32 %v587, %v590
    %v596 = vadd.f32 %v527, %v592
    %v597 = vadd.f32 %v528, %v593
    %v598 = vadd.f32 %v529, %v594
    %v599 = vadd.f32 %v530, %v595
    %v600 = vlaneseq
    %v601 = vshrl.u32 %v600, 7
    %v602 = vsub.s32 4, %v601
    %v603 = vrot.slane %v100, %v602
    %v604 = vlaneseq
    %v605 = vshrl.u32 %v604, 7
    %v606 = vsub.s32 4, %v605
    %v607 = vrot.slane %v101, %v606
    %v608 = vlaneseq
    %v609 = vshrl.u32 %v608, 7
    %v610 = vsub.s32 4, %v609
    %v611 = vrot.slane %v102, %v610
    %v612 = vlaneseq
    %v613 = vshrl.u32 %v612, 7
    %v614 = vsub.s32 4, %v613
    %v615 = vrot.slane %v103, %v614
    %v616 = vadd.f32 %v584, %v603
    %v617 = vadd.f32 %v585, %v607
    %v618 = vadd.f32 %v586, %v611
    %v619 = vadd.f32 %v587, %v615
    %v620 = vmax.f32 %v551, %v616
    %v621 = vmax.f32 %v552, %v617
    %v622 = vmax.f32 %v553, %v618
    %v623 = vmax.f32 %v554, %v619
    %624 = vrot.lane.b32.xlu0 %v260, 113
    %v625 = vpop.permute.xlu0 %624
    %626 = vrot.lane.b32.xlu0 %v261, 113
    %v627 = vpop.permute.xlu0 %626
    %628 = vrot.lane.b32.xlu0 %v262, 113
    %v629 = vpop.permute.xlu0 %628
    %630 = vrot.lane.b32.xlu0 %v263, 113
    %v631 = vpop.permute.xlu0 %630
    %vm632 = vcmp.lt.s32.totalorder %v282, 113
    %v633 = vsel %vm632, %v629, %v631
    %v634 = vsel %vm632, %v627, %v629
    %v635 = vsel %vm632, %v625, %v627
    %v636 = vsel %vm632, %v631, %v625
    %v637 = vlaneseq
    %v638 = vshrl.u32 %v637, 7
    %v639 = vsub.s32 5, %v638
    %v640 = vrot.slane %v88, %v639
    %v641 = vlaneseq
    %v642 = vshrl.u32 %v641, 7
    %v643 = vsub.s32 5, %v642
    %v644 = vrot.slane %v89, %v643
    %v645 = vlaneseq
    %v646 = vshrl.u32 %v645, 7
    %v647 = vsub.s32 5, %v646
    %v648 = vrot.slane %v90, %v647
    %v649 = vlaneseq
    %v650 = vshrl.u32 %v649, 7
    %v651 = vsub.s32 5, %v650
    %v652 = vrot.slane %v91, %v651
    %v653 = vmul.f32 %v635, %v640
    %v654 = vmul.f32 %v634, %v644
    %v655 = vmul.f32 %v633, %v648
    %v656 = vmul.f32 %v636, %v652
    %657 = vset.pattern.permute.xlu0 6
    %658 = vperm.xlu0 %657, %v104
    %v659 = vpop.permute.xlu0 %658
    %v661 = vmul.f32 %v653, %v659
    %v662 = vmul.f32 %v654, %v659
    %v663 = vmul.f32 %v655, %v659
    %v664 = vmul.f32 %v656, %v659
    %v665 = vadd.f32 %v596, %v661
    %v666 = vadd.f32 %v597, %v662
    %v667 = vadd.f32 %v598, %v663
    %v668 = vadd.f32 %v599, %v664
    %v669 = vlaneseq
    %v670 = vshrl.u32 %v669, 7
    %v671 = vsub.s32 5, %v670
    %v672 = vrot.slane %v100, %v671
    %v673 = vlaneseq
    %v674 = vshrl.u32 %v673, 7
    %v675 = vsub.s32 5, %v674
    %v676 = vrot.slane %v101, %v675
    %v677 = vlaneseq
    %v678 = vshrl.u32 %v677, 7
    %v679 = vsub.s32 5, %v678
    %v680 = vrot.slane %v102, %v679
    %v681 = vlaneseq
    %v682 = vshrl.u32 %v681, 7
    %v683 = vsub.s32 5, %v682
    %v684 = vrot.slane %v103, %v683
    %v685 = vadd.f32 %v653, %v672
    %v686 = vadd.f32 %v654, %v676
    %v687 = vadd.f32 %v655, %v680
    %v688 = vadd.f32 %v656, %v684
    %v689 = vmax.f32 %v620, %v685
    %v690 = vmax.f32 %v621, %v686
    %v691 = vmax.f32 %v622, %v687
    %v692 = vmax.f32 %v623, %v688
    %v693 = vmax.f32 %v482, %v685
    %v694 = vmax.f32 %v483, %v686
    %v695 = vmax.f32 %v484, %v687
    %v696 = vmax.f32 %v485, %v688
    %697 = vrot.lane.b32.xlu0 %v260, 112
    %v698 = vpop.permute.xlu0 %697
    %699 = vrot.lane.b32.xlu0 %v261, 112
    %v700 = vpop.permute.xlu0 %699
    %701 = vrot.lane.b32.xlu0 %v262, 112
    %v702 = vpop.permute.xlu0 %701
    %703 = vrot.lane.b32.xlu0 %v263, 112
    %v704 = vpop.permute.xlu0 %703
    %vm705 = vcmp.lt.s32.totalorder %v282, 112
    %v706 = vsel %vm705, %v702, %v704
    %v707 = vsel %vm705, %v700, %v702
    %v708 = vsel %vm705, %v698, %v700
    %v709 = vsel %vm705, %v704, %v698
    %v710 = vlaneseq
    %v711 = vshrl.u32 %v710, 7
    %v712 = vsub.s32 6, %v711
    %v713 = vrot.slane %v88, %v712
    %v714 = vlaneseq
    %v715 = vshrl.u32 %v714, 7
    %v716 = vsub.s32 6, %v715
    %v717 = vrot.slane %v89, %v716
    %v718 = vlaneseq
    %v719 = vshrl.u32 %v718, 7
    %v720 = vsub.s32 6, %v719
    %v721 = vrot.slane %v90, %v720
    %v722 = vlaneseq
    %v723 = vshrl.u32 %v722, 7
    %v724 = vsub.s32 6, %v723
    %v725 = vrot.slane %v91, %v724
    %v726 = vmul.f32 %v708, %v713
    %v727 = vmul.f32 %v707, %v717
    %v728 = vmul.f32 %v706, %v721
    %v729 = vmul.f32 %v709, %v725
    %730 = vset.pattern.permute.xlu0 7
    %731 = vperm.xlu0 %730, %v104
    %v732 = vpop.permute.xlu0 %731
    %v734 = vmul.f32 %v726, %v732
    %v735 = vmul.f32 %v727, %v732
    %v736 = vmul.f32 %v728, %v732
    %v737 = vmul.f32 %v729, %v732
    %v738 = vadd.f32 %v665, %v734
    %v739 = vadd.f32 %v666, %v735
    %v740 = vadd.f32 %v667, %v736
    %v741 = vadd.f32 %v668, %v737
    %v742 = vlaneseq
    %v743 = vshrl.u32 %v742, 7
    %v744 = vsub.s32 6, %v743
    %v745 = vrot.slane %v100, %v744
    %v746 = vlaneseq
    %v747 = vshrl.u32 %v746, 7
    %v748 = vsub.s32 6, %v747
    %v749 = vrot.slane %v101, %v748
    %v750 = vlaneseq
    %v751 = vshrl.u32 %v750, 7
    %v752 = vsub.s32 6, %v751
    %v753 = vrot.slane %v102, %v752
    %v754 = vlaneseq
    %v755 = vshrl.u32 %v754, 7
    %v756 = vsub.s32 6, %v755
    %v757 = vrot.slane %v103, %v756
    %v758 = vadd.f32 %v726, %v745
    %v759 = vadd.f32 %v727, %v749
    %v760 = vadd.f32 %v728, %v753
    %v761 = vadd.f32 %v729, %v757
    %v762 = vmax.f32 %v689, %v758
    %v763 = vmax.f32 %v690, %v759
    %v764 = vmax.f32 %v691, %v760
    %v765 = vmax.f32 %v692, %v761
    %766 = vrot.lane.b32.xlu0 %v260, 111
    %v767 = vpop.permute.xlu0 %766
    %768 = vrot.lane.b32.xlu0 %v261, 111
    %v769 = vpop.permute.xlu0 %768
    %770 = vrot.lane.b32.xlu0 %v262, 111
    %v771 = vpop.permute.xlu0 %770
    %772 = vrot.lane.b32.xlu0 %v263, 111
    %v773 = vpop.permute.xlu0 %772
    %vm774 = vcmp.lt.s32.totalorder %v282, 111
    %v775 = vsel %vm774, %v771, %v773
    %v776 = vsel %vm774, %v769, %v771
    %v777 = vsel %vm774, %v767, %v769
    %v778 = vsel %vm774, %v773, %v767
    %v779 = vlaneseq
    %v780 = vshrl.u32 %v779, 7
    %v781 = vsub.s32 7, %v780
    %v782 = vrot.slane %v88, %v781
    %v783 = vlaneseq
    %v784 = vshrl.u32 %v783, 7
    %v785 = vsub.s32 7, %v784
    %v786 = vrot.slane %v89, %v785
    %v787 = vlaneseq
    %v788 = vshrl.u32 %v787, 7
    %v789 = vsub.s32 7, %v788
    %v790 = vrot.slane %v90, %v789
    %v791 = vlaneseq
    %v792 = vshrl.u32 %v791, 7
    %v793 = vsub.s32 7, %v792
    %v794 = vrot.slane %v91, %v793
    %v795 = vmul.f32 %v777, %v782
    %v796 = vmul.f32 %v776, %v786
    %v797 = vmul.f32 %v775, %v790
    %v798 = vmul.f32 %v778, %v794
    %799 = vset.pattern.permute.xlu0 8
    %800 = vperm.xlu0 %799, %v104
    %v801 = vpop.permute.xlu0 %800
    %v803 = vmul.f32 %v795, %v801
    %v804 = vmul.f32 %v796, %v801
    %v805 = vmul.f32 %v797, %v801
    %v806 = vmul.f32 %v798, %v801
    %v807 = vadd.f32 %v738, %v803
    %v808 = vadd.f32 %v739, %v804
    %v809 = vadd.f32 %v740, %v805
    %v810 = vadd.f32 %v741, %v806
    %v811 = vlaneseq
    %v812 = vshrl.u32 %v811, 7
    %v813 = vsub.s32 7, %v812
    %v814 = vrot.slane %v100, %v813
    %v815 = vlaneseq
    %v816 = vshrl.u32 %v815, 7
    %v817 = vsub.s32 7, %v816
    %v818 = vrot.slane %v101, %v817
    %v819 = vlaneseq
    %v820 = vshrl.u32 %v819, 7
    %v821 = vsub.s32 7, %v820
    %v822 = vrot.slane %v102, %v821
    %v823 = vlaneseq
    %v824 = vshrl.u32 %v823, 7
    %v825 = vsub.s32 7, %v824
    %v826 = vrot.slane %v103, %v825
    %v827 = vadd.f32 %v795, %v814
    %v828 = vadd.f32 %v796, %v818
    %v829 = vadd.f32 %v797, %v822
    %v830 = vadd.f32 %v798, %v826
    %v831 = vmax.f32 %v762, %v827
    %v832 = vmax.f32 %v763, %v828
    %v833 = vmax.f32 %v764, %v829
    %v834 = vmax.f32 %v765, %v830
    %v835 = vmax.f32 %v693, %v827
    %v836 = vmax.f32 %v694, %v828
    %v837 = vmax.f32 %v695, %v829
    %v838 = vmax.f32 %v696, %v830
    %839 = vset.pattern.permute.xlu0 2
    %840 = vperm.xlu0 %839, %v105
    %v841 = vpop.permute.xlu0 %840
    %v843 = vmul.f32 %v807, %v841
    %v844 = vmul.f32 %v808, %v841
    %v845 = vmul.f32 %v809, %v841
    %v846 = vmul.f32 %v810, %v841
    %847 = vset.pattern.permute.xlu0 3
    %848 = vperm.xlu0 %847, %v105
    %v849 = vpop.permute.xlu0 %848
    %v851 = vadd.f32 %v843, %v849
    %v852 = vadd.f32 %v844, %v849
    %v853 = vadd.f32 %v845, %v849
    %v854 = vadd.f32 %v846, %v849
    %v855 = vsub.f32 0.0, %v851
    %v856 = vsub.f32 0.0, %v852
    %v857 = vsub.f32 0.0, %v853
    %v858 = vsub.f32 0.0, %v854
    %v859 = vmul.f32 %v855, 1.442695
    %v860 = vpow.pop %v859
    %v861 = vmul.f32 %v856, 1.442695
    %v862 = vpow.pop %v861
    %v863 = vmul.f32 %v857, 1.442695
    %v864 = vpow.pop %v863
    %v865 = vmul.f32 %v858, 1.442695
    %v866 = vpow.pop %v865
    %v867 = vadd.f32 %v860, 1.0
    %v868 = vadd.f32 %v862, 1.0
    %v869 = vadd.f32 %v864, 1.0
    %v870 = vadd.f32 %v866, 1.0
    %v871 = vrcp.pop %v867
    %v872 = vrcp.pop %v868
    %v873 = vrcp.pop %v869
    %v874 = vrcp.pop %v870
    %v875 = vmul.f32 %v851, %v871
    %v876 = vmul.f32 %v852, %v872
    %v877 = vmul.f32 %v853, %v873
    %v878 = vmul.f32 %v854, %v874
    %v879 = vld [vmem:[%s7] sm:$0xf]
    %v880 = vld [vmem:[%s7 + $0x4] sm:$0xf]
    %v881 = vpack.c.bf16 %v875, %v875
    %v882 = vpack.c.bf16 %v876, %v876
    %v883 = vpack.c.bf16 %v877, %v877
    %v884 = vpack.c.bf16 %v878, %v878
    %885 = vset.pattern.permute.xlu0 13
    %886 = vperm.xlu0 %885, %v104
    %v887 = vpop.permute.xlu0 %886
    %v889 = vmul.f32 %v260, %v887
    %v890 = vmul.f32 %v261, %v887
    %v891 = vmul.f32 %v262, %v887
    %v892 = vmul.f32 %v263, %v887
    %893 = vrot.lane.b32.xlu0 %v260, 34
    %v894 = vpop.permute.xlu0 %893
    %895 = vrot.lane.b32.xlu0 %v261, 34
    %v896 = vpop.permute.xlu0 %895
    %897 = vrot.lane.b32.xlu0 %v262, 34
    %v898 = vpop.permute.xlu0 %897
    %899 = vrot.lane.b32.xlu0 %v263, 34
    %v900 = vpop.permute.xlu0 %899
    %vm901 = vcmp.lt.s32.totalorder %v282, 34
    %v902 = vsel %vm901, %v898, %v900
    %v903 = vsel %vm901, %v896, %v898
    %v904 = vsel %vm901, %v894, %v896
    %v905 = vsel %vm901, %v900, %v894
    %v906 = vlaneseq
    %v907 = vshrl.u32 %v906, 7
    %v908 = vsub.s32 0, %v907
    %v909 = vrot.slane %v92, %v908
    %v910 = vlaneseq
    %v911 = vshrl.u32 %v910, 7
    %v912 = vsub.s32 0, %v911
    %v913 = vrot.slane %v93, %v912
    %v914 = vlaneseq
    %v915 = vshrl.u32 %v914, 7
    %v916 = vsub.s32 0, %v915
    %v917 = vrot.slane %v94, %v916
    %v918 = vlaneseq
    %v919 = vshrl.u32 %v918, 7
    %v920 = vsub.s32 0, %v919
    %v921 = vrot.slane %v95, %v920
    %v922 = vmul.f32 %v905, %v909
    %v923 = vmul.f32 %v904, %v913
    %v924 = vmul.f32 %v903, %v917
    %v925 = vmul.f32 %v902, %v921
    %926 = vset.pattern.permute.xlu0 9
    %927 = vperm.xlu0 %926, %v104
    %v928 = vpop.permute.xlu0 %927
    %v930 = vmul.f32 %v922, %v928
    %v931 = vmul.f32 %v923, %v928
    %v932 = vmul.f32 %v924, %v928
    %v933 = vmul.f32 %v925, %v928
    %v934 = vadd.f32 %v889, %v930
    %v935 = vadd.f32 %v890, %v931
    %v936 = vadd.f32 %v891, %v932
    %v937 = vadd.f32 %v892, %v933
    %938 = vrot.lane.b32.xlu0 %v260, 32
    %v939 = vpop.permute.xlu0 %938
    %940 = vrot.lane.b32.xlu0 %v261, 32
    %v941 = vpop.permute.xlu0 %940
    %942 = vrot.lane.b32.xlu0 %v262, 32
    %v943 = vpop.permute.xlu0 %942
    %944 = vrot.lane.b32.xlu0 %v263, 32
    %v945 = vpop.permute.xlu0 %944
    %vm946 = vcmp.lt.s32.totalorder %v282, 32
    %v947 = vsel %vm946, %v943, %v945
    %v948 = vsel %vm946, %v941, %v943
    %v949 = vsel %vm946, %v939, %v941
    %v950 = vsel %vm946, %v945, %v939
    %v951 = vlaneseq
    %v952 = vshrl.u32 %v951, 7
    %v953 = vsub.s32 1, %v952
    %v954 = vrot.slane %v92, %v953
    %v955 = vlaneseq
    %v956 = vshrl.u32 %v955, 7
    %v957 = vsub.s32 1, %v956
    %v958 = vrot.slane %v93, %v957
    %v959 = vlaneseq
    %v960 = vshrl.u32 %v959, 7
    %v961 = vsub.s32 1, %v960
    %v962 = vrot.slane %v94, %v961
    %v963 = vlaneseq
    %v964 = vshrl.u32 %v963, 7
    %v965 = vsub.s32 1, %v964
    %v966 = vrot.slane %v95, %v965
    %v967 = vmul.f32 %v950, %v954
    %v968 = vmul.f32 %v949, %v958
    %v969 = vmul.f32 %v948, %v962
    %v970 = vmul.f32 %v947, %v966
    %971 = vset.pattern.permute.xlu0 10
    %972 = vperm.xlu0 %971, %v104
    %v973 = vpop.permute.xlu0 %972
    %v975 = vmul.f32 %v967, %v973
    %v976 = vmul.f32 %v968, %v973
    %v977 = vmul.f32 %v969, %v973
    %v978 = vmul.f32 %v970, %v973
    %v979 = vadd.f32 %v934, %v975
    %v980 = vadd.f32 %v935, %v976
    %v981 = vadd.f32 %v936, %v977
    %v982 = vadd.f32 %v937, %v978
    %983 = vrot.lane.b32.xlu0 %v260, 30
    %v984 = vpop.permute.xlu0 %983
    %985 = vrot.lane.b32.xlu0 %v261, 30
    %v986 = vpop.permute.xlu0 %985
    %987 = vrot.lane.b32.xlu0 %v262, 30
    %v988 = vpop.permute.xlu0 %987
    %989 = vrot.lane.b32.xlu0 %v263, 30
    %v990 = vpop.permute.xlu0 %989
    %vm991 = vcmp.lt.s32.totalorder %v282, 30
    %v992 = vsel %vm991, %v988, %v990
    %v993 = vsel %vm991, %v986, %v988
    %v994 = vsel %vm991, %v984, %v986
    %v995 = vsel %vm991, %v990, %v984
    %v996 = vlaneseq
    %v997 = vshrl.u32 %v996, 7
    %v998 = vsub.s32 2, %v997
    %v999 = vrot.slane %v92, %v998
    %v1000 = vlaneseq
    %v1001 = vshrl.u32 %v1000, 7
    %v1002 = vsub.s32 2, %v1001
    %v1003 = vrot.slane %v93, %v1002
    %v1004 = vlaneseq
    %v1005 = vshrl.u32 %v1004, 7
    %v1006 = vsub.s32 2, %v1005
    %v1007 = vrot.slane %v94, %v1006
    %v1008 = vlaneseq
    %v1009 = vshrl.u32 %v1008, 7
    %v1010 = vsub.s32 2, %v1009
    %v1011 = vrot.slane %v95, %v1010
    %v1012 = vmul.f32 %v995, %v999
    %v1013 = vmul.f32 %v994, %v1003
    %v1014 = vmul.f32 %v993, %v1007
    %v1015 = vmul.f32 %v992, %v1011
    %1016 = vset.pattern.permute.xlu0 11
    %1017 = vperm.xlu0 %1016, %v104
    %v1018 = vpop.permute.xlu0 %1017
    %v1020 = vmul.f32 %v1012, %v1018
    %v1021 = vmul.f32 %v1013, %v1018
    %v1022 = vmul.f32 %v1014, %v1018
    %v1023 = vmul.f32 %v1015, %v1018
    %v1024 = vadd.f32 %v979, %v1020
    %v1025 = vadd.f32 %v980, %v1021
    %v1026 = vadd.f32 %v981, %v1022
    %v1027 = vadd.f32 %v982, %v1023
    %1028 = vrot.lane.b32.xlu0 %v260, 2
    %v1029 = vpop.permute.xlu0 %1028
    %1030 = vrot.lane.b32.xlu0 %v261, 2
    %v1031 = vpop.permute.xlu0 %1030
    %1032 = vrot.lane.b32.xlu0 %v262, 2
    %v1033 = vpop.permute.xlu0 %1032
    %1034 = vrot.lane.b32.xlu0 %v263, 2
    %v1035 = vpop.permute.xlu0 %1034
    %vm1036 = vcmp.lt.s32.totalorder %v282, 2
    %v1037 = vsel %vm1036, %v1033, %v1035
    %v1038 = vsel %vm1036, %v1031, %v1033
    %v1039 = vsel %vm1036, %v1029, %v1031
    %v1040 = vsel %vm1036, %v1035, %v1029
    %v1041 = vlaneseq
    %v1042 = vshrl.u32 %v1041, 7
    %v1043 = vsub.s32 3, %v1042
    %v1044 = vrot.slane %v92, %v1043
    %v1045 = vlaneseq
    %v1046 = vshrl.u32 %v1045, 7
    %v1047 = vsub.s32 3, %v1046
    %v1048 = vrot.slane %v93, %v1047
    %v1049 = vlaneseq
    %v1050 = vshrl.u32 %v1049, 7
    %v1051 = vsub.s32 3, %v1050
    %v1052 = vrot.slane %v94, %v1051
    %v1053 = vlaneseq
    %v1054 = vshrl.u32 %v1053, 7
    %v1055 = vsub.s32 3, %v1054
    %v1056 = vrot.slane %v95, %v1055
    %v1057 = vmul.f32 %v1040, %v1044
    %v1058 = vmul.f32 %v1039, %v1048
    %v1059 = vmul.f32 %v1038, %v1052
    %v1060 = vmul.f32 %v1037, %v1056
    %1061 = vset.pattern.permute.xlu0 12
    %1062 = vperm.xlu0 %1061, %v104
    %v1063 = vpop.permute.xlu0 %1062
    %v1065 = vmul.f32 %v1057, %v1063
    %v1066 = vmul.f32 %v1058, %v1063
    %v1067 = vmul.f32 %v1059, %v1063
    %v1068 = vmul.f32 %v1060, %v1063
    %v1069 = vadd.f32 %v1024, %v1065
    %v1070 = vadd.f32 %v1025, %v1066
    %v1071 = vadd.f32 %v1026, %v1067
    %v1072 = vadd.f32 %v1027, %v1068
    %1073 = vrot.lane.b32.xlu0 %v260, 126
    %v1074 = vpop.permute.xlu0 %1073
    %1075 = vrot.lane.b32.xlu0 %v261, 126
    %v1076 = vpop.permute.xlu0 %1075
    %1077 = vrot.lane.b32.xlu0 %v262, 126
    %v1078 = vpop.permute.xlu0 %1077
    %1079 = vrot.lane.b32.xlu0 %v263, 126
    %v1080 = vpop.permute.xlu0 %1079
    %vm1081 = vcmp.lt.s32.totalorder %v282, 126
    %v1082 = vsel %vm1081, %v1078, %v1080
    %v1083 = vsel %vm1081, %v1076, %v1078
    %v1084 = vsel %vm1081, %v1074, %v1076
    %v1085 = vsel %vm1081, %v1080, %v1074
    %v1086 = vlaneseq
    %v1087 = vshrl.u32 %v1086, 7
    %v1088 = vsub.s32 4, %v1087
    %v1089 = vrot.slane %v92, %v1088
    %v1090 = vlaneseq
    %v1091 = vshrl.u32 %v1090, 7
    %v1092 = vsub.s32 4, %v1091
    %v1093 = vrot.slane %v93, %v1092
    %v1094 = vlaneseq
    %v1095 = vshrl.u32 %v1094, 7
    %v1096 = vsub.s32 4, %v1095
    %v1097 = vrot.slane %v94, %v1096
    %v1098 = vlaneseq
    %v1099 = vshrl.u32 %v1098, 7
    %v1100 = vsub.s32 4, %v1099
    %v1101 = vrot.slane %v95, %v1100
    %v1102 = vmul.f32 %v1084, %v1089
    %v1103 = vmul.f32 %v1083, %v1093
    %v1104 = vmul.f32 %v1082, %v1097
    %v1105 = vmul.f32 %v1085, %v1101
    %1106 = vset.pattern.permute.xlu0 14
    %1107 = vperm.xlu0 %1106, %v104
    %v1108 = vpop.permute.xlu0 %1107
    %v1110 = vmul.f32 %v1102, %v1108
    %v1111 = vmul.f32 %v1103, %v1108
    %v1112 = vmul.f32 %v1104, %v1108
    %v1113 = vmul.f32 %v1105, %v1108
    %v1114 = vadd.f32 %v1069, %v1110
    %v1115 = vadd.f32 %v1070, %v1111
    %v1116 = vadd.f32 %v1071, %v1112
    %v1117 = vadd.f32 %v1072, %v1113
    %1118 = vrot.lane.b32.xlu0 %v260, 98
    %v1119 = vpop.permute.xlu0 %1118
    %1120 = vrot.lane.b32.xlu0 %v261, 98
    %v1121 = vpop.permute.xlu0 %1120
    %1122 = vrot.lane.b32.xlu0 %v262, 98
    %v1123 = vpop.permute.xlu0 %1122
    %1124 = vrot.lane.b32.xlu0 %v263, 98
    %v1125 = vpop.permute.xlu0 %1124
    %vm1126 = vcmp.lt.s32.totalorder %v282, 98
    %v1127 = vsel %vm1126, %v1123, %v1125
    %v1128 = vsel %vm1126, %v1121, %v1123
    %v1129 = vsel %vm1126, %v1119, %v1121
    %v1130 = vsel %vm1126, %v1125, %v1119
    %v1131 = vlaneseq
    %v1132 = vshrl.u32 %v1131, 7
    %v1133 = vsub.s32 5, %v1132
    %v1134 = vrot.slane %v92, %v1133
    %v1135 = vlaneseq
    %v1136 = vshrl.u32 %v1135, 7
    %v1137 = vsub.s32 5, %v1136
    %v1138 = vrot.slane %v93, %v1137
    %v1139 = vlaneseq
    %v1140 = vshrl.u32 %v1139, 7
    %v1141 = vsub.s32 5, %v1140
    %v1142 = vrot.slane %v94, %v1141
    %v1143 = vlaneseq
    %v1144 = vshrl.u32 %v1143, 7
    %v1145 = vsub.s32 5, %v1144
    %v1146 = vrot.slane %v95, %v1145
    %v1147 = vmul.f32 %v1129, %v1134
    %v1148 = vmul.f32 %v1128, %v1138
    %v1149 = vmul.f32 %v1127, %v1142
    %v1150 = vmul.f32 %v1130, %v1146
    %1151 = vset.pattern.permute.xlu0 15
    %1152 = vperm.xlu0 %1151, %v104
    %v1153 = vpop.permute.xlu0 %1152
    %v1155 = vmul.f32 %v1147, %v1153
    %v1156 = vmul.f32 %v1148, %v1153
    %v1157 = vmul.f32 %v1149, %v1153
    %v1158 = vmul.f32 %v1150, %v1153
    %v1159 = vadd.f32 %v1114, %v1155
    %v1160 = vadd.f32 %v1115, %v1156
    %v1161 = vadd.f32 %v1116, %v1157
    %v1162 = vadd.f32 %v1117, %v1158
    %1163 = vrot.lane.b32.xlu0 %v260, 96
    %v1164 = vpop.permute.xlu0 %1163
    %1165 = vrot.lane.b32.xlu0 %v261, 96
    %v1166 = vpop.permute.xlu0 %1165
    %1167 = vrot.lane.b32.xlu0 %v262, 96
    %v1168 = vpop.permute.xlu0 %1167
    %1169 = vrot.lane.b32.xlu0 %v263, 96
    %v1170 = vpop.permute.xlu0 %1169
    %vm1171 = vcmp.lt.s32.totalorder %v282, 96
    %v1172 = vsel %vm1171, %v1168, %v1170
    %v1173 = vsel %vm1171, %v1166, %v1168
    %v1174 = vsel %vm1171, %v1164, %v1166
    %v1175 = vsel %vm1171, %v1170, %v1164
    %v1176 = vlaneseq
    %v1177 = vshrl.u32 %v1176, 7
    %v1178 = vsub.s32 6, %v1177
    %v1179 = vrot.slane %v92, %v1178
    %v1180 = vlaneseq
    %v1181 = vshrl.u32 %v1180, 7
    %v1182 = vsub.s32 6, %v1181
    %v1183 = vrot.slane %v93, %v1182
    %v1184 = vlaneseq
    %v1185 = vshrl.u32 %v1184, 7
    %v1186 = vsub.s32 6, %v1185
    %v1187 = vrot.slane %v94, %v1186
    %v1188 = vlaneseq
    %v1189 = vshrl.u32 %v1188, 7
    %v1190 = vsub.s32 6, %v1189
    %v1191 = vrot.slane %v95, %v1190
    %v1192 = vmul.f32 %v1174, %v1179
    %v1193 = vmul.f32 %v1173, %v1183
    %v1194 = vmul.f32 %v1172, %v1187
    %v1195 = vmul.f32 %v1175, %v1191
    %1196 = vset.pattern.permute.xlu0 16
    %1197 = vperm.xlu0 %1196, %v104
    %v1198 = vpop.permute.xlu0 %1197
    %v1200 = vmul.f32 %v1192, %v1198
    %v1201 = vmul.f32 %v1193, %v1198
    %v1202 = vmul.f32 %v1194, %v1198
    %v1203 = vmul.f32 %v1195, %v1198
    %v1204 = vadd.f32 %v1159, %v1200
    %v1205 = vadd.f32 %v1160, %v1201
    %v1206 = vadd.f32 %v1161, %v1202
    %v1207 = vadd.f32 %v1162, %v1203
    %1208 = vrot.lane.b32.xlu0 %v260, 94
    %v1209 = vpop.permute.xlu0 %1208
    %1210 = vrot.lane.b32.xlu0 %v261, 94
    %v1211 = vpop.permute.xlu0 %1210
    %1212 = vrot.lane.b32.xlu0 %v262, 94
    %v1213 = vpop.permute.xlu0 %1212
    %1214 = vrot.lane.b32.xlu0 %v263, 94
    %v1215 = vpop.permute.xlu0 %1214
    %vm1216 = vcmp.lt.s32.totalorder %v282, 94
    %v1217 = vsel %vm1216, %v1213, %v1215
    %v1218 = vsel %vm1216, %v1211, %v1213
    %v1219 = vsel %vm1216, %v1209, %v1211
    %v1220 = vsel %vm1216, %v1215, %v1209
    %v1221 = vlaneseq
    %v1222 = vshrl.u32 %v1221, 7
    %v1223 = vsub.s32 7, %v1222
    %v1224 = vrot.slane %v92, %v1223
    %v1225 = vlaneseq
    %v1226 = vshrl.u32 %v1225, 7
    %v1227 = vsub.s32 7, %v1226
    %v1228 = vrot.slane %v93, %v1227
    %v1229 = vlaneseq
    %v1230 = vshrl.u32 %v1229, 7
    %v1231 = vsub.s32 7, %v1230
    %v1232 = vrot.slane %v94, %v1231
    %v1233 = vlaneseq
    %v1234 = vshrl.u32 %v1233, 7
    %v1235 = vsub.s32 7, %v1234
    %v1236 = vrot.slane %v95, %v1235
    %v1237 = vmul.f32 %v1219, %v1224
    %v1238 = vmul.f32 %v1218, %v1228
    %v1239 = vmul.f32 %v1217, %v1232
    %v1240 = vmul.f32 %v1220, %v1236
    %1241 = vset.pattern.permute.xlu0 17
    %1242 = vperm.xlu0 %1241, %v104
    %v1243 = vpop.permute.xlu0 %1242
    %v1245 = vmul.f32 %v1237, %v1243
    %v1246 = vmul.f32 %v1238, %v1243
    %v1247 = vmul.f32 %v1239, %v1243
    %v1248 = vmul.f32 %v1240, %v1243
    %v1249 = vadd.f32 %v1204, %v1245
    %v1250 = vadd.f32 %v1205, %v1246
    %v1251 = vadd.f32 %v1206, %v1247
    %v1252 = vadd.f32 %v1207, %v1248
    %1253 = vset.pattern.permute.xlu0 4
    %1254 = vperm.xlu0 %1253, %v105
    %v1255 = vpop.permute.xlu0 %1254
    %v1257 = vmul.f32 %v1249, %v1255
    %v1258 = vmul.f32 %v1250, %v1255
    %v1259 = vmul.f32 %v1251, %v1255
    %v1260 = vmul.f32 %v1252, %v1255
    %1261 = vset.pattern.permute.xlu0 5
    %1262 = vperm.xlu0 %1261, %v105
    %v1263 = vpop.permute.xlu0 %1262
    %v1265 = vadd.f32 %v1257, %v1263
    %v1266 = vadd.f32 %v1258, %v1263
    %v1267 = vadd.f32 %v1259, %v1263
    %v1268 = vadd.f32 %v1260, %v1263
    %v1269 = vsub.f32 0.0, %v1265
    %v1270 = vsub.f32 0.0, %v1266
    %v1271 = vsub.f32 0.0, %v1267
    %v1272 = vsub.f32 0.0, %v1268
    %v1273 = vmul.f32 %v1269, 1.442695
    %v1274 = vpow.pop %v1273
    %v1275 = vmul.f32 %v1270, 1.442695
    %v1276 = vpow.pop %v1275
    %v1277 = vmul.f32 %v1271, 1.442695
    %v1278 = vpow.pop %v1277
    %v1279 = vmul.f32 %v1272, 1.442695
    %v1280 = vpow.pop %v1279
    %v1281 = vadd.f32 %v1274, 1.0
    %v1282 = vadd.f32 %v1276, 1.0
    %v1283 = vadd.f32 %v1278, 1.0
    %v1284 = vadd.f32 %v1280, 1.0
    %v1285 = vrcp.pop %v1281
    %v1286 = vrcp.pop %v1282
    %v1287 = vrcp.pop %v1283
    %v1288 = vrcp.pop %v1284
    %v1289 = vmul.f32 %v1265, %v1285
    %v1290 = vmul.f32 %v1266, %v1286
    %v1291 = vmul.f32 %v1267, %v1287
    %v1292 = vmul.f32 %v1268, %v1288
    %s1293 = scalar_lea.vmem %s7, 8
    %v1294 = vld [vmem:[%s1293] sm:$0xf]
    %v1295 = vld [vmem:[%s1293 + $0x4] sm:$0xf]
    %v1296 = vpack.c.bf16 %v1289, %v1289
    %v1297 = vpack.c.bf16 %v1290, %v1290
    %v1298 = vpack.c.bf16 %v1291, %v1291
    %v1299 = vpack.c.bf16 %v1292, %v1292
    %v1302 = vunpack.c.l.b16 %v1294
    %v1303 = vunpack.c.l.b16 %v1295
    %v1304 = vpack.c.b16 %v1303, %v1302
    %vm1305 = vcmask 64512
    %v1307 = vsel %vm1305, %v1304, 0
    %vm1309 = vcmask 1043456
    %v1311 = vsel %vm1309, %v1296, 0
    %v1314 = vsel %vm1309, %v1297, 0
    %v1317 = vsel %vm1309, %v1298, 0
    %v1320 = vsel %vm1309, %v1299, 0
    %1322 = vmatprep.subr.bf16.mxu0 %v1314
    %1323 = vmatpush1.bf16.msra.mxu0 %v1311
    %1324 = vmatprep.subr.bf16.mxu0 0
    %1325 = vmatpush1.bf16.msra.mxu0 0
    %1326 = vmatprep.subr.bf16.mxu0 0
    %1327 = vmatpush1.bf16.msra.mxu0 0
    %1328 = vmatprep.subr.bf16.mxu0 0
    %1329 = vmatpush1.bf16.msra.mxu0 0
    %1330 = vmatprep.subr.bf16.mxu0 0
    %1331 = vmatpush1.bf16.msra.mxu0 0
    %1332 = vmatprep.subr.bf16.mxu0 0
    %1333 = vmatpush1.bf16.msra.mxu0 0
    %1334 = vmatprep.subr.bf16.mxu0 0
    %1335 = vmatpush1.bf16.msra.mxu0 0
    %1336 = vmatprep.subr.bf16.mxu0 0
    %1337 = vmatpush1.bf16.msra.mxu0 0
    %1338 = vmatprep.subr.bf16.mxu0 0
    %1339 = vmatpush1.bf16.msra.mxu0 0
    %1340 = vmatprep.subr.bf16.mxu0 0
    %1341 = vmatpush1.bf16.msra.mxu0 0
    %1342 = vmatprep.subr.bf16.mxu0 0
    %1343 = vmatpush1.bf16.msra.mxu0 0
    %1344 = vmatprep.subr.bf16.mxu0 0
    %1345 = vmatpush1.bf16.msra.mxu0 0
    %1346 = vmatprep.subr.bf16.mxu0 0
    %1347 = vmatpush1.bf16.msra.mxu0 0
    %1348 = vmatprep.subr.bf16.mxu0 0
    %1349 = vmatpush1.bf16.msra.mxu0 0
    %1350 = vmatprep.subr.bf16.mxu0 0
    %1351 = vmatpush1.bf16.msra.mxu0 0
    %1352 = vmatprep.subr.bf16.mxu0 0
    %1353 = vmatpush1.bf16.msra.mxu0 0
    %1354 = vmatprep.mubr.bf16.mxu0 0
    %1355 = vmatmul.mubr.bf16.gmra.mrb[0].mxu0 %v1307
    %v1356 = vpop.f32.mrb[0].mxu0
    %v1357 = vadd.f32 0.0, %v1356
    %v1358 = vpop.f32.mrb[0].mxu0
    %v1359 = vadd.f32 0.0, %v1358
    %v1360 = vpop.f32.mrb[0].mxu0
    %v1361 = vadd.f32 0.0, %v1360
    %v1362 = vpop.f32.mrb[0].mxu0
    %v1363 = vadd.f32 0.0, %v1362
    %1364 = vdwg.mxu0
    %1365 = vmatprep.subr.bf16.mxu0 %v1320
    %1366 = vmatpush1.bf16.msra.mxu0 %v1317
    %1367 = vmatprep.subr.bf16.mxu0 0
    %1368 = vmatpush1.bf16.msra.mxu0 0
    %1369 = vmatprep.subr.bf16.mxu0 0
    %1370 = vmatpush1.bf16.msra.mxu0 0
    %1371 = vmatprep.subr.bf16.mxu0 0
    %1372 = vmatpush1.bf16.msra.mxu0 0
    %1373 = vmatprep.subr.bf16.mxu0 0
    %1374 = vmatpush1.bf16.msra.mxu0 0
    %1375 = vmatprep.subr.bf16.mxu0 0
    %1376 = vmatpush1.bf16.msra.mxu0 0
    %1377 = vmatprep.subr.bf16.mxu0 0
    %1378 = vmatpush1.bf16.msra.mxu0 0
    %1379 = vmatprep.subr.bf16.mxu0 0
    %1380 = vmatpush1.bf16.msra.mxu0 0
    %1381 = vmatprep.subr.bf16.mxu0 0
    %1382 = vmatpush1.bf16.msra.mxu0 0
    %1383 = vmatprep.subr.bf16.mxu0 0
    %1384 = vmatpush1.bf16.msra.mxu0 0
    %1385 = vmatprep.subr.bf16.mxu0 0
    %1386 = vmatpush1.bf16.msra.mxu0 0
    %1387 = vmatprep.subr.bf16.mxu0 0
    %1388 = vmatpush1.bf16.msra.mxu0 0
    %1389 = vmatprep.subr.bf16.mxu0 0
    %1390 = vmatpush1.bf16.msra.mxu0 0
    %1391 = vmatprep.subr.bf16.mxu0 0
    %1392 = vmatpush1.bf16.msra.mxu0 0
    %1393 = vmatprep.subr.bf16.mxu0 0
    %1394 = vmatpush1.bf16.msra.mxu0 0
    %1395 = vmatprep.subr.bf16.mxu0 0
    %1396 = vmatpush1.bf16.msra.mxu0 0
    %1397 = vmatprep.mubr.bf16.mxu0 0
    %1398 = vmatmul.mubr.bf16.gmra.mrb[0].mxu0 %v1307
    %v1399 = vpop.f32.mrb[0].mxu0
    %v1400 = vadd.f32 0.0, %v1399
    %v1401 = vpop.f32.mrb[0].mxu0
    %v1402 = vadd.f32 0.0, %v1401
    %v1403 = vpop.f32.mrb[0].mxu0
    %v1404 = vadd.f32 0.0, %v1403
    %v1405 = vpop.f32.mrb[0].mxu0
    %v1406 = vadd.f32 0.0, %v1405
    %1407 = vdwg.mxu0
    %v1410 = vunpack.c.l.b16 %v879
    %v1411 = vunpack.c.l.b16 %v880
    %v1412 = vpack.c.b16 %v1411, %v1410
    %v1414 = vsel %vm1305, %v1412, 0
    %v1417 = vsel %vm1309, %v881, 0
    %v1420 = vsel %vm1309, %v882, 0
    %v1423 = vsel %vm1309, %v883, 0
    %v1426 = vsel %vm1309, %v884, 0
    %1428 = vmatprep.subr.bf16.mxu0 %v1420
    %1429 = vmatpush1.bf16.msra.mxu0 %v1417
    %1430 = vmatprep.subr.bf16.mxu0 0
    %1431 = vmatpush1.bf16.msra.mxu0 0
    %1432 = vmatprep.subr.bf16.mxu0 0
    %1433 = vmatpush1.bf16.msra.mxu0 0
    %1434 = vmatprep.subr.bf16.mxu0 0
    %1435 = vmatpush1.bf16.msra.mxu0 0
    %1436 = vmatprep.subr.bf16.mxu0 0
    %1437 = vmatpush1.bf16.msra.mxu0 0
    %1438 = vmatprep.subr.bf16.mxu0 0
    %1439 = vmatpush1.bf16.msra.mxu0 0
    %1440 = vmatprep.subr.bf16.mxu0 0
    %1441 = vmatpush1.bf16.msra.mxu0 0
    %1442 = vmatprep.subr.bf16.mxu0 0
    %1443 = vmatpush1.bf16.msra.mxu0 0
    %1444 = vmatprep.subr.bf16.mxu0 0
    %1445 = vmatpush1.bf16.msra.mxu0 0
    %1446 = vmatprep.subr.bf16.mxu0 0
    %1447 = vmatpush1.bf16.msra.mxu0 0
    %1448 = vmatprep.subr.bf16.mxu0 0
    %1449 = vmatpush1.bf16.msra.mxu0 0
    %1450 = vmatprep.subr.bf16.mxu0 0
    %1451 = vmatpush1.bf16.msra.mxu0 0
    %1452 = vmatprep.subr.bf16.mxu0 0
    %1453 = vmatpush1.bf16.msra.mxu0 0
    %1454 = vmatprep.subr.bf16.mxu0 0
    %1455 = vmatpush1.bf16.msra.mxu0 0
    %1456 = vmatprep.subr.bf16.mxu0 0
    %1457 = vmatpush1.bf16.msra.mxu0 0
    %1458 = vmatprep.subr.bf16.mxu0 0
    %1459 = vmatpush1.bf16.msra.mxu0 0
    %1460 = vmatprep.mubr.bf16.mxu0 0
    %1461 = vmatmul.mubr.bf16.gmra.mrb[0].mxu0 %v1414
    %v1462 = vpop.f32.mrb[0].mxu0
    %v1463 = vadd.f32 %v1357, %v1462
    %v1464 = vpop.f32.mrb[0].mxu0
    %v1465 = vadd.f32 %v1359, %v1464
    %v1466 = vpop.f32.mrb[0].mxu0
    %v1467 = vadd.f32 %v1361, %v1466
    %v1468 = vpop.f32.mrb[0].mxu0
    %v1469 = vadd.f32 %v1363, %v1468
    %1470 = vdwg.mxu0
    %1471 = vmatprep.subr.bf16.mxu0 %v1426
    %1472 = vmatpush1.bf16.msra.mxu0 %v1423
    %1473 = vmatprep.subr.bf16.mxu0 0
    %1474 = vmatpush1.bf16.msra.mxu0 0
    %1475 = vmatprep.subr.bf16.mxu0 0
    %1476 = vmatpush1.bf16.msra.mxu0 0
    %1477 = vmatprep.subr.bf16.mxu0 0
    %1478 = vmatpush1.bf16.msra.mxu0 0
    %1479 = vmatprep.subr.bf16.mxu0 0
    %1480 = vmatpush1.bf16.msra.mxu0 0
    %1481 = vmatprep.subr.bf16.mxu0 0
    %1482 = vmatpush1.bf16.msra.mxu0 0
    %1483 = vmatprep.subr.bf16.mxu0 0
    %1484 = vmatpush1.bf16.msra.mxu0 0
    %1485 = vmatprep.subr.bf16.mxu0 0
    %1486 = vmatpush1.bf16.msra.mxu0 0
    %1487 = vmatprep.subr.bf16.mxu0 0
    %1488 = vmatpush1.bf16.msra.mxu0 0
    %1489 = vmatprep.subr.bf16.mxu0 0
    %1490 = vmatpush1.bf16.msra.mxu0 0
    %1491 = vmatprep.subr.bf16.mxu0 0
    %1492 = vmatpush1.bf16.msra.mxu0 0
    %1493 = vmatprep.subr.bf16.mxu0 0
    %1494 = vmatpush1.bf16.msra.mxu0 0
    %1495 = vmatprep.subr.bf16.mxu0 0
    %1496 = vmatpush1.bf16.msra.mxu0 0
    %1497 = vmatprep.subr.bf16.mxu0 0
    %1498 = vmatpush1.bf16.msra.mxu0 0
    %1499 = vmatprep.subr.bf16.mxu0 0
    %1500 = vmatpush1.bf16.msra.mxu0 0
    %1501 = vmatprep.subr.bf16.mxu0 0
    %1502 = vmatpush1.bf16.msra.mxu0 0
    %1503 = vmatprep.mubr.bf16.mxu0 0
    %1504 = vmatmul.mubr.bf16.gmra.mrb[0].mxu0 %v1414
    %v1505 = vpop.f32.mrb[0].mxu0
    %v1506 = vadd.f32 %v1400, %v1505
    %v1507 = vpop.f32.mrb[0].mxu0
    %v1508 = vadd.f32 %v1402, %v1507
    %v1509 = vpop.f32.mrb[0].mxu0
    %v1510 = vadd.f32 %v1404, %v1509
    %v1511 = vpop.f32.mrb[0].mxu0
    %v1512 = vadd.f32 %v1406, %v1511
    %1513 = vdwg.mxu0
    %1514 = vset.pattern.permute.xlu0 22
    %1515 = vperm.xlu0 %1514, %v104
    %v1516 = vpop.permute.xlu0 %1515
    %v1518 = vmul.f32 %v260, %v1516
    %v1519 = vmul.f32 %v261, %v1516
    %v1520 = vmul.f32 %v262, %v1516
    %v1521 = vmul.f32 %v263, %v1516
    %1522 = vrot.lane.b32.xlu0 %v260, 51
    %v1523 = vpop.permute.xlu0 %1522
    %1524 = vrot.lane.b32.xlu0 %v261, 51
    %v1525 = vpop.permute.xlu0 %1524
    %1526 = vrot.lane.b32.xlu0 %v262, 51
    %v1527 = vpop.permute.xlu0 %1526
    %1528 = vrot.lane.b32.xlu0 %v263, 51
    %v1529 = vpop.permute.xlu0 %1528
    %vm1530 = vcmp.lt.s32.totalorder %v282, 51
    %v1531 = vsel %vm1530, %v1527, %v1529
    %v1532 = vsel %vm1530, %v1525, %v1527
    %v1533 = vsel %vm1530, %v1523, %v1525
    %v1534 = vsel %vm1530, %v1529, %v1523
    %v1535 = vlaneseq
    %v1536 = vshrl.u32 %v1535, 7
    %v1537 = vsub.s32 0, %v1536
    %v1538 = vrot.slane %v96, %v1537
    %v1539 = vlaneseq
    %v1540 = vshrl.u32 %v1539, 7
    %v1541 = vsub.s32 0, %v1540
    %v1542 = vrot.slane %v97, %v1541
    %v1543 = vlaneseq
    %v1544 = vshrl.u32 %v1543, 7
    %v1545 = vsub.s32 0, %v1544
    %v1546 = vrot.slane %v98, %v1545
    %v1547 = vlaneseq
    %v1548 = vshrl.u32 %v1547, 7
    %v1549 = vsub.s32 0, %v1548
    %v1550 = vrot.slane %v99, %v1549
    %v1551 = vmul.f32 %v1534, %v1538
    %v1552 = vmul.f32 %v1533, %v1542
    %v1553 = vmul.f32 %v1532, %v1546
    %v1554 = vmul.f32 %v1531, %v1550
    %1555 = vset.pattern.permute.xlu0 18
    %1556 = vperm.xlu0 %1555, %v104
    %v1557 = vpop.permute.xlu0 %1556
    %v1559 = vmul.f32 %v1551, %v1557
    %v1560 = vmul.f32 %v1552, %v1557
    %v1561 = vmul.f32 %v1553, %v1557
    %v1562 = vmul.f32 %v1554, %v1557
    %v1563 = vadd.f32 %v1518, %v1559
    %v1564 = vadd.f32 %v1519, %v1560
    %v1565 = vadd.f32 %v1520, %v1561
    %v1566 = vadd.f32 %v1521, %v1562
    %1567 = vrot.lane.b32.xlu0 %v260, 48
    %v1568 = vpop.permute.xlu0 %1567
    %1569 = vrot.lane.b32.xlu0 %v261, 48
    %v1570 = vpop.permute.xlu0 %1569
    %1571 = vrot.lane.b32.xlu0 %v262, 48
    %v1572 = vpop.permute.xlu0 %1571
    %1573 = vrot.lane.b32.xlu0 %v263, 48
    %v1574 = vpop.permute.xlu0 %1573
    %vm1575 = vcmp.lt.s32.totalorder %v282, 48
    %v1576 = vsel %vm1575, %v1572, %v1574
    %v1577 = vsel %vm1575, %v1570, %v1572
    %v1578 = vsel %vm1575, %v1568, %v1570
    %v1579 = vsel %vm1575, %v1574, %v1568
    %v1580 = vlaneseq
    %v1581 = vshrl.u32 %v1580, 7
    %v1582 = vsub.s32 1, %v1581
    %v1583 = vrot.slane %v96, %v1582
    %v1584 = vlaneseq
    %v1585 = vshrl.u32 %v1584, 7
    %v1586 = vsub.s32 1, %v1585
    %v1587 = vrot.slane %v97, %v1586
    %v1588 = vlaneseq
    %v1589 = vshrl.u32 %v1588, 7
    %v1590 = vsub.s32 1, %v1589
    %v1591 = vrot.slane %v98, %v1590
    %v1592 = vlaneseq
    %v1593 = vshrl.u32 %v1592, 7
    %v1594 = vsub.s32 1, %v1593
    %v1595 = vrot.slane %v99, %v1594
    %v1596 = vmul.f32 %v1579, %v1583
    %v1597 = vmul.f32 %v1578, %v1587
    %v1598 = vmul.f32 %v1577, %v1591
    %v1599 = vmul.f32 %v1576, %v1595
    %1600 = vset.pattern.permute.xlu0 19
    %1601 = vperm.xlu0 %1600, %v104
    %v1602 = vpop.permute.xlu0 %1601
    %v1604 = vmul.f32 %v1596, %v1602
    %v1605 = vmul.f32 %v1597, %v1602
    %v1606 = vmul.f32 %v1598, %v1602
    %v1607 = vmul.f32 %v1599, %v1602
    %v1608 = vadd.f32 %v1563, %v1604
    %v1609 = vadd.f32 %v1564, %v1605
    %v1610 = vadd.f32 %v1565, %v1606
    %v1611 = vadd.f32 %v1566, %v1607
    %1612 = vrot.lane.b32.xlu0 %v260, 45
    %v1613 = vpop.permute.xlu0 %1612
    %1614 = vrot.lane.b32.xlu0 %v261, 45
    %v1615 = vpop.permute.xlu0 %1614
    %1616 = vrot.lane.b32.xlu0 %v262, 45
    %v1617 = vpop.permute.xlu0 %1616
    %1618 = vrot.lane.b32.xlu0 %v263, 45
    %v1619 = vpop.permute.xlu0 %1618
    %vm1620 = vcmp.lt.s32.totalorder %v282, 45
    %v1621 = vsel %vm1620, %v1617, %v1619
    %v1622 = vsel %vm1620, %v1615, %v1617
    %v1623 = vsel %vm1620, %v1613, %v1615
    %v1624 = vsel %vm1620, %v1619, %v1613
    %v1625 = vlaneseq
    %v1626 = vshrl.u32 %v1625, 7
    %v1627 = vsub.s32 2, %v1626
    %v1628 = vrot.slane %v96, %v1627
    %v1629 = vlaneseq
    %v1630 = vshrl.u32 %v1629, 7
    %v1631 = vsub.s32 2, %v1630
    %v1632 = vrot.slane %v97, %v1631
    %v1633 = vlaneseq
    %v1634 = vshrl.u32 %v1633, 7
    %v1635 = vsub.s32 2, %v1634
    %v1636 = vrot.slane %v98, %v1635
    %v1637 = vlaneseq
    %v1638 = vshrl.u32 %v1637, 7
    %v1639 = vsub.s32 2, %v1638
    %v1640 = vrot.slane %v99, %v1639
    %v1641 = vmul.f32 %v1624, %v1628
    %v1642 = vmul.f32 %v1623, %v1632
    %v1643 = vmul.f32 %v1622, %v1636
    %v1644 = vmul.f32 %v1621, %v1640
    %1645 = vset.pattern.permute.xlu0 20
    %1646 = vperm.xlu0 %1645, %v104
    %v1647 = vpop.permute.xlu0 %1646
    %v1649 = vmul.f32 %v1641, %v1647
    %v1650 = vmul.f32 %v1642, %v1647
    %v1651 = vmul.f32 %v1643, %v1647
    %v1652 = vmul.f32 %v1644, %v1647
    %v1653 = vadd.f32 %v1608, %v1649
    %v1654 = vadd.f32 %v1609, %v1650
    %v1655 = vadd.f32 %v1610, %v1651
    %v1656 = vadd.f32 %v1611, %v1652
    %1657 = vrot.lane.b32.xlu0 %v260, 3
    %v1658 = vpop.permute.xlu0 %1657
    %1659 = vrot.lane.b32.xlu0 %v261, 3
    %v1660 = vpop.permute.xlu0 %1659
    %1661 = vrot.lane.b32.xlu0 %v262, 3
    %v1662 = vpop.permute.xlu0 %1661
    %1663 = vrot.lane.b32.xlu0 %v263, 3
    %v1664 = vpop.permute.xlu0 %1663
    %vm1665 = vcmp.lt.s32.totalorder %v282, 3
    %v1666 = vsel %vm1665, %v1662, %v1664
    %v1667 = vsel %vm1665, %v1660, %v1662
    %v1668 = vsel %vm1665, %v1658, %v1660
    %v1669 = vsel %vm1665, %v1664, %v1658
    %v1670 = vlaneseq
    %v1671 = vshrl.u32 %v1670, 7
    %v1672 = vsub.s32 3, %v1671
    %v1673 = vrot.slane %v96, %v1672
    %v1674 = vlaneseq
    %v1675 = vshrl.u32 %v1674, 7
    %v1676 = vsub.s32 3, %v1675
    %v1677 = vrot.slane %v97, %v1676
    %v1678 = vlaneseq
    %v1679 = vshrl.u32 %v1678, 7
    %v1680 = vsub.s32 3, %v1679
    %v1681 = vrot.slane %v98, %v1680
    %v1682 = vlaneseq
    %v1683 = vshrl.u32 %v1682, 7
    %v1684 = vsub.s32 3, %v1683
    %v1685 = vrot.slane %v99, %v1684
    %v1686 = vmul.f32 %v1669, %v1673
    %v1687 = vmul.f32 %v1668, %v1677
    %v1688 = vmul.f32 %v1667, %v1681
    %v1689 = vmul.f32 %v1666, %v1685
    %1690 = vset.pattern.permute.xlu0 21
    %1691 = vperm.xlu0 %1690, %v104
    %v1692 = vpop.permute.xlu0 %1691
    %v1694 = vmul.f32 %v1686, %v1692
    %v1695 = vmul.f32 %v1687, %v1692
    %v1696 = vmul.f32 %v1688, %v1692
    %v1697 = vmul.f32 %v1689, %v1692
    %v1698 = vadd.f32 %v1653, %v1694
    %v1699 = vadd.f32 %v1654, %v1695
    %v1700 = vadd.f32 %v1655, %v1696
    %v1701 = vadd.f32 %v1656, %v1697
    %1702 = vrot.lane.b32.xlu0 %v260, 125
    %v1703 = vpop.permute.xlu0 %1702
    %1704 = vrot.lane.b32.xlu0 %v261, 125
    %v1705 = vpop.permute.xlu0 %1704
    %1706 = vrot.lane.b32.xlu0 %v262, 125
    %v1707 = vpop.permute.xlu0 %1706
    %1708 = vrot.lane.b32.xlu0 %v263, 125
    %v1709 = vpop.permute.xlu0 %1708
    %vm1710 = vcmp.lt.s32.totalorder %v282, 125
    %v1711 = vsel %vm1710, %v1707, %v1709
    %v1712 = vsel %vm1710, %v1705, %v1707
    %v1713 = vsel %vm1710, %v1703, %v1705
    %v1714 = vsel %vm1710, %v1709, %v1703
    %v1715 = vlaneseq
    %v1716 = vshrl.u32 %v1715, 7
    %v1717 = vsub.s32 4, %v1716
    %v1718 = vrot.slane %v96, %v1717
    %v1719 = vlaneseq
    %v1720 = vshrl.u32 %v1719, 7
    %v1721 = vsub.s32 4, %v1720
    %v1722 = vrot.slane %v97, %v1721
    %v1723 = vlaneseq
    %v1724 = vshrl.u32 %v1723, 7
    %v1725 = vsub.s32 4, %v1724
    %v1726 = vrot.slane %v98, %v1725
    %v1727 = vlaneseq
    %v1728 = vshrl.u32 %v1727, 7
    %v1729 = vsub.s32 4, %v1728
    %v1730 = vrot.slane %v99, %v1729
    %v1731 = vmul.f32 %v1713, %v1718
    %v1732 = vmul.f32 %v1712, %v1722
    %v1733 = vmul.f32 %v1711, %v1726
    %v1734 = vmul.f32 %v1714, %v1730
    %1735 = vset.pattern.permute.xlu0 23
    %1736 = vperm.xlu0 %1735, %v104
    %v1737 = vpop.permute.xlu0 %1736
    %v1739 = vmul.f32 %v1731, %v1737
    %v1740 = vmul.f32 %v1732, %v1737
    %v1741 = vmul.f32 %v1733, %v1737
    %v1742 = vmul.f32 %v1734, %v1737
    %v1743 = vadd.f32 %v1698, %v1739
    %v1744 = vadd.f32 %v1699, %v1740
    %v1745 = vadd.f32 %v1700, %v1741
    %v1746 = vadd.f32 %v1701, %v1742
    %1747 = vrot.lane.b32.xlu0 %v260, 83
    %v1748 = vpop.permute.xlu0 %1747
    %1749 = vrot.lane.b32.xlu0 %v261, 83
    %v1750 = vpop.permute.xlu0 %1749
    %1751 = vrot.lane.b32.xlu0 %v262, 83
    %v1752 = vpop.permute.xlu0 %1751
    %1753 = vrot.lane.b32.xlu0 %v263, 83
    %v1754 = vpop.permute.xlu0 %1753
    %vm1755 = vcmp.lt.s32.totalorder %v282, 83
    %v1756 = vsel %vm1755, %v1752, %v1754
    %v1757 = vsel %vm1755, %v1750, %v1752
    %v1758 = vsel %vm1755, %v1748, %v1750
    %v1759 = vsel %vm1755, %v1754, %v1748
    %v1760 = vlaneseq
    %v1761 = vshrl.u32 %v1760, 7
    %v1762 = vsub.s32 5, %v1761
    %v1763 = vrot.slane %v96, %v1762
    %v1764 = vlaneseq
    %v1765 = vshrl.u32 %v1764, 7
    %v1766 = vsub.s32 5, %v1765
    %v1767 = vrot.slane %v97, %v1766
    %v1768 = vlaneseq
    %v1769 = vshrl.u32 %v1768, 7
    %v1770 = vsub.s32 5, %v1769
    %v1771 = vrot.slane %v98, %v1770
    %v1772 = vlaneseq
    %v1773 = vshrl.u32 %v1772, 7
    %v1774 = vsub.s32 5, %v1773
    %v1775 = vrot.slane %v99, %v1774
    %v1776 = vmul.f32 %v1758, %v1763
    %v1777 = vmul.f32 %v1757, %v1767
    %v1778 = vmul.f32 %v1756, %v1771
    %v1779 = vmul.f32 %v1759, %v1775
    %1780 = vset.pattern.permute.xlu0 24
    %1781 = vperm.xlu0 %1780, %v104
    %v1782 = vpop.permute.xlu0 %1781
    %v1784 = vmul.f32 %v1776, %v1782
    %v1785 = vmul.f32 %v1777, %v1782
    %v1786 = vmul.f32 %v1778, %v1782
    %v1787 = vmul.f32 %v1779, %v1782
    %v1788 = vadd.f32 %v1743, %v1784
    %v1789 = vadd.f32 %v1744, %v1785
    %v1790 = vadd.f32 %v1745, %v1786
    %v1791 = vadd.f32 %v1746, %v1787
    %1792 = vrot.lane.b32.xlu0 %v260, 80
    %v1793 = vpop.permute.xlu0 %1792
    %1794 = vrot.lane.b32.xlu0 %v261, 80
    %v1795 = vpop.permute.xlu0 %1794
    %1796 = vrot.lane.b32.xlu0 %v262, 80
    %v1797 = vpop.permute.xlu0 %1796
    %1798 = vrot.lane.b32.xlu0 %v263, 80
    %v1799 = vpop.permute.xlu0 %1798
    %vm1800 = vcmp.lt.s32.totalorder %v282, 80
    %v1801 = vsel %vm1800, %v1797, %v1799
    %v1802 = vsel %vm1800, %v1795, %v1797
    %v1803 = vsel %vm1800, %v1793, %v1795
    %v1804 = vsel %vm1800, %v1799, %v1793
    %v1805 = vlaneseq
    %v1806 = vshrl.u32 %v1805, 7
    %v1807 = vsub.s32 6, %v1806
    %v1808 = vrot.slane %v96, %v1807
    %v1809 = vlaneseq
    %v1810 = vshrl.u32 %v1809, 7
    %v1811 = vsub.s32 6, %v1810
    %v1812 = vrot.slane %v97, %v1811
    %v1813 = vlaneseq
    %v1814 = vshrl.u32 %v1813, 7
    %v1815 = vsub.s32 6, %v1814
    %v1816 = vrot.slane %v98, %v1815
    %v1817 = vlaneseq
    %v1818 = vshrl.u32 %v1817, 7
    %v1819 = vsub.s32 6, %v1818
    %v1820 = vrot.slane %v99, %v1819
    %v1821 = vmul.f32 %v1803, %v1808
    %v1822 = vmul.f32 %v1802, %v1812
    %v1823 = vmul.f32 %v1801, %v1816
    %v1824 = vmul.f32 %v1804, %v1820
    %1825 = vset.pattern.permute.xlu0 25
    %1826 = vperm.xlu0 %1825, %v104
    %v1827 = vpop.permute.xlu0 %1826
    %v1829 = vmul.f32 %v1821, %v1827
    %v1830 = vmul.f32 %v1822, %v1827
    %v1831 = vmul.f32 %v1823, %v1827
    %v1832 = vmul.f32 %v1824, %v1827
    %v1833 = vadd.f32 %v1788, %v1829
    %v1834 = vadd.f32 %v1789, %v1830
    %v1835 = vadd.f32 %v1790, %v1831
    %v1836 = vadd.f32 %v1791, %v1832
    %1837 = vrot.lane.b32.xlu0 %v260, 77
    %v1838 = vpop.permute.xlu0 %1837
    %1839 = vrot.lane.b32.xlu0 %v261, 77
    %v1840 = vpop.permute.xlu0 %1839
    %1841 = vrot.lane.b32.xlu0 %v262, 77
    %v1842 = vpop.permute.xlu0 %1841
    %1843 = vrot.lane.b32.xlu0 %v263, 77
    %v1844 = vpop.permute.xlu0 %1843
    %vm1845 = vcmp.lt.s32.totalorder %v282, 77
    %v1846 = vsel %vm1845, %v1842, %v1844
    %v1847 = vsel %vm1845, %v1840, %v1842
    %v1848 = vsel %vm1845, %v1838, %v1840
    %v1849 = vsel %vm1845, %v1844, %v1838
    %v1850 = vlaneseq
    %v1851 = vshrl.u32 %v1850, 7
    %v1852 = vsub.s32 7, %v1851
    %v1853 = vrot.slane %v96, %v1852
    %v1854 = vlaneseq
    %v1855 = vshrl.u32 %v1854, 7
    %v1856 = vsub.s32 7, %v1855
    %v1857 = vrot.slane %v97, %v1856
    %v1858 = vlaneseq
    %v1859 = vshrl.u32 %v1858, 7
    %v1860 = vsub.s32 7, %v1859
    %v1861 = vrot.slane %v98, %v1860
    %v1862 = vlaneseq
    %v1863 = vshrl.u32 %v1862, 7
    %v1864 = vsub.s32 7, %v1863
    %v1865 = vrot.slane %v99, %v1864
    %v1866 = vmul.f32 %v1848, %v1853
    %v1867 = vmul.f32 %v1847, %v1857
    %v1868 = vmul.f32 %v1846, %v1861
    %v1869 = vmul.f32 %v1849, %v1865
    %1870 = vset.pattern.permute.xlu0 26
    %1871 = vperm.xlu0 %1870, %v104
    %v1872 = vpop.permute.xlu0 %1871
    %v1874 = vmul.f32 %v1866, %v1872
    %v1875 = vmul.f32 %v1867, %v1872
    %v1876 = vmul.f32 %v1868, %v1872
    %v1877 = vmul.f32 %v1869, %v1872
    %v1878 = vadd.f32 %v1833, %v1874
    %v1879 = vadd.f32 %v1834, %v1875
    %v1880 = vadd.f32 %v1835, %v1876
    %v1881 = vadd.f32 %v1836, %v1877
    %1882 = vset.pattern.permute.xlu0 6
    %1883 = vperm.xlu0 %1882, %v105
    %v1884 = vpop.permute.xlu0 %1883
    %v1886 = vmul.f32 %v1878, %v1884
    %v1887 = vmul.f32 %v1879, %v1884
    %v1888 = vmul.f32 %v1880, %v1884
    %v1889 = vmul.f32 %v1881, %v1884
    %1890 = vset.pattern.permute.xlu0 7
    %1891 = vperm.xlu0 %1890, %v105
    %v1892 = vpop.permute.xlu0 %1891
    %v1894 = vadd.f32 %v1886, %v1892
    %v1895 = vadd.f32 %v1887, %v1892
    %v1896 = vadd.f32 %v1888, %v1892
    %v1897 = vadd.f32 %v1889, %v1892
    %v1898 = vsub.f32 0.0, %v1894
    %v1899 = vsub.f32 0.0, %v1895
    %v1900 = vsub.f32 0.0, %v1896
    %v1901 = vsub.f32 0.0, %v1897
    %v1902 = vmul.f32 %v1898, 1.442695
    %v1903 = vpow.pop %v1902
    %v1904 = vmul.f32 %v1899, 1.442695
    %v1905 = vpow.pop %v1904
    %v1906 = vmul.f32 %v1900, 1.442695
    %v1907 = vpow.pop %v1906
    %v1908 = vmul.f32 %v1901, 1.442695
    %v1909 = vpow.pop %v1908
    %v1910 = vadd.f32 %v1903, 1.0
    %v1911 = vadd.f32 %v1905, 1.0
    %v1912 = vadd.f32 %v1907, 1.0
    %v1913 = vadd.f32 %v1909, 1.0
    %v1914 = vrcp.pop %v1910
    %v1915 = vrcp.pop %v1911
    %v1916 = vrcp.pop %v1912
    %v1917 = vrcp.pop %v1913
    %v1918 = vmul.f32 %v1894, %v1914
    %v1919 = vmul.f32 %v1895, %v1915
    %v1920 = vmul.f32 %v1896, %v1916
    %v1921 = vmul.f32 %v1897, %v1917
    %s1922 = scalar_lea.vmem %s7, 16
    %v1923 = vld [vmem:[%s1922] sm:$0xf]
    %v1924 = vld [vmem:[%s1922 + $0x4] sm:$0xf]
    %v1925 = vpack.c.bf16 %v1918, %v1918
    %v1926 = vpack.c.bf16 %v1919, %v1919
    %v1927 = vpack.c.bf16 %v1920, %v1920
    %v1928 = vpack.c.bf16 %v1921, %v1921
    %v1931 = vunpack.c.l.b16 %v1923
    %v1932 = vunpack.c.l.b16 %v1924
    %v1933 = vpack.c.b16 %v1932, %v1931
    %v1935 = vsel %vm1305, %v1933, 0
    %v1938 = vsel %vm1309, %v1925, 0
    %v1941 = vsel %vm1309, %v1926, 0
    %v1944 = vsel %vm1309, %v1927, 0
    %v1947 = vsel %vm1309, %v1928, 0
    %1949 = vmatprep.subr.bf16.mxu0 %v1941
    %1950 = vmatpush1.bf16.msra.mxu0 %v1938
    %1951 = vmatprep.subr.bf16.mxu0 0
    %1952 = vmatpush1.bf16.msra.mxu0 0
    %1953 = vmatprep.subr.bf16.mxu0 0
    %1954 = vmatpush1.bf16.msra.mxu0 0
    %1955 = vmatprep.subr.bf16.mxu0 0
    %1956 = vmatpush1.bf16.msra.mxu0 0
    %1957 = vmatprep.subr.bf16.mxu0 0
    %1958 = vmatpush1.bf16.msra.mxu0 0
    %1959 = vmatprep.subr.bf16.mxu0 0
    %1960 = vmatpush1.bf16.msra.mxu0 0
    %1961 = vmatprep.subr.bf16.mxu0 0
    %1962 = vmatpush1.bf16.msra.mxu0 0
    %1963 = vmatprep.subr.bf16.mxu0 0
    %1964 = vmatpush1.bf16.msra.mxu0 0
    %1965 = vmatprep.subr.bf16.mxu0 0
    %1966 = vmatpush1.bf16.msra.mxu0 0
    %1967 = vmatprep.subr.bf16.mxu0 0
    %1968 = vmatpush1.bf16.msra.mxu0 0
    %1969 = vmatprep.subr.bf16.mxu0 0
    %1970 = vmatpush1.bf16.msra.mxu0 0
    %1971 = vmatprep.subr.bf16.mxu0 0
    %1972 = vmatpush1.bf16.msra.mxu0 0
    %1973 = vmatprep.subr.bf16.mxu0 0
    %1974 = vmatpush1.bf16.msra.mxu0 0
    %1975 = vmatprep.subr.bf16.mxu0 0
    %1976 = vmatpush1.bf16.msra.mxu0 0
    %1977 = vmatprep.subr.bf16.mxu0 0
    %1978 = vmatpush1.bf16.msra.mxu0 0
    %1979 = vmatprep.subr.bf16.mxu0 0
    %1980 = vmatpush1.bf16.msra.mxu0 0
    %1981 = vmatprep.mubr.bf16.mxu0 0
    %1982 = vmatmul.mubr.bf16.gmra.mrb[0].mxu0 %v1935
    %v1983 = vpop.f32.mrb[0].mxu0
    %v1984 = vadd.f32 0.0, %v1983
    %v1985 = vpop.f32.mrb[0].mxu0
    %v1986 = vadd.f32 0.0, %v1985
    %v1987 = vpop.f32.mrb[0].mxu0
    %v1988 = vadd.f32 0.0, %v1987
    %v1989 = vpop.f32.mrb[0].mxu0
    %v1990 = vadd.f32 0.0, %v1989
    %1991 = vdwg.mxu0
    %1992 = vmatprep.subr.bf16.mxu0 %v1947
    %1993 = vmatpush1.bf16.msra.mxu0 %v1944
    %1994 = vmatprep.subr.bf16.mxu0 0
    %1995 = vmatpush1.bf16.msra.mxu0 0
    %1996 = vmatprep.subr.bf16.mxu0 0
    %1997 = vmatpush1.bf16.msra.mxu0 0
    %1998 = vmatprep.subr.bf16.mxu0 0
    %1999 = vmatpush1.bf16.msra.mxu0 0
    %2000 = vmatprep.subr.bf16.mxu0 0
    %2001 = vmatpush1.bf16.msra.mxu0 0
    %2002 = vmatprep.subr.bf16.mxu0 0
    %2003 = vmatpush1.bf16.msra.mxu0 0
    %2004 = vmatprep.subr.bf16.mxu0 0
    %2005 = vmatpush1.bf16.msra.mxu0 0
    %2006 = vmatprep.subr.bf16.mxu0 0
    %2007 = vmatpush1.bf16.msra.mxu0 0
    %2008 = vmatprep.subr.bf16.mxu0 0
    %2009 = vmatpush1.bf16.msra.mxu0 0
    %2010 = vmatprep.subr.bf16.mxu0 0
    %2011 = vmatpush1.bf16.msra.mxu0 0
    %2012 = vmatprep.subr.bf16.mxu0 0
    %2013 = vmatpush1.bf16.msra.mxu0 0
    %2014 = vmatprep.subr.bf16.mxu0 0
    %2015 = vmatpush1.bf16.msra.mxu0 0
    %2016 = vmatprep.subr.bf16.mxu0 0
    %2017 = vmatpush1.bf16.msra.mxu0 0
    %2018 = vmatprep.subr.bf16.mxu0 0
    %2019 = vmatpush1.bf16.msra.mxu0 0
    %2020 = vmatprep.subr.bf16.mxu0 0
    %2021 = vmatpush1.bf16.msra.mxu0 0
    %2022 = vmatprep.subr.bf16.mxu0 0
    %2023 = vmatpush1.bf16.msra.mxu0 0
    %2024 = vmatprep.mubr.bf16.mxu0 0
    %2025 = vmatmul.mubr.bf16.gmra.mrb[0].mxu0 %v1935
    %v2026 = vpop.f32.mrb[0].mxu0
    %v2027 = vadd.f32 0.0, %v2026
    %v2028 = vpop.f32.mrb[0].mxu0
    %v2029 = vadd.f32 0.0, %v2028
    %v2030 = vpop.f32.mrb[0].mxu0
    %v2031 = vadd.f32 0.0, %v2030
    %v2032 = vpop.f32.mrb[0].mxu0
    %v2033 = vadd.f32 0.0, %v2032
    %2034 = vdwg.mxu0
    %v2035 = vadd.f32 %v1463, %v1984
    %v2036 = vadd.f32 %v1465, %v1986
    %v2037 = vadd.f32 %v1506, %v2027
    %v2038 = vadd.f32 %v1508, %v2029
    %v2039 = vadd.f32 %v1467, %v1988
    %v2040 = vadd.f32 %v1469, %v1990
    %v2041 = vadd.f32 %v1510, %v2031
    %v2042 = vadd.f32 %v1512, %v2033
    %v2043 = vld [vmem:[#allocation8] sm:$0xf]
    %v2044 = vpack.c.bf16 %v831, %v831
    %v2045 = vpack.c.bf16 %v832, %v832
    %v2046 = vpack.c.bf16 %v833, %v833
    %v2047 = vpack.c.bf16 %v834, %v834
    %v2049 = vsel %vm1305, %v2043, 0
    %v2052 = vsel %vm1309, %v2044, 0
    %v2055 = vsel %vm1309, %v2045, 0
    %v2058 = vsel %vm1309, %v2046, 0
    %v2061 = vsel %vm1309, %v2047, 0
    %2063 = vmatprep.subr.bf16.mxu0 %v2055
    %2064 = vmatpush1.bf16.msra.mxu0 %v2052
    %2065 = vmatprep.subr.bf16.mxu0 0
    %2066 = vmatpush1.bf16.msra.mxu0 0
    %2067 = vmatprep.subr.bf16.mxu0 0
    %2068 = vmatpush1.bf16.msra.mxu0 0
    %2069 = vmatprep.subr.bf16.mxu0 0
    %2070 = vmatpush1.bf16.msra.mxu0 0
    %2071 = vmatprep.subr.bf16.mxu0 0
    %2072 = vmatpush1.bf16.msra.mxu0 0
    %2073 = vmatprep.subr.bf16.mxu0 0
    %2074 = vmatpush1.bf16.msra.mxu0 0
    %2075 = vmatprep.subr.bf16.mxu0 0
    %2076 = vmatpush1.bf16.msra.mxu0 0
    %2077 = vmatprep.subr.bf16.mxu0 0
    %2078 = vmatpush1.bf16.msra.mxu0 0
    %2079 = vmatprep.subr.bf16.mxu0 0
    %2080 = vmatpush1.bf16.msra.mxu0 0
    %2081 = vmatprep.subr.bf16.mxu0 0
    %2082 = vmatpush1.bf16.msra.mxu0 0
    %2083 = vmatprep.subr.bf16.mxu0 0
    %2084 = vmatpush1.bf16.msra.mxu0 0
    %2085 = vmatprep.subr.bf16.mxu0 0
    %2086 = vmatpush1.bf16.msra.mxu0 0
    %2087 = vmatprep.subr.bf16.mxu0 0
    %2088 = vmatpush1.bf16.msra.mxu0 0
    %2089 = vmatprep.subr.bf16.mxu0 0
    %2090 = vmatpush1.bf16.msra.mxu0 0
    %2091 = vmatprep.subr.bf16.mxu0 0
    %2092 = vmatpush1.bf16.msra.mxu0 0
    %2093 = vmatprep.subr.bf16.mxu0 0
    %2094 = vmatpush1.bf16.msra.mxu0 0
    %2095 = vmatprep.mubr.bf16.mxu0 0
    %2096 = vmatmul.mubr.bf16.gmra.mrb[0].mxu0 %v2049
    %v2097 = vpop.f32.mrb[0].mxu0
    %v2098 = vadd.f32 0.0, %v2097
    %v2099 = vpop.f32.mrb[0].mxu0
    %v2100 = vadd.f32 0.0, %v2099
    %v2101 = vpop.f32.mrb[0].mxu0
    %v2102 = vpop.f32.mrb[0].mxu0
    %2103 = vdwg.mxu0
    %2104 = vmatprep.subr.bf16.mxu0 %v2061
    %2105 = vmatpush1.bf16.msra.mxu0 %v2058
    %2106 = vmatprep.subr.bf16.mxu0 0
    %2107 = vmatpush1.bf16.msra.mxu0 0
    %2108 = vmatprep.subr.bf16.mxu0 0
    %2109 = vmatpush1.bf16.msra.mxu0 0
    %2110 = vmatprep.subr.bf16.mxu0 0
    %2111 = vmatpush1.bf16.msra.mxu0 0
    %2112 = vmatprep.subr.bf16.mxu0 0
    %2113 = vmatpush1.bf16.msra.mxu0 0
    %2114 = vmatprep.subr.bf16.mxu0 0
    %2115 = vmatpush1.bf16.msra.mxu0 0
    %2116 = vmatprep.subr.bf16.mxu0 0
    %2117 = vmatpush1.bf16.msra.mxu0 0
    %2118 = vmatprep.subr.bf16.mxu0 0
    %2119 = vmatpush1.bf16.msra.mxu0 0
    %2120 = vmatprep.subr.bf16.mxu0 0
    %2121 = vmatpush1.bf16.msra.mxu0 0
    %2122 = vmatprep.subr.bf16.mxu0 0
    %2123 = vmatpush1.bf16.msra.mxu0 0
    %2124 = vmatprep.subr.bf16.mxu0 0
    %2125 = vmatpush1.bf16.msra.mxu0 0
    %2126 = vmatprep.subr.bf16.mxu0 0
    %2127 = vmatpush1.bf16.msra.mxu0 0
    %2128 = vmatprep.subr.bf16.mxu0 0
    %2129 = vmatpush1.bf16.msra.mxu0 0
    %2130 = vmatprep.subr.bf16.mxu0 0
    %2131 = vmatpush1.bf16.msra.mxu0 0
    %2132 = vmatprep.subr.bf16.mxu0 0
    %2133 = vmatpush1.bf16.msra.mxu0 0
    %2134 = vmatprep.subr.bf16.mxu0 0
    %2135 = vmatpush1.bf16.msra.mxu0 0
    %2136 = vmatprep.mubr.bf16.mxu0 0
    %2137 = vmatmul.mubr.bf16.gmra.mrb[0].mxu0 %v2049
    %v2138 = vpop.f32.mrb[0].mxu0
    %v2139 = vadd.f32 0.0, %v2138
    %v2140 = vpop.f32.mrb[0].mxu0
    %v2141 = vadd.f32 0.0, %v2140
    %v2142 = vpop.f32.mrb[0].mxu0
    %v2143 = vpop.f32.mrb[0].mxu0
    %2144 = vdwg.mxu0
    %2145 = vset.pattern.permute.xlu0 8
    %2146 = vperm.xlu0 %2145, %v105
    %v2147 = vpop.permute.xlu0 %2146
    %v2149 = vmul.f32 %v2098, %v2147
    %v2150 = vmul.f32 %v2100, %v2147
    %v2151 = vmul.f32 %v2139, %v2147
    %v2152 = vmul.f32 %v2141, %v2147
    %2153 = vset.pattern.permute.xlu0 9
    %2154 = vperm.xlu0 %2153, %v105
    %v2155 = vpop.permute.xlu0 %2154
    %v2157 = vadd.f32 %v2149, %v2155
    %v2158 = vadd.f32 %v2150, %v2155
    %v2159 = vadd.f32 %v2151, %v2155
    %v2160 = vadd.f32 %v2152, %v2155
    %v2161 = vsub.f32 0.0, %v2157
    %v2162 = vsub.f32 0.0, %v2158
    %v2163 = vsub.f32 0.0, %v2159
    %v2164 = vsub.f32 0.0, %v2160
    %v2165 = vmul.f32 %v2161, 1.442695
    %v2166 = vpow.pop %v2165
    %v2167 = vmul.f32 %v2162, 1.442695
    %v2168 = vpow.pop %v2167
    %v2169 = vmul.f32 %v2163, 1.442695
    %v2170 = vpow.pop %v2169
    %v2171 = vmul.f32 %v2164, 1.442695
    %v2172 = vpow.pop %v2171
    %v2173 = vadd.f32 %v2166, 1.0
    %v2174 = vadd.f32 %v2168, 1.0
    %v2175 = vadd.f32 %v2170, 1.0
    %v2176 = vadd.f32 %v2172, 1.0
    %v2177 = vrcp.pop %v2173
    %v2178 = vrcp.pop %v2174
    %v2179 = vrcp.pop %v2175
    %v2180 = vrcp.pop %v2176
    %v2181 = vmul.f32 %v2157, %v2177
    %v2182 = vmul.f32 %v2158, %v2178
    %v2183 = vmul.f32 %v2159, %v2179
    %v2184 = vmul.f32 %v2160, %v2180
    %s2185 = scalar_lea.vmem %s7, 24
    %v2186 = vld [vmem:[%s2185] sm:$0xf]
    %v2187 = vld [vmem:[%s2185 + $0x4] sm:$0xf]
    %v2188 = vpack.c.bf16 %v2181, %v2181
    %v2189 = vpack.c.bf16 %v2182, %v2182
    %v2190 = vpack.c.bf16 %v2183, %v2183
    %v2191 = vpack.c.bf16 %v2184, %v2184
    %v2194 = vunpack.c.l.b16 %v2186
    %v2195 = vunpack.c.l.b16 %v2187
    %v2196 = vpack.c.b16 %v2195, %v2194
    %v2198 = vsel %vm1305, %v2196, 0
    %v2201 = vsel %vm1309, %v2188, 0
    %v2204 = vsel %vm1309, %v2189, 0
    %v2207 = vsel %vm1309, %v2190, 0
    %v2210 = vsel %vm1309, %v2191, 0
    %2212 = vmatprep.subr.bf16.mxu0 %v2204
    %2213 = vmatpush1.bf16.msra.mxu0 %v2201
    %2214 = vmatprep.subr.bf16.mxu0 0
    %2215 = vmatpush1.bf16.msra.mxu0 0
    %2216 = vmatprep.subr.bf16.mxu0 0
    %2217 = vmatpush1.bf16.msra.mxu0 0
    %2218 = vmatprep.subr.bf16.mxu0 0
    %2219 = vmatpush1.bf16.msra.mxu0 0
    %2220 = vmatprep.subr.bf16.mxu0 0
    %2221 = vmatpush1.bf16.msra.mxu0 0
    %2222 = vmatprep.subr.bf16.mxu0 0
    %2223 = vmatpush1.bf16.msra.mxu0 0
    %2224 = vmatprep.subr.bf16.mxu0 0
    %2225 = vmatpush1.bf16.msra.mxu0 0
    %2226 = vmatprep.subr.bf16.mxu0 0
    %2227 = vmatpush1.bf16.msra.mxu0 0
    %2228 = vmatprep.subr.bf16.mxu0 0
    %2229 = vmatpush1.bf16.msra.mxu0 0
    %2230 = vmatprep.subr.bf16.mxu0 0
    %2231 = vmatpush1.bf16.msra.mxu0 0
    %2232 = vmatprep.subr.bf16.mxu0 0
    %2233 = vmatpush1.bf16.msra.mxu0 0
    %2234 = vmatprep.subr.bf16.mxu0 0
    %2235 = vmatpush1.bf16.msra.mxu0 0
    %2236 = vmatprep.subr.bf16.mxu0 0
    %2237 = vmatpush1.bf16.msra.mxu0 0
    %2238 = vmatprep.subr.bf16.mxu0 0
    %2239 = vmatpush1.bf16.msra.mxu0 0
    %2240 = vmatprep.subr.bf16.mxu0 0
    %2241 = vmatpush1.bf16.msra.mxu0 0
    %2242 = vmatprep.subr.bf16.mxu0 0
    %2243 = vmatpush1.bf16.msra.mxu0 0
    %2244 = vmatprep.mubr.bf16.mxu0 0
    %2245 = vmatmul.mubr.bf16.gmra.mrb[0].mxu0 %v2198
    %v2246 = vpop.f32.mrb[0].mxu0
    %v2247 = vadd.f32 0.0, %v2246
    %v2248 = vpop.f32.mrb[0].mxu0
    %v2249 = vadd.f32 0.0, %v2248
    %v2250 = vpop.f32.mrb[0].mxu0
    %v2251 = vadd.f32 0.0, %v2250
    %v2252 = vpop.f32.mrb[0].mxu0
    %v2253 = vadd.f32 0.0, %v2252
    %2254 = vdwg.mxu0
    %2255 = vmatprep.subr.bf16.mxu0 %v2210
    %2256 = vmatpush1.bf16.msra.mxu0 %v2207
    %2257 = vmatprep.subr.bf16.mxu0 0
    %2258 = vmatpush1.bf16.msra.mxu0 0
    %2259 = vmatprep.subr.bf16.mxu0 0
    %2260 = vmatpush1.bf16.msra.mxu0 0
    %2261 = vmatprep.subr.bf16.mxu0 0
    %2262 = vmatpush1.bf16.msra.mxu0 0
    %2263 = vmatprep.subr.bf16.mxu0 0
    %2264 = vmatpush1.bf16.msra.mxu0 0
    %2265 = vmatprep.subr.bf16.mxu0 0
    %2266 = vmatpush1.bf16.msra.mxu0 0
    %2267 = vmatprep.subr.bf16.mxu0 0
    %2268 = vmatpush1.bf16.msra.mxu0 0
    %2269 = vmatprep.subr.bf16.mxu0 0
    %2270 = vmatpush1.bf16.msra.mxu0 0
    %2271 = vmatprep.subr.bf16.mxu0 0
    %2272 = vmatpush1.bf16.msra.mxu0 0
    %2273 = vmatprep.subr.bf16.mxu0 0
    %2274 = vmatpush1.bf16.msra.mxu0 0
    %2275 = vmatprep.subr.bf16.mxu0 0
    %2276 = vmatpush1.bf16.msra.mxu0 0
    %2277 = vmatprep.subr.bf16.mxu0 0
    %2278 = vmatpush1.bf16.msra.mxu0 0
    %2279 = vmatprep.subr.bf16.mxu0 0
    %2280 = vmatpush1.bf16.msra.mxu0 0
    %2281 = vmatprep.subr.bf16.mxu0 0
    %2282 = vmatpush1.bf16.msra.mxu0 0
    %2283 = vmatprep.subr.bf16.mxu0 0
    %2284 = vmatpush1.bf16.msra.mxu0 0
    %2285 = vmatprep.subr.bf16.mxu0 0
    %2286 = vmatpush1.bf16.msra.mxu0 0
    %2287 = vmatprep.mubr.bf16.mxu0 0
    %2288 = vmatmul.mubr.bf16.gmra.mrb[0].mxu0 %v2198
    %v2289 = vpop.f32.mrb[0].mxu0
    %v2290 = vadd.f32 0.0, %v2289
    %v2291 = vpop.f32.mrb[0].mxu0
    %v2292 = vadd.f32 0.0, %v2291
    %v2293 = vpop.f32.mrb[0].mxu0
    %v2294 = vadd.f32 0.0, %v2293
    %v2295 = vpop.f32.mrb[0].mxu0
    %v2296 = vadd.f32 0.0, %v2295
    %2297 = vdwg.mxu0
    %v2298 = vadd.f32 %v2035, %v2247
    %v2299 = vadd.f32 %v2036, %v2249
    %v2300 = vadd.f32 %v2037, %v2290
    %v2301 = vadd.f32 %v2038, %v2292
    %v2302 = vadd.f32 %v2039, %v2251
    %v2303 = vadd.f32 %v2040, %v2253
    %v2304 = vadd.f32 %v2041, %v2294
    %v2305 = vadd.f32 %v2042, %v2296
    %s2306 = scalar_lea.vmem [#allocation8], 4
    %v2307 = vld [vmem:[%s2306] sm:$0xf]
    %v2308 = vpack.c.bf16 %v835, %v835
    %v2309 = vpack.c.bf16 %v836, %v836
    %v2310 = vpack.c.bf16 %v837, %v837
    %v2311 = vpack.c.bf16 %v838, %v838
    %v2313 = vsel %vm1305, %v2307, 0
    %v2316 = vsel %vm1309, %v2308, 0
    %v2319 = vsel %vm1309, %v2309, 0
    %v2322 = vsel %vm1309, %v2310, 0
    %v2325 = vsel %vm1309, %v2311, 0
    %2327 = vmatprep.subr.bf16.mxu0 %v2319
    %2328 = vmatpush1.bf16.msra.mxu0 %v2316
    %2329 = vmatprep.subr.bf16.mxu0 0
    %2330 = vmatpush1.bf16.msra.mxu0 0
    %2331 = vmatprep.subr.bf16.mxu0 0
    %2332 = vmatpush1.bf16.msra.mxu0 0
    %2333 = vmatprep.subr.bf16.mxu0 0
    %2334 = vmatpush1.bf16.msra.mxu0 0
    %2335 = vmatprep.subr.bf16.mxu0 0
    %2336 = vmatpush1.bf16.msra.mxu0 0
    %2337 = vmatprep.subr.bf16.mxu0 0
    %2338 = vmatpush1.bf16.msra.mxu0 0
    %2339 = vmatprep.subr.bf16.mxu0 0
    %2340 = vmatpush1.bf16.msra.mxu0 0
    %2341 = vmatprep.subr.bf16.mxu0 0
    %2342 = vmatpush1.bf16.msra.mxu0 0
    %2343 = vmatprep.subr.bf16.mxu0 0
    %2344 = vmatpush1.bf16.msra.mxu0 0
    %2345 = vmatprep.subr.bf16.mxu0 0
    %2346 = vmatpush1.bf16.msra.mxu0 0
    %2347 = vmatprep.subr.bf16.mxu0 0
    %2348 = vmatpush1.bf16.msra.mxu0 0
    %2349 = vmatprep.subr.bf16.mxu0 0
    %2350 = vmatpush1.bf16.msra.mxu0 0
    %2351 = vmatprep.subr.bf16.mxu0 0
    %2352 = vmatpush1.bf16.msra.mxu0 0
    %2353 = vmatprep.subr.bf16.mxu0 0
    %2354 = vmatpush1.bf16.msra.mxu0 0
    %2355 = vmatprep.subr.bf16.mxu0 0
    %2356 = vmatpush1.bf16.msra.mxu0 0
    %2357 = vmatprep.subr.bf16.mxu0 0
    %2358 = vmatpush1.bf16.msra.mxu0 0
    %2359 = vmatprep.mubr.bf16.mxu0 0
    %2360 = vmatmul.mubr.bf16.gmra.mrb[0].mxu0 %v2313
    %v2361 = vpop.f32.mrb[0].mxu0
    %v2362 = vadd.f32 0.0, %v2361
    %v2363 = vpop.f32.mrb[0].mxu0
    %v2364 = vadd.f32 0.0, %v2363
    %v2365 = vpop.f32.mrb[0].mxu0
    %v2366 = vpop.f32.mrb[0].mxu0
    %2367 = vdwg.mxu0
    %2368 = vmatprep.subr.bf16.mxu0 %v2325
    %2369 = vmatpush1.bf16.msra.mxu0 %v2322
    %2370 = vmatprep.subr.bf16.mxu0 0
    %2371 = vmatpush1.bf16.msra.mxu0 0
    %2372 = vmatprep.subr.bf16.mxu0 0
    %2373 = vmatpush1.bf16.msra.mxu0 0
    %2374 = vmatprep.subr.bf16.mxu0 0
    %2375 = vmatpush1.bf16.msra.mxu0 0
    %2376 = vmatprep.subr.bf16.mxu0 0
    %2377 = vmatpush1.bf16.msra.mxu0 0
    %2378 = vmatprep.subr.bf16.mxu0 0
    %2379 = vmatpush1.bf16.msra.mxu0 0
    %2380 = vmatprep.subr.bf16.mxu0 0
    %2381 = vmatpush1.bf16.msra.mxu0 0
    %2382 = vmatprep.subr.bf16.mxu0 0
    %2383 = vmatpush1.bf16.msra.mxu0 0
    %2384 = vmatprep.subr.bf16.mxu0 0
    %2385 = vmatpush1.bf16.msra.mxu0 0
    %2386 = vmatprep.subr.bf16.mxu0 0
    %2387 = vmatpush1.bf16.msra.mxu0 0
    %2388 = vmatprep.subr.bf16.mxu0 0
    %2389 = vmatpush1.bf16.msra.mxu0 0
    %2390 = vmatprep.subr.bf16.mxu0 0
    %2391 = vmatpush1.bf16.msra.mxu0 0
    %2392 = vmatprep.subr.bf16.mxu0 0
    %2393 = vmatpush1.bf16.msra.mxu0 0
    %2394 = vmatprep.subr.bf16.mxu0 0
    %2395 = vmatpush1.bf16.msra.mxu0 0
    %2396 = vmatprep.subr.bf16.mxu0 0
    %2397 = vmatpush1.bf16.msra.mxu0 0
    %2398 = vmatprep.subr.bf16.mxu0 0
    %2399 = vmatpush1.bf16.msra.mxu0 0
    %2400 = vmatprep.mubr.bf16.mxu0 0
    %2401 = vmatmul.mubr.bf16.gmra.mrb[0].mxu0 %v2313
    %v2402 = vpop.f32.mrb[0].mxu0
    %v2403 = vadd.f32 0.0, %v2402
    %v2404 = vpop.f32.mrb[0].mxu0
    %v2405 = vadd.f32 0.0, %v2404
    %v2406 = vpop.f32.mrb[0].mxu0
    %v2407 = vpop.f32.mrb[0].mxu0
    %2408 = vdwg.mxu0
    %2409 = vset.pattern.permute.xlu0 10
    %2410 = vperm.xlu0 %2409, %v105
    %v2411 = vpop.permute.xlu0 %2410
    %v2413 = vmul.f32 %v2362, %v2411
    %v2414 = vmul.f32 %v2364, %v2411
    %v2415 = vmul.f32 %v2403, %v2411
    %v2416 = vmul.f32 %v2405, %v2411
    %2417 = vset.pattern.permute.xlu0 11
    %2418 = vperm.xlu0 %2417, %v105
    %v2419 = vpop.permute.xlu0 %2418
    %v2421 = vadd.f32 %v2413, %v2419
    %v2422 = vadd.f32 %v2414, %v2419
    %v2423 = vadd.f32 %v2415, %v2419
    %v2424 = vadd.f32 %v2416, %v2419
    %v2425 = vsub.f32 0.0, %v2421
    %v2426 = vsub.f32 0.0, %v2422
    %v2427 = vsub.f32 0.0, %v2423
    %v2428 = vsub.f32 0.0, %v2424
    %v2429 = vmul.f32 %v2425, 1.442695
    %v2430 = vpow.pop %v2429
    %v2431 = vmul.f32 %v2426, 1.442695
    %v2432 = vpow.pop %v2431
    %v2433 = vmul.f32 %v2427, 1.442695
    %v2434 = vpow.pop %v2433
    %v2435 = vmul.f32 %v2428, 1.442695
    %v2436 = vpow.pop %v2435
    %v2437 = vadd.f32 %v2430, 1.0
    %v2438 = vadd.f32 %v2432, 1.0
    %v2439 = vadd.f32 %v2434, 1.0
    %v2440 = vadd.f32 %v2436, 1.0
    %v2441 = vrcp.pop %v2437
    %v2442 = vrcp.pop %v2438
    %v2443 = vrcp.pop %v2439
    %v2444 = vrcp.pop %v2440
    %v2445 = vmul.f32 %v2421, %v2441
    %v2446 = vmul.f32 %v2422, %v2442
    %v2447 = vmul.f32 %v2423, %v2443
    %v2448 = vmul.f32 %v2424, %v2444
    %s2449 = scalar_lea.vmem %s7, 32
    %v2450 = vld [vmem:[%s2449] sm:$0xf]
    %v2451 = vld [vmem:[%s2449 + $0x4] sm:$0xf]
    %v2452 = vpack.c.bf16 %v2445, %v2445
    %v2453 = vpack.c.bf16 %v2446, %v2446
    %v2454 = vpack.c.bf16 %v2447, %v2447
    %v2455 = vpack.c.bf16 %v2448, %v2448
    %v2458 = vunpack.c.l.b16 %v2450
    %v2459 = vunpack.c.l.b16 %v2451
    %v2460 = vpack.c.b16 %v2459, %v2458
    %v2462 = vsel %vm1305, %v2460, 0
    %v2465 = vsel %vm1309, %v2452, 0
    %v2468 = vsel %vm1309, %v2453, 0
    %v2471 = vsel %vm1309, %v2454, 0
    %v2474 = vsel %vm1309, %v2455, 0
    %2476 = vmatprep.subr.bf16.mxu0 %v2468
    %2477 = vmatpush1.bf16.msra.mxu0 %v2465
    %2478 = vmatprep.subr.bf16.mxu0 0
    %2479 = vmatpush1.bf16.msra.mxu0 0
    %2480 = vmatprep.subr.bf16.mxu0 0
    %2481 = vmatpush1.bf16.msra.mxu0 0
    %2482 = vmatprep.subr.bf16.mxu0 0
    %2483 = vmatpush1.bf16.msra.mxu0 0
    %2484 = vmatprep.subr.bf16.mxu0 0
    %2485 = vmatpush1.bf16.msra.mxu0 0
    %2486 = vmatprep.subr.bf16.mxu0 0
    %2487 = vmatpush1.bf16.msra.mxu0 0
    %2488 = vmatprep.subr.bf16.mxu0 0
    %2489 = vmatpush1.bf16.msra.mxu0 0
    %2490 = vmatprep.subr.bf16.mxu0 0
    %2491 = vmatpush1.bf16.msra.mxu0 0
    %2492 = vmatprep.subr.bf16.mxu0 0
    %2493 = vmatpush1.bf16.msra.mxu0 0
    %2494 = vmatprep.subr.bf16.mxu0 0
    %2495 = vmatpush1.bf16.msra.mxu0 0
    %2496 = vmatprep.subr.bf16.mxu0 0
    %2497 = vmatpush1.bf16.msra.mxu0 0
    %2498 = vmatprep.subr.bf16.mxu0 0
    %2499 = vmatpush1.bf16.msra.mxu0 0
    %2500 = vmatprep.subr.bf16.mxu0 0
    %2501 = vmatpush1.bf16.msra.mxu0 0
    %2502 = vmatprep.subr.bf16.mxu0 0
    %2503 = vmatpush1.bf16.msra.mxu0 0
    %2504 = vmatprep.subr.bf16.mxu0 0
    %2505 = vmatpush1.bf16.msra.mxu0 0
    %2506 = vmatprep.subr.bf16.mxu0 0
    %2507 = vmatpush1.bf16.msra.mxu0 0
    %2508 = vmatprep.mubr.bf16.mxu0 0
    %2509 = vmatmul.mubr.bf16.gmra.mrb[0].mxu0 %v2462
    %v2510 = vpop.f32.mrb[0].mxu0
    %v2511 = vadd.f32 0.0, %v2510
    %v2512 = vpop.f32.mrb[0].mxu0
    %v2513 = vadd.f32 0.0, %v2512
    %v2514 = vpop.f32.mrb[0].mxu0
    %v2515 = vadd.f32 0.0, %v2514
    %v2516 = vpop.f32.mrb[0].mxu0
    %v2517 = vadd.f32 0.0, %v2516
    %2518 = vdwg.mxu0
    %2519 = vmatprep.subr.bf16.mxu0 %v2474
    %2520 = vmatpush1.bf16.msra.mxu0 %v2471
    %2521 = vmatprep.subr.bf16.mxu0 0
    %2522 = vmatpush1.bf16.msra.mxu0 0
    %2523 = vmatprep.subr.bf16.mxu0 0
    %2524 = vmatpush1.bf16.msra.mxu0 0
    %2525 = vmatprep.subr.bf16.mxu0 0
    %2526 = vmatpush1.bf16.msra.mxu0 0
    %2527 = vmatprep.subr.bf16.mxu0 0
    %2528 = vmatpush1.bf16.msra.mxu0 0
    %2529 = vmatprep.subr.bf16.mxu0 0
    %2530 = vmatpush1.bf16.msra.mxu0 0
    %2531 = vmatprep.subr.bf16.mxu0 0
    %2532 = vmatpush1.bf16.msra.mxu0 0
    %2533 = vmatprep.subr.bf16.mxu0 0
    %2534 = vmatpush1.bf16.msra.mxu0 0
    %2535 = vmatprep.subr.bf16.mxu0 0
    %2536 = vmatpush1.bf16.msra.mxu0 0
    %2537 = vmatprep.subr.bf16.mxu0 0
    %2538 = vmatpush1.bf16.msra.mxu0 0
    %2539 = vmatprep.subr.bf16.mxu0 0
    %2540 = vmatpush1.bf16.msra.mxu0 0
    %2541 = vmatprep.subr.bf16.mxu0 0
    %2542 = vmatpush1.bf16.msra.mxu0 0
    %2543 = vmatprep.subr.bf16.mxu0 0
    %2544 = vmatpush1.bf16.msra.mxu0 0
    %2545 = vmatprep.subr.bf16.mxu0 0
    %2546 = vmatpush1.bf16.msra.mxu0 0
    %2547 = vmatprep.subr.bf16.mxu0 0
    %2548 = vmatpush1.bf16.msra.mxu0 0
    %2549 = vmatprep.subr.bf16.mxu0 0
    %2550 = vmatpush1.bf16.msra.mxu0 0
    %2551 = vmatprep.mubr.bf16.mxu0 0
    %2552 = vmatmul.mubr.bf16.gmra.mrb[0].mxu0 %v2462
    %v2553 = vpop.f32.mrb[0].mxu0
    %v2554 = vadd.f32 0.0, %v2553
    %v2555 = vpop.f32.mrb[0].mxu0
    %v2556 = vadd.f32 0.0, %v2555
    %v2557 = vpop.f32.mrb[0].mxu0
    %v2558 = vadd.f32 0.0, %v2557
    %v2559 = vpop.f32.mrb[0].mxu0
    %v2560 = vadd.f32 0.0, %v2559
    %2561 = vdwg.mxu0
    %v2562 = vadd.f32 %v2298, %v2511
    %v2563 = vadd.f32 %v2299, %v2513
    %v2564 = vadd.f32 %v2300, %v2554
    %v2565 = vadd.f32 %v2301, %v2556
    %v2566 = vadd.f32 %v2302, %v2515
    %v2567 = vadd.f32 %v2303, %v2517
    %v2568 = vadd.f32 %v2304, %v2558
    %v2569 = vadd.f32 %v2305, %v2560
    %v2570 = vld [vmem:[%s9] sm:$0xff]
    %v2571 = vld [vmem:[%s9 + $0x8] sm:$0xff]
    %2573 = vset.pattern.permute.xlu0 0
    %2574 = vperm.xlu0 %2573, %v2570
    %v2575 = vpop.permute.xlu0 %2574
    %2578 = vset.pattern.permute.xlu0 0
    %2579 = vperm.xlu0 %2578, %v2571
    %v2580 = vpop.permute.xlu0 %2579
    %v2582 = vmul.f32 %v2562, %v2575
    %v2583 = vmul.f32 %v2563, %v2575
    %v2584 = vmul.f32 %v2564, %v2575
    %v2585 = vmul.f32 %v2565, %v2575
    %v2586 = vmul.f32 %v2566, %v2580
    %v2587 = vmul.f32 %v2567, %v2580
    %v2588 = vmul.f32 %v2568, %v2580
    %v2589 = vmul.f32 %v2569, %v2580
    %2590 = vset.pattern.permute.xlu0 1
    %2591 = vperm.xlu0 %2590, %v2570
    %v2592 = vpop.permute.xlu0 %2591
    %2594 = vset.pattern.permute.xlu0 1
    %2595 = vperm.xlu0 %2594, %v2571
    %v2596 = vpop.permute.xlu0 %2595
    %v2598 = vadd.f32 %v2582, %v2592
    %v2599 = vadd.f32 %v2583, %v2592
    %v2600 = vadd.f32 %v2584, %v2592
    %v2601 = vadd.f32 %v2585, %v2592
    %v2602 = vadd.f32 %v2586, %v2596
    %v2603 = vadd.f32 %v2587, %v2596
    %v2604 = vadd.f32 %v2588, %v2596
    %v2605 = vadd.f32 %v2589, %v2596
    %v2606 = vsub.f32 0.0, %v2598
    %v2607 = vsub.f32 0.0, %v2599
    %v2608 = vsub.f32 0.0, %v2600
    %v2609 = vsub.f32 0.0, %v2601
    %v2610 = vsub.f32 0.0, %v2602
    %v2611 = vsub.f32 0.0, %v2603
    %v2612 = vsub.f32 0.0, %v2604
    %v2613 = vsub.f32 0.0, %v2605
    %v2614 = vmul.f32 %v2606, 1.442695
    %v2615 = vpow.pop %v2614
    %v2616 = vmul.f32 %v2607, 1.442695
    %v2617 = vpow.pop %v2616
    %v2618 = vmul.f32 %v2608, 1.442695
    %v2619 = vpow.pop %v2618
    %v2620 = vmul.f32 %v2609, 1.442695
    %v2621 = vpow.pop %v2620
    %v2622 = vmul.f32 %v2610, 1.442695
    %v2623 = vpow.pop %v2622
    %v2624 = vmul.f32 %v2611, 1.442695
    %v2625 = vpow.pop %v2624
    %v2626 = vmul.f32 %v2612, 1.442695
    %v2627 = vpow.pop %v2626
    %v2628 = vmul.f32 %v2613, 1.442695
    %v2629 = vpow.pop %v2628
    %v2630 = vadd.f32 %v2615, 1.0
    %v2631 = vadd.f32 %v2617, 1.0
    %v2632 = vadd.f32 %v2619, 1.0
    %v2633 = vadd.f32 %v2621, 1.0
    %v2634 = vadd.f32 %v2623, 1.0
    %v2635 = vadd.f32 %v2625, 1.0
    %v2636 = vadd.f32 %v2627, 1.0
    %v2637 = vadd.f32 %v2629, 1.0
    %v2638 = vrcp.pop %v2630
    %v2639 = vrcp.pop %v2631
    %v2640 = vrcp.pop %v2632
    %v2641 = vrcp.pop %v2633
    %v2642 = vrcp.pop %v2634
    %v2643 = vrcp.pop %v2635
    %v2644 = vrcp.pop %v2636
    %v2645 = vrcp.pop %v2637
    %v2646 = vmul.f32 %v2598, %v2638
    %v2647 = vmul.f32 %v2599, %v2639
    %v2648 = vmul.f32 %v2600, %v2640
    %v2649 = vmul.f32 %v2601, %v2641
    %v2650 = vmul.f32 %v2602, %v2642
    %v2651 = vmul.f32 %v2603, %v2643
    %v2652 = vmul.f32 %v2604, %v2644
    %v2653 = vmul.f32 %v2605, %v2645
    %2654 = vst [vmem:[#allocation10] sm:$0xff] %v2646
    %2655 = vst [vmem:[#allocation10 + $0x8] sm:$0xff] %v2647
    %2656 = vst [vmem:[#allocation10 + $0x10] sm:$0xff] %v2648
    %2657 = vst [vmem:[#allocation10 + $0x18] sm:$0xff] %v2649
    %2658 = vst [vmem:[#allocation10 + $0x20] sm:$0xff] %v2650
    %2659 = vst [vmem:[#allocation10 + $0x28] sm:$0xff] %v2651
    %2660 = vst [vmem:[#allocation10 + $0x30] sm:$0xff] %v2652
    %2661 = vst [vmem:[#allocation10 + $0x38] sm:$0xff] %v2653
    // Predicated region
    $region58: #{tpu_custom_call.1} parent=1 // pred_check
      _
    $region59: #{tpu_custom_call.1} parent=1 // pred_check_branch
      %2663 = sbr.rel (0) target = $region61
    $region60: #{tpu_custom_call.1} parent=1 // pred_region
      %s2665 = ssub.s32 1024, 1024
      %2666 = vsyncadd [#allocation4], %s2665
      %s2667 = sshll.u32 [#allocation10], 4
      %s2668 = int_to_ptr.vmem [resolvable:$true] %s2667
      %2673 = dma.vmem_to_hbm [thread:$0]  %s2668, 1024, %s10, [#allocation4], 512, 512, 32
    $region61: #{tpu_custom_call.1} parent=1 // pred_fallthru
      _
    // Predicated region
    $region62: #{tpu_custom_call.1} parent=1 // pred_check
      _
    $region63: #{tpu_custom_call.1} parent=1 // pred_check_branch
      %2675 = sbr.rel (0) target = $region65
    $region64: #{tpu_custom_call.1} parent=1 // pred_region
      %2676 = dma.done [#allocation4], 1024
    $region65: #{tpu_custom_call.1} parent=1 // pred_fallthru
      _
    %2677 = vsyncpa [#allocation3], 1
    %2678 = vsyncpa [#allocation6], 1
    %2679 = vsyncpa [#allocation9], 1
    %2680 = vsyncpa [#allocation4], 1

</llo_original>
